<compile_context>
chip_gen: v5e
topology: v5e:2x2
jax: 0.10.0
libtpu: 0.0.40
codegen_flags: <defaults>
</compile_context>

<pallas_src>
import functools

import jax
import jax.numpy as jnp
from jax import lax
from jax.experimental import pallas as pl
from jax.experimental.pallas import tpu as pltpu


# ----------------------------------------------------------------------------
# Fused kernel: one grid step == one image.
#
# Coordinates: the padded (2H+2) x (2W+2) grid is flattened to P0 = R*S lanes.
# Output pixel (oh, ow) lives at padded position p = (oh+1)*S + (ow+1); the
# set of all such p is covered by the contiguous range [S+1, S+1+L), L = P0 -
# 2*(S+1).  For a 3x3 conv, the tap (kh, kw) of output position p reads input
# position p + (kh-1)*S + (kw-1), i.e. the tap slice starts at lane kh*S + kw.
# Positions in the range that are padding columns are computed-then-masked.
# ----------------------------------------------------------------------------
def _mlp_policy_kernel(u_ref, mask_ref, w1_ref, b1_ref, w2_ref, b2_ref,
                       w3_ref, b3_ref, o_ref, *, S, L, C):
    """Fused ConvT(1->C)+ReLU -> Conv(C->C)+ReLU -> Conv(C->1) for one image.

    u_ref   : (1, 1, P0) f32   zero-dilated, zero-padded input, flattened
    mask_ref: (1, L)     f32   1.0 at real output pixels, 0.0 at pad columns
    w1_ref  : (C, 16)    f32   folded (flipped) ConvTranspose weight, K 9->16
    b1_ref  : (C, 1)     f32
    w2_ref  : (C, 9*C)   bf16  folded Conv2d(C,C) weight
    b2_ref  : (C, 1)     f32
    w3_ref  : (8, 9*C)   bf16  folded Conv2d(C,1) weight, Cout padded 1->8
    b3_ref  : (1, 1)     f32
    o_ref   : (1, 1, L)  f32   conv3 output over the contiguous padded range
    """
    pad = S + 1
    offs = [kh * S + kw for kh in range(3) for kw in range(3)]
    mask = mask_ref[...]                                         # (1, L)

    # ---- Layer 1: ConvTranspose2d == VALID 3x3 conv on the dilated input,
    #      9 taps folded into one (C,16)@(16,L) MXU matmul (K zero-padded).
    u = u_ref[0]                                                 # (1, P0) f32
    slab = jnp.concatenate(
        [u[:, o:o + L] for o in offs] + [jnp.zeros((7, L), jnp.float32)],
        axis=0)                                                  # (16, L)
    y = jnp.dot(w1_ref[...], slab, preferred_element_type=jnp.float32)
    y = jnp.maximum(y + b1_ref[...], 0.0) * mask                 # (C, L) f32

    # ---- Layer 2: Conv2d(C,C,3,p=1)+ReLU, taps folded -> K = 9*C = 288.
    zeros = jnp.zeros((C, pad), jnp.float32)
    a = jnp.concatenate([zeros, y, zeros], axis=1).astype(jnp.bfloat16)  # (C, P0)
    slab = jnp.concatenate([a[:, o:o + L] for o in offs], axis=0)        # (9C, L)
    y = jnp.dot(w2_ref[...], slab, preferred_element_type=jnp.float32)
    y = jnp.maximum(y + b2_ref[...], 0.0) * mask                 # (C, L) f32

    # ---- Layer 3: Conv2d(C,1,3,p=1); the output row is lane-dense (L lanes).
    a = jnp.concatenate([zeros, y, zeros], axis=1).astype(jnp.bfloat16)
    slab = jnp.concatenate([a[:, o:o + L] for o in offs], axis=0)        # (9C, L)
    o = jnp.dot(w3_ref[...], slab, preferred_element_type=jnp.float32)   # (8, L)
    o_ref[0] = o[0:1, :] + b3_ref[...]


def _fold_weight(w_hwio):
    """(3,3,Cin,Cout) HWIO -> (Cout, 9*Cin), row order = tap-major/Cin-minor,
    matching the kernel's slab layout."""
    kh, kw, cin, cout = w_hwio.shape
    return jnp.transpose(w_hwio, (3, 0, 1, 2)).reshape(cout, kh * kw * cin)


# ----------------------------------------------------------------------------
# Full MlpPolicy.forward (deepmdp=False).  Public I/O matches PyTorch NCHW.
# ----------------------------------------------------------------------------
@jax.jit
def mlp_policy_forward(z_nchw, params):
    """z_nchw: (N, 1, H, W) f32  ->  (N, 1, 2H, 2W) f32."""
    wt_eq, bt, w2, b2, w3, b3 = params               # HWIO weights (see init)
    N, _, H, W = z_nchw.shape
    C = wt_eq.shape[-1]
    H2, W2 = 2 * H, 2 * W
    R, S = H2 + 2, W2 + 2                            # padded output grid
    P0 = R * S
    pad = S + 1
    L = P0 - 2 * pad                                 # contiguous output range

    # ConvTranspose2d(s=2,p=1,op=1) == zero-dilate(2) + pad(1,2) + VALID conv
    # with the flipped kernel.  The dilation is the only XLA-side op (tiny).
    u = jnp.zeros((N, R, S), jnp.float32)
    u = u.at[:, 1:H2:2, 1:W2:2].set(z_nchw[:, 0].astype(jnp.float32))
    u = u.reshape(N, 1, P0)

    # Interior-column mask for the contiguous range [pad, pad + L).
    pos = pad + jnp.arange(L, dtype=jnp.int32)
    mask = ((pos % S >= 1) & (pos % S <= W2)).astype(jnp.float32).reshape(1, L)

    # Tap-folded weights (K = 9*Cin); bf16 MXU operands for layers 2/3.
    w1f = jnp.pad(_fold_weight(wt_eq), ((0, 0), (0, 7))).astype(jnp.float32)  # (C,16)
    w2f = _fold_weight(w2).astype(jnp.bfloat16)                               # (C,9C)
    w3f = jnp.concatenate(
        [_fold_weight(w3), jnp.zeros((7, 9 * C), w3.dtype)],
        axis=0).astype(jnp.bfloat16)                                          # (8,9C)
    b1c = bt.reshape(C, 1).astype(jnp.float32)
    b2c = b2.reshape(C, 1).astype(jnp.float32)
    b3c = b3.reshape(1, 1).astype(jnp.float32)

    kern = functools.partial(_mlp_policy_kernel, S=S, L=L, C=C)
    out_flat = pl.pallas_call(
        kern,
        out_shape=jax.ShapeDtypeStruct((N, 1, L), jnp.float32),
        grid=(N,),
        in_specs=[
            pl.BlockSpec((1, 1, P0), lambda n: (n, 0, 0)),   # per-image input
            pl.BlockSpec((1, L), lambda n: (0, 0)),          # shared mask
            pl.BlockSpec((C, 16), lambda n: (0, 0)),
            pl.BlockSpec((C, 1), lambda n: (0, 0)),
            pl.BlockSpec((C, 9 * C), lambda n: (0, 0)),
            pl.BlockSpec((C, 1), lambda n: (0, 0)),
            pl.BlockSpec((8, 9 * C), lambda n: (0, 0)),
            pl.BlockSpec((1, 1), lambda n: (0, 0)),
        ],
        out_specs=pl.BlockSpec((1, 1, L), lambda n: (n, 0, 0)),
        compiler_params=pltpu.CompilerParams(
            dimension_semantics=("parallel",)),
    )(u, mask, w1f, b1c, w2f, b2c, w3f, b3c)

    # Scatter the contiguous range back onto the (2H, 2W) image (wrapper-side
    # reshape only; the kernel's stores stay lane-dense).
    out = jnp.pad(out_flat[:, 0, :], ((0, 0), (pad, pad))).reshape(N, R, S)
    return out[:, 1:H2 + 1, 1:W2 + 1][:, None, :, :]             # NCHW


# ----------------------------------------------------------------------------
# Deterministic parameter init (PyTorch shapes) converted to HWIO layouts.
# ----------------------------------------------------------------------------
def init_params(key):
    c_hid = 32
    ks = jax.random.split(key, 6)
    # PyTorch-native layouts:
    wt_iohw = jax.random.normal(ks[0], (1, c_hid, 3, 3), jnp.float32) * 0.20  # ConvTranspose2d
    bt = jax.random.normal(ks[1], (c_hid,), jnp.float32) * 0.05
    w2_oihw = jax.random.normal(ks[2], (c_hid, c_hid, 3, 3), jnp.float32) * 0.06
    b2 = jax.random.normal(ks[3], (c_hid,), jnp.float32) * 0.05
    w3_oihw = jax.random.normal(ks[4], (1, c_hid, 3, 3), jnp.float32) * 0.06
    b3 = jax.random.normal(ks[5], (1,), jnp.float32) * 0.05

    # Equivalent-regular-conv weight for the transposed conv: HWIO + spatial flip.
    wt_eq = jnp.transpose(wt_iohw, (2, 3, 0, 1))[::-1, ::-1, :, :]   # (3,3,1,32)
    # Regular convs: OIHW -> HWIO.
    w2 = jnp.transpose(w2_oihw, (2, 3, 1, 0))                        # (3,3,32,32)
    w3 = jnp.transpose(w3_oihw, (2, 3, 1, 0))                        # (3,3,32,1)
    return (wt_eq, bt, w2, b2, w3, b3)


# Pure-JAX f32 reference (lax convs) for the correctness check.
def ref_forward(z_nchw, params):
    wt_eq, bt, w2, b2, w3, b3 = params
    z = jnp.transpose(z_nchw, (0, 2, 3, 1))
    dn = ("NHWC", "HWIO", "NHWC")
    y = lax.conv_general_dilated(z, wt_eq, (1, 1), [(1, 2), (1, 2)],
                                 lhs_dilation=(2, 2), dimension_numbers=dn) + bt
    y = jnp.maximum(y, 0.0)
    y = lax.conv_general_dilated(y, w2, (1, 1), [(1, 1), (1, 1)],
                                 dimension_numbers=dn) + b2
    y = jnp.maximum(y, 0.0)
    y = lax.conv_general_dilated(y, w3, (1, 1), [(1, 1), (1, 1)],
                                 dimension_numbers=dn) + b3
    return jnp.transpose(y, (0, 3, 1, 2))


if __name__ == "__main__":
    # deepmdp=False in the default constructor: only the `mlp` Sequential runs.
    key = jax.random.PRNGKey(0)
    k_in, k_par = jax.random.split(key)

    N, C, H, W = 2, 1, 16, 16
    z = jax.random.normal(k_in, (N, C, H, W), jnp.float32)
    params = init_params(k_par)

    out = jax.block_until_ready(mlp_policy_forward(z, params))
    assert out.shape == (N, 1, 2 * H, 2 * W), out.shape

    ref = jax.block_until_ready(ref_forward(z, params))
    # Layers 2/3 use bf16 MXU operands (f32 accumulation), so compare against
    # the all-f32 lax reference with a correspondingly loose tolerance.
    max_err = float(jnp.max(jnp.abs(out - ref)))
    assert jnp.allclose(out, ref, atol=5e-2, rtol=5e-2), max_err

    print("KERNEL_OK")
</pallas_src>

<mosaic_0001>
module attributes {stable_mosaic.version = 11 : i64} {
  func.func @_mlp_policy_kernel(%arg0: i32, %arg1: memref<1x1x1156xf32, #tpu.memory_space<vmem>>, %arg2: memref<1x1086xf32, #tpu.memory_space<vmem>>, %arg3: memref<32x16xf32, #tpu.memory_space<vmem>>, %arg4: memref<32x1xf32, #tpu.memory_space<vmem>>, %arg5: memref<32x288xbf16, #tpu.memory_space<vmem>>, %arg6: memref<32x1xf32, #tpu.memory_space<vmem>>, %arg7: memref<8x288xbf16, #tpu.memory_space<vmem>>, %arg8: memref<1x1xf32, #tpu.memory_space<vmem>>, %arg9: memref<1x1x1086xf32, #tpu.memory_space<vmem>>) attributes {dimension_semantics = [#tpu.dimension_semantics<parallel>], iteration_bounds = array<i64: 2>, scalar_prefetch = 0 : i64, scratch_operands = 0 : i64, tpu.core_type = #tpu.core_type<tc>, window_params = [{transform_indices = @transform_0, window_bounds = array<i64: 1, 1, 1156>}, {pipeline_mode = #tpu.pipeline_mode<synchronous>, transform_indices = @transform_1, window_bounds = array<i64: 1, 1086>}, {pipeline_mode = #tpu.pipeline_mode<synchronous>, transform_indices = @transform_2, window_bounds = array<i64: 32, 16>}, {pipeline_mode = #tpu.pipeline_mode<synchronous>, transform_indices = @transform_3, window_bounds = array<i64: 32, 1>}, {pipeline_mode = #tpu.pipeline_mode<synchronous>, transform_indices = @transform_4, window_bounds = array<i64: 32, 288>}, {pipeline_mode = #tpu.pipeline_mode<synchronous>, transform_indices = @transform_5, window_bounds = array<i64: 32, 1>}, {pipeline_mode = #tpu.pipeline_mode<synchronous>, transform_indices = @transform_6, window_bounds = array<i64: 8, 288>}, {pipeline_mode = #tpu.pipeline_mode<synchronous>, transform_indices = @transform_7, window_bounds = array<i64: 1, 1>}, {transform_indices = @transform_8, window_bounds = array<i64: 1, 1, 1086>}]} {
    %c0 = arith.constant 0 : index
    %c0_0 = arith.constant 0 : index
    %0 = vector.load %arg2[%c0, %c0_0] : memref<1x1086xf32, #tpu.memory_space<vmem>>, vector<1x1086xf32>
    %c0_1 = arith.constant 0 : index
    %c0_2 = arith.constant 0 : index
    %c0_3 = arith.constant 0 : index
    %1 = vector.load %arg1[%c0_1, %c0_2, %c0_3] : memref<1x1x1156xf32, #tpu.memory_space<vmem>>, vector<1x1x1156xf32>
    %2 = vector.shape_cast %1 : vector<1x1x1156xf32> to vector<1x1156xf32>
    %3 = vector.extract_strided_slice %2 {offsets = [0, 0], sizes = [1, 1086], strides = [1, 1]} : vector<1x1156xf32> to vector<1x1086xf32>
    %4 = vector.extract_strided_slice %2 {offsets = [0, 1], sizes = [1, 1086], strides = [1, 1]} : vector<1x1156xf32> to vector<1x1086xf32>
    %5 = vector.extract_strided_slice %2 {offsets = [0, 2], sizes = [1, 1086], strides = [1, 1]} : vector<1x1156xf32> to vector<1x1086xf32>
    %6 = vector.extract_strided_slice %2 {offsets = [0, 34], sizes = [1, 1086], strides = [1, 1]} : vector<1x1156xf32> to vector<1x1086xf32>
    %7 = vector.extract_strided_slice %2 {offsets = [0, 35], sizes = [1, 1086], strides = [1, 1]} : vector<1x1156xf32> to vector<1x1086xf32>
    %8 = vector.extract_strided_slice %2 {offsets = [0, 36], sizes = [1, 1086], strides = [1, 1]} : vector<1x1156xf32> to vector<1x1086xf32>
    %9 = vector.extract_strided_slice %2 {offsets = [0, 68], sizes = [1, 1086], strides = [1, 1]} : vector<1x1156xf32> to vector<1x1086xf32>
    %10 = vector.extract_strided_slice %2 {offsets = [0, 69], sizes = [1, 1086], strides = [1, 1]} : vector<1x1156xf32> to vector<1x1086xf32>
    %11 = vector.extract_strided_slice %2 {offsets = [0, 70], sizes = [1, 1086], strides = [1, 1]} : vector<1x1156xf32> to vector<1x1086xf32>
    %cst = arith.constant 0.000000e+00 : f32
    %12 = vector.broadcast %cst : f32 to vector<7x1086xf32>
    %13 = tpu.concatenate %3, %4, %5, %6, %7, %8, %9, %10, %11, %12 in 0 : vector<1x1086xf32>, vector<1x1086xf32>, vector<1x1086xf32>, vector<1x1086xf32>, vector<1x1086xf32>, vector<1x1086xf32>, vector<1x1086xf32>, vector<1x1086xf32>, vector<1x1086xf32>, vector<7x1086xf32> -> vector<16x1086xf32>
    %c0_4 = arith.constant 0 : index
    %c0_5 = arith.constant 0 : index
    %14 = vector.load %arg3[%c0_4, %c0_5] : memref<32x16xf32, #tpu.memory_space<vmem>>, vector<32x16xf32>
    %cst_6 = arith.constant dense<0.000000e+00> : vector<32x1086xf32>
    %15 = tpu.matmul %14, %13, %cst_6 {dimension_numbers = #tpu.dot_dimension_numbers<[1], [0], [0], [1], [0, 0, 1, 1], [], []>} : vector<32x16xf32>, vector<16x1086xf32>, vector<32x1086xf32> -> vector<32x1086xf32>
    %c0_7 = arith.constant 0 : index
    %c0_8 = arith.constant 0 : index
    %16 = vector.load %arg4[%c0_7, %c0_8] : memref<32x1xf32, #tpu.memory_space<vmem>>, vector<32x1xf32>
    %17 = vector.broadcast %16 : vector<32x1xf32> to vector<32x1086xf32>
    %18 = arith.addf %15, %17 : vector<32x1086xf32>
    %cst_9 = arith.constant 0.000000e+00 : f32
    %19 = vector.broadcast %cst_9 : f32 to vector<32x1086xf32>
    %20 = arith.maximumf %18, %19 : vector<32x1086xf32>
    %21 = vector.broadcast %0 : vector<1x1086xf32> to vector<32x1086xf32>
    %22 = arith.mulf %20, %21 : vector<32x1086xf32>
    %cst_10 = arith.constant 0.000000e+00 : f32
    %23 = vector.broadcast %cst_10 : f32 to vector<32x35xf32>
    %24 = tpu.concatenate %23, %22, %23 in 1 : vector<32x35xf32>, vector<32x1086xf32>, vector<32x35xf32> -> vector<32x1156xf32>
    %25 = arith.truncf %24 : vector<32x1156xf32> to vector<32x1156xbf16>
    %26 = vector.extract_strided_slice %25 {offsets = [0, 0], sizes = [32, 1086], strides = [1, 1]} : vector<32x1156xbf16> to vector<32x1086xbf16>
    %27 = vector.extract_strided_slice %25 {offsets = [0, 1], sizes = [32, 1086], strides = [1, 1]} : vector<32x1156xbf16> to vector<32x1086xbf16>
    %28 = vector.extract_strided_slice %25 {offsets = [0, 2], sizes = [32, 1086], strides = [1, 1]} : vector<32x1156xbf16> to vector<32x1086xbf16>
    %29 = vector.extract_strided_slice %25 {offsets = [0, 34], sizes = [32, 1086], strides = [1, 1]} : vector<32x1156xbf16> to vector<32x1086xbf16>
    %30 = vector.extract_strided_slice %25 {offsets = [0, 35], sizes = [32, 1086], strides = [1, 1]} : vector<32x1156xbf16> to vector<32x1086xbf16>
    %31 = vector.extract_strided_slice %25 {offsets = [0, 36], sizes = [32, 1086], strides = [1, 1]} : vector<32x1156xbf16> to vector<32x1086xbf16>
    %32 = vector.extract_strided_slice %25 {offsets = [0, 68], sizes = [32, 1086], strides = [1, 1]} : vector<32x1156xbf16> to vector<32x1086xbf16>
    %33 = vector.extract_strided_slice %25 {offsets = [0, 69], sizes = [32, 1086], strides = [1, 1]} : vector<32x1156xbf16> to vector<32x1086xbf16>
    %34 = vector.extract_strided_slice %25 {offsets = [0, 70], sizes = [32, 1086], strides = [1, 1]} : vector<32x1156xbf16> to vector<32x1086xbf16>
    %35 = tpu.concatenate %26, %27, %28, %29, %30, %31, %32, %33, %34 in 0 : vector<32x1086xbf16>, vector<32x1086xbf16>, vector<32x1086xbf16>, vector<32x1086xbf16>, vector<32x1086xbf16>, vector<32x1086xbf16>, vector<32x1086xbf16>, vector<32x1086xbf16>, vector<32x1086xbf16> -> vector<288x1086xbf16>
    %c0_11 = arith.constant 0 : index
    %c0_12 = arith.constant 0 : index
    %36 = vector.load %arg5[%c0_11, %c0_12] : memref<32x288xbf16, #tpu.memory_space<vmem>>, vector<32x288xbf16>
    %cst_13 = arith.constant dense<0.000000e+00> : vector<32x1086xf32>
    %37 = tpu.matmul %36, %35, %cst_13 {dimension_numbers = #tpu.dot_dimension_numbers<[1], [0], [0], [1], [0, 0, 1, 1], [], []>} : vector<32x288xbf16>, vector<288x1086xbf16>, vector<32x1086xf32> -> vector<32x1086xf32>
    %c0_14 = arith.constant 0 : index
    %c0_15 = arith.constant 0 : index
    %38 = vector.load %arg6[%c0_14, %c0_15] : memref<32x1xf32, #tpu.memory_space<vmem>>, vector<32x1xf32>
    %39 = vector.broadcast %38 : vector<32x1xf32> to vector<32x1086xf32>
    %40 = arith.addf %37, %39 : vector<32x1086xf32>
    %cst_16 = arith.constant 0.000000e+00 : f32
    %41 = vector.broadcast %cst_16 : f32 to vector<32x1086xf32>
    %42 = arith.maximumf %40, %41 : vector<32x1086xf32>
    %43 = vector.broadcast %0 : vector<1x1086xf32> to vector<32x1086xf32>
    %44 = arith.mulf %42, %43 : vector<32x1086xf32>
    %45 = tpu.concatenate %23, %44, %23 in 1 : vector<32x35xf32>, vector<32x1086xf32>, vector<32x35xf32> -> vector<32x1156xf32>
    %46 = arith.truncf %45 : vector<32x1156xf32> to vector<32x1156xbf16>
    %47 = vector.extract_strided_slice %46 {offsets = [0, 0], sizes = [32, 1086], strides = [1, 1]} : vector<32x1156xbf16> to vector<32x1086xbf16>
    %48 = vector.extract_strided_slice %46 {offsets = [0, 1], sizes = [32, 1086], strides = [1, 1]} : vector<32x1156xbf16> to vector<32x1086xbf16>
    %49 = vector.extract_strided_slice %46 {offsets = [0, 2], sizes = [32, 1086], strides = [1, 1]} : vector<32x1156xbf16> to vector<32x1086xbf16>
    %50 = vector.extract_strided_slice %46 {offsets = [0, 34], sizes = [32, 1086], strides = [1, 1]} : vector<32x1156xbf16> to vector<32x1086xbf16>
    %51 = vector.extract_strided_slice %46 {offsets = [0, 35], sizes = [32, 1086], strides = [1, 1]} : vector<32x1156xbf16> to vector<32x1086xbf16>
    %52 = vector.extract_strided_slice %46 {offsets = [0, 36], sizes = [32, 1086], strides = [1, 1]} : vector<32x1156xbf16> to vector<32x1086xbf16>
    %53 = vector.extract_strided_slice %46 {offsets = [0, 68], sizes = [32, 1086], strides = [1, 1]} : vector<32x1156xbf16> to vector<32x1086xbf16>
    %54 = vector.extract_strided_slice %46 {offsets = [0, 69], sizes = [32, 1086], strides = [1, 1]} : vector<32x1156xbf16> to vector<32x1086xbf16>
    %55 = vector.extract_strided_slice %46 {offsets = [0, 70], sizes = [32, 1086], strides = [1, 1]} : vector<32x1156xbf16> to vector<32x1086xbf16>
    %56 = tpu.concatenate %47, %48, %49, %50, %51, %52, %53, %54, %55 in 0 : vector<32x1086xbf16>, vector<32x1086xbf16>, vector<32x1086xbf16>, vector<32x1086xbf16>, vector<32x1086xbf16>, vector<32x1086xbf16>, vector<32x1086xbf16>, vector<32x1086xbf16>, vector<32x1086xbf16> -> vector<288x1086xbf16>
    %c0_17 = arith.constant 0 : index
    %c0_18 = arith.constant 0 : index
    %57 = vector.load %arg7[%c0_17, %c0_18] : memref<8x288xbf16, #tpu.memory_space<vmem>>, vector<8x288xbf16>
    %cst_19 = arith.constant dense<0.000000e+00> : vector<8x1086xf32>
    %58 = tpu.matmul %57, %56, %cst_19 {dimension_numbers = #tpu.dot_dimension_numbers<[1], [0], [0], [1], [0, 0, 1, 1], [], []>} : vector<8x288xbf16>, vector<288x1086xbf16>, vector<8x1086xf32> -> vector<8x1086xf32>
    %59 = vector.extract_strided_slice %58 {offsets = [0, 0], sizes = [1, 1086], strides = [1, 1]} : vector<8x1086xf32> to vector<1x1086xf32>
    %c0_20 = arith.constant 0 : index
    %c0_21 = arith.constant 0 : index
    %60 = vector.load %arg8[%c0_20, %c0_21] : memref<1x1xf32, #tpu.memory_space<vmem>>, vector<1x1xf32>
    %61 = vector.broadcast %60 : vector<1x1xf32> to vector<1x1086xf32>
    %62 = arith.addf %59, %61 : vector<1x1086xf32>
    %c0_22 = arith.constant 0 : index
    %c0_23 = arith.constant 0 : index
    %c0_24 = arith.constant 0 : index
    %63 = vector.load %arg9[%c0_22, %c0_23, %c0_24] : memref<1x1x1086xf32, #tpu.memory_space<vmem>>, vector<1x1x1086xf32>
    %64 = vector.shape_cast %63 : vector<1x1x1086xf32> to vector<1x1086xf32>
    %65 = vector.shape_cast %62 : vector<1x1086xf32> to vector<1x1x1086xf32>
    tpu.vector_store %arg9[%c0_22, %c0_23, %c0_24], %65 {strides = array<i32>} : memref<1x1x1086xf32, #tpu.memory_space<vmem>>, vector<1x1x1086xf32>,
    return
  }
  func.func @transform_0(%arg0: i32) -> (i32, i32, i32) {
    %c0_i32 = arith.constant 0 : i32
    %c0_i32_0 = arith.constant 0 : i32
    %c0_i32_1 = arith.constant 0 : i32
    return %arg0, %c0_i32, %c0_i32_0 : i32, i32, i32
  }
  func.func @transform_1(%arg0: i32) -> (i32, i32) {
    %c0_i32 = arith.constant 0 : i32
    %c0_i32_0 = arith.constant 0 : i32
    %c0_i32_1 = arith.constant 0 : i32
    return %c0_i32, %c0_i32_0 : i32, i32
  }
  func.func @transform_2(%arg0: i32) -> (i32, i32) {
    %c0_i32 = arith.constant 0 : i32
    %c0_i32_0 = arith.constant 0 : i32
    %c0_i32_1 = arith.constant 0 : i32
    return %c0_i32, %c0_i32_0 : i32, i32
  }
  func.func @transform_3(%arg0: i32) -> (i32, i32) {
    %c0_i32 = arith.constant 0 : i32
    %c0_i32_0 = arith.constant 0 : i32
    %c0_i32_1 = arith.constant 0 : i32
    return %c0_i32, %c0_i32_0 : i32, i32
  }
  func.func @transform_4(%arg0: i32) -> (i32, i32) {
    %c0_i32 = arith.constant 0 : i32
    %c0_i32_0 = arith.constant 0 : i32
    %c0_i32_1 = arith.constant 0 : i32
    return %c0_i32, %c0_i32_0 : i32, i32
  }
  func.func @transform_5(%arg0: i32) -> (i32, i32) {
    %c0_i32 = arith.constant 0 : i32
    %c0_i32_0 = arith.constant 0 : i32
    %c0_i32_1 = arith.constant 0 : i32
    return %c0_i32, %c0_i32_0 : i32, i32
  }
  func.func @transform_6(%arg0: i32) -> (i32, i32) {
    %c0_i32 = arith.constant 0 : i32
    %c0_i32_0 = arith.constant 0 : i32
    %c0_i32_1 = arith.constant 0 : i32
    return %c0_i32, %c0_i32_0 : i32, i32
  }
  func.func @transform_7(%arg0: i32) -> (i32, i32) {
    %c0_i32 = arith.constant 0 : i32
    %c0_i32_0 = arith.constant 0 : i32
    %c0_i32_1 = arith.constant 0 : i32
    return %c0_i32, %c0_i32_0 : i32, i32
  }
  func.func @transform_8(%arg0: i32) -> (i32, i32, i32) {
    %c0_i32 = arith.constant 0 : i32
    %c0_i32_0 = arith.constant 0 : i32
    %c0_i32_1 = arith.constant 0 : i32
    return %arg0, %c0_i32, %c0_i32_0 : i32, i32, i32
  }
}

</mosaic_0001>

<llo_original>
// kernel: mlp_policy_forward.1
$region0: #{mlp_policy_forward.1}
  #allocation0 [shape = 'u32[]', space=smem, size = 0x4, offset = 0x4, fixed_abs, tag = 'smem constant byte address 0x4 - core index']
  #allocation1 [shape = 'u32[72,128]{1,0:T(1,128)}', space=vmem, size = 0x9000, scoped, tag = 'internal scratch']
  #allocation2 [shape = 'f32[1,1]{1,0:T(1,128)S(1)}', space=vmem, size = 0x200, scoped, tag = 'scoped memory for mlp_policy_forward.1']
  %s0 = inlined_call_operand.vmem [shape: f32[2,1,1156], index: 0, kind: input, shape index: {}]
  %s1 = inlined_call_operand.vmem [shape: f32[1,1086], index: 1, kind: input, shape index: {}]
  %s2 = inlined_call_operand.vmem [shape: f32[32,16], index: 2, kind: input, shape index: {}]
  %s3 = inlined_call_operand.vmem [shape: f32[32,1], index: 3, kind: input, shape index: {}]
  %s4 = inlined_call_operand.vmem [shape: bf16[32,288], index: 4, kind: input, shape index: {}]
  %s5 = inlined_call_operand.vmem [shape: f32[32,1], index: 5, kind: input, shape index: {}]
  %s6 = inlined_call_operand.vmem [shape: bf16[8,288], index: 6, kind: input, shape index: {}]
  %s7 = inlined_call_operand.<no memory space> [shape: f32[1,1], index: 7, kind: input, shape index: {}]
  %s8 = inlined_call_operand.vmem [shape: f32[2,1,1086], index: 8, kind: output, shape index: {}]
  %s9 = sld [smem:[#allocation0]]
  $region65: #{mlp_policy_forward.1} parent=0
    _
  %s11 = ssub.s32 1, %s9
  %s12 = scalar_select 0, %s11, %s9
  %v13 = vstv %s7
  %14 = vst [vmem:[#allocation2] sm:$0x1] %v13
  loop: start=0, step=1, limit=4
  $region2: #{mlp_policy_forward.1} parent=0 // loop_pre_header
    _
  $region3: #{mlp_policy_forward.1} parent=0 // loop_header
    %s16 = sphi 0, %s20
    %p17 = scmp.ge.s32.totalorder %s16, 4
    %s26 = sphi 0, %s28
    %s29 = sphi 0, %s26
    %s30 = sphi 0, %s29
    %s46 = sphi 0, %s30
    %s50 = sphi 0, %s50
    %s52 = sphi 0, %s50
    %s53 = sphi 0, %s52
    %s67 = sphi 0, %s53
    %s71 = sphi 0, %s71
    %s73 = sphi 0, %s71
    %s74 = sphi 0, %s73
    %s88 = sphi 0, %s74
    %s92 = sphi 0, %s92
    %s94 = sphi 0, %s92
    %s95 = sphi 0, %s94
    %s109 = sphi 0, %s95
    %s113 = sphi 0, %s113
    %s115 = sphi 0, %s113
    %s116 = sphi 0, %s115
    %s130 = sphi 0, %s116
    %s134 = sphi 0, %s134
    %s136 = sphi 0, %s134
    %s137 = sphi 0, %s136
    %s151 = sphi 0, %s137
    %s155 = sphi 0, %s155
    %s157 = sphi 0, %s155
    %s158 = sphi 0, %s157
    %s172 = sphi 0, %s158
    %s176 = sphi 0, %s176
    %s178 = sphi 0, %s176
    %s179 = sphi 0, %s178
    %s193 = sphi 0, %s179
    %s199 = sphi 0, %s201
    %s202 = sphi 0, %s199
    %s203 = sphi 0, %s202
    %s219 = sphi 0, %s203
  $region4: #{mlp_policy_forward.1} parent=0 // loop_header_branch
    %19 = sbr.rel (%p17) target = $region8
  $region5: #{mlp_policy_forward.1} parent=0 // loop_body
    %s21 = ssub.s32 %s16, 1
    %s22 = ssub.s32 %s16, 2
    %s23 = sadd.s32 %s16, 1
    %s24 = ssub.s32 %s16, %s23
    %p25 = scmp.eq.s32.totalorder %s24, 0
    %s27 = sadd.s32 %s26, 1
    %s28 = scalar_select %p25, %s26, %s27
    %p31 = pneg %p25
    %p32 = scmp.eq.s32.totalorder %s16, 1
    %p33 = por %p31, %p32
    %p34 = scmp.ne.s32.totalorder %s26, %s29
    %p35 = scmp.eq.s32.totalorder %s16, 0
    %p36 = por %p34, %p35
    %p37 = scmp.ne.s32.totalorder %s26, %s29
    %p38 = scmp.eq.s32.totalorder %s21, 1
    %p39 = por %p37, %p38
    %p40 = scmp.ne.s32.totalorder %s29, %s30
    %p41 = scmp.eq.s32.totalorder %s21, 0
    %p42 = por %p40, %p41
    %p43 = scmp.ne.s32.totalorder %s29, %s30
    %p44 = scmp.eq.s32.totalorder %s22, 1
    %p45 = por %p43, %p44
    %p47 = scmp.ne.s32.totalorder %s30, %s46
    %p48 = scmp.eq.s32.totalorder %s22, 0
    %p49 = por %p47, %p48
    %s51 = sadd.s32 %s50, 1
    %p54 = scmp.eq.s32.totalorder %s16, 1
    %p55 = scmp.ne.s32.totalorder %s50, %s52
    %p56 = scmp.eq.s32.totalorder %s16, 0
    %p57 = por %p55, %p56
    %p58 = scmp.ne.s32.totalorder %s50, %s52
    %p59 = scmp.eq.s32.totalorder %s21, 1
    %p60 = por %p58, %p59
    %p61 = scmp.ne.s32.totalorder %s52, %s53
    %p62 = scmp.eq.s32.totalorder %s21, 0
    %p63 = por %p61, %p62
    %p64 = scmp.ne.s32.totalorder %s52, %s53
    %p65 = scmp.eq.s32.totalorder %s22, 1
    %p66 = por %p64, %p65
    %p68 = scmp.ne.s32.totalorder %s53, %s67
    %p69 = scmp.eq.s32.totalorder %s22, 0
    %p70 = por %p68, %p69
    %s72 = sadd.s32 %s71, 1
    %p75 = scmp.eq.s32.totalorder %s16, 1
    %p76 = scmp.ne.s32.totalorder %s71, %s73
    %p77 = scmp.eq.s32.totalorder %s16, 0
    %p78 = por %p76, %p77
    %p79 = scmp.ne.s32.totalorder %s71, %s73
    %p80 = scmp.eq.s32.totalorder %s21, 1
    %p81 = por %p79, %p80
    %p82 = scmp.ne.s32.totalorder %s73, %s74
    %p83 = scmp.eq.s32.totalorder %s21, 0
    %p84 = por %p82, %p83
    %p85 = scmp.ne.s32.totalorder %s73, %s74
    %p86 = scmp.eq.s32.totalorder %s22, 1
    %p87 = por %p85, %p86
    %p89 = scmp.ne.s32.totalorder %s74, %s88
    %p90 = scmp.eq.s32.totalorder %s22, 0
    %p91 = por %p89, %p90
    %s93 = sadd.s32 %s92, 1
    %p96 = scmp.eq.s32.totalorder %s16, 1
    %p97 = scmp.ne.s32.totalorder %s92, %s94
    %p98 = scmp.eq.s32.totalorder %s16, 0
    %p99 = por %p97, %p98
    %p100 = scmp.ne.s32.totalorder %s92, %s94
    %p101 = scmp.eq.s32.totalorder %s21, 1
    %p102 = por %p100, %p101
    %p103 = scmp.ne.s32.totalorder %s94, %s95
    %p104 = scmp.eq.s32.totalorder %s21, 0
    %p105 = por %p103, %p104
    %p106 = scmp.ne.s32.totalorder %s94, %s95
    %p107 = scmp.eq.s32.totalorder %s22, 1
    %p108 = por %p106, %p107
    %p110 = scmp.ne.s32.totalorder %s95, %s109
    %p111 = scmp.eq.s32.totalorder %s22, 0
    %p112 = por %p110, %p111
    %s114 = sadd.s32 %s113, 1
    %p117 = scmp.eq.s32.totalorder %s16, 1
    %p118 = scmp.ne.s32.totalorder %s113, %s115
    %p119 = scmp.eq.s32.totalorder %s16, 0
    %p120 = por %p118, %p119
    %p121 = scmp.ne.s32.totalorder %s113, %s115
    %p122 = scmp.eq.s32.totalorder %s21, 1
    %p123 = por %p121, %p122
    %p124 = scmp.ne.s32.totalorder %s115, %s116
    %p125 = scmp.eq.s32.totalorder %s21, 0
    %p126 = por %p124, %p125
    %p127 = scmp.ne.s32.totalorder %s115, %s116
    %p128 = scmp.eq.s32.totalorder %s22, 1
    %p129 = por %p127, %p128
    %p131 = scmp.ne.s32.totalorder %s116, %s130
    %p132 = scmp.eq.s32.totalorder %s22, 0
    %p133 = por %p131, %p132
    %s135 = sadd.s32 %s134, 1
    %p138 = scmp.eq.s32.totalorder %s16, 1
    %p139 = scmp.ne.s32.totalorder %s134, %s136
    %p140 = scmp.eq.s32.totalorder %s16, 0
    %p141 = por %p139, %p140
    %p142 = scmp.ne.s32.totalorder %s134, %s136
    %p143 = scmp.eq.s32.totalorder %s21, 1
    %p144 = por %p142, %p143
    %p145 = scmp.ne.s32.totalorder %s136, %s137
    %p146 = scmp.eq.s32.totalorder %s21, 0
    %p147 = por %p145, %p146
    %p148 = scmp.ne.s32.totalorder %s136, %s137
    %p149 = scmp.eq.s32.totalorder %s22, 1
    %p150 = por %p148, %p149
    %p152 = scmp.ne.s32.totalorder %s137, %s151
    %p153 = scmp.eq.s32.totalorder %s22, 0
    %p154 = por %p152, %p153
    %s156 = sadd.s32 %s155, 1
    %p159 = scmp.eq.s32.totalorder %s16, 1
    %p160 = scmp.ne.s32.totalorder %s155, %s157
    %p161 = scmp.eq.s32.totalorder %s16, 0
    %p162 = por %p160, %p161
    %p163 = scmp.ne.s32.totalorder %s155, %s157
    %p164 = scmp.eq.s32.totalorder %s21, 1
    %p165 = por %p163, %p164
    %p166 = scmp.ne.s32.totalorder %s157, %s158
    %p167 = scmp.eq.s32.totalorder %s21, 0
    %p168 = por %p166, %p167
    %p169 = scmp.ne.s32.totalorder %s157, %s158
    %p170 = scmp.eq.s32.totalorder %s22, 1
    %p171 = por %p169, %p170
    %p173 = scmp.ne.s32.totalorder %s158, %s172
    %p174 = scmp.eq.s32.totalorder %s22, 0
    %p175 = por %p173, %p174
    %s177 = sadd.s32 %s176, 1
    %p180 = scmp.eq.s32.totalorder %s16, 1
    %p181 = scmp.ne.s32.totalorder %s176, %s178
    %p182 = scmp.eq.s32.totalorder %s16, 0
    %p183 = por %p181, %p182
    %p184 = scmp.ne.s32.totalorder %s176, %s178
    %p185 = scmp.eq.s32.totalorder %s21, 1
    %p186 = por %p184, %p185
    %p187 = scmp.ne.s32.totalorder %s178, %s179
    %p188 = scmp.eq.s32.totalorder %s21, 0
    %p189 = por %p187, %p188
    %p190 = scmp.ne.s32.totalorder %s178, %s179
    %p191 = scmp.eq.s32.totalorder %s22, 1
    %p192 = por %p190, %p191
    %p194 = scmp.ne.s32.totalorder %s179, %s193
    %p195 = scmp.eq.s32.totalorder %s22, 0
    %p196 = por %p194, %p195
    %s197 = ssub.s32 %s16, %s23
    %p198 = scmp.eq.s32.totalorder %s197, 0
    %s200 = sadd.s32 %s199, 1
    %s201 = scalar_select %p198, %s199, %s200
    %p204 = pneg %p198
    %p205 = scmp.eq.s32.totalorder %s16, 1
    %p206 = por %p204, %p205
    %p207 = scmp.ne.s32.totalorder %s199, %s202
    %p208 = scmp.eq.s32.totalorder %s16, 0
    %p209 = por %p207, %p208
    %p210 = scmp.ne.s32.totalorder %s199, %s202
    %p211 = scmp.eq.s32.totalorder %s21, 1
    %p212 = por %p210, %p211
    %p213 = scmp.ne.s32.totalorder %s202, %s203
    %p214 = scmp.eq.s32.totalorder %s21, 0
    %p215 = por %p213, %p214
    %p216 = scmp.ne.s32.totalorder %s202, %s203
    %p217 = scmp.eq.s32.totalorder %s22, 1
    %p218 = por %p216, %p217
    %p220 = scmp.ne.s32.totalorder %s203, %s219
    %p221 = scmp.eq.s32.totalorder %s22, 0
    %p222 = por %p220, %p221
    %p223 = scmp.le.s32.totalorder 1, %s16
    %p224 = scmp.lt.s32.totalorder %s16, 3
    %p225 = pnand %p223, %p224
    %p226 = pneg %p225
    // Predicated region
    $region9: #{mlp_policy_forward.1} parent=5 // pred_check
      _
    $region10: #{mlp_policy_forward.1} parent=5 // pred_check_branch
      %228 = sbr.rel (%p225) target = $region12
    $region11: #{mlp_policy_forward.1} parent=5 // pred_region
      %s229 = ssub.s32 %s16, 1
      // Predicated region
      $region13: #{mlp_policy_forward.1} parent=11 // pred_check
        %p230 = pneg %p63
      $region14: #{mlp_policy_forward.1} parent=11 // pred_check_branch
        %232 = sbr.rel (%p230) target = $region16
      $region15: #{mlp_policy_forward.1} parent=11 // pred_region
        _
      $region16: #{mlp_policy_forward.1} parent=11 // pred_fallthru
        _
      // Predicated region
      $region17: #{mlp_policy_forward.1} parent=11 // pred_check
        %p233 = pneg %p84
      $region18: #{mlp_policy_forward.1} parent=11 // pred_check_branch
        %235 = sbr.rel (%p233) target = $region20
      $region19: #{mlp_policy_forward.1} parent=11 // pred_region
        _
      $region20: #{mlp_policy_forward.1} parent=11 // pred_fallthru
        _
      // Predicated region
      $region21: #{mlp_policy_forward.1} parent=11 // pred_check
        %p236 = pneg %p105
      $region22: #{mlp_policy_forward.1} parent=11 // pred_check_branch
        %238 = sbr.rel (%p236) target = $region24
      $region23: #{mlp_policy_forward.1} parent=11 // pred_region
        _
      $region24: #{mlp_policy_forward.1} parent=11 // pred_fallthru
        _
      // Predicated region
      $region25: #{mlp_policy_forward.1} parent=11 // pred_check
        %p239 = pneg %p126
      $region26: #{mlp_policy_forward.1} parent=11 // pred_check_branch
        %241 = sbr.rel (%p239) target = $region28
      $region27: #{mlp_policy_forward.1} parent=11 // pred_region
        _
      $region28: #{mlp_policy_forward.1} parent=11 // pred_fallthru
        _
      // Predicated region
      $region29: #{mlp_policy_forward.1} parent=11 // pred_check
        %p242 = pneg %p147
      $region30: #{mlp_policy_forward.1} parent=11 // pred_check_branch
        %244 = sbr.rel (%p242) target = $region32
      $region31: #{mlp_policy_forward.1} parent=11 // pred_region
        _
      $region32: #{mlp_policy_forward.1} parent=11 // pred_fallthru
        _
      // Predicated region
      $region33: #{mlp_policy_forward.1} parent=11 // pred_check
        %p245 = pneg %p168
      $region34: #{mlp_policy_forward.1} parent=11 // pred_check_branch
        %247 = sbr.rel (%p245) target = $region36
      $region35: #{mlp_policy_forward.1} parent=11 // pred_region
        _
      $region36: #{mlp_policy_forward.1} parent=11 // pred_fallthru
        _
      // Predicated region
      $region37: #{mlp_policy_forward.1} parent=11 // pred_check
        %p248 = pneg %p189
      $region38: #{mlp_policy_forward.1} parent=11 // pred_check_branch
        %250 = sbr.rel (%p248) target = $region40
      $region39: #{mlp_policy_forward.1} parent=11 // pred_region
        _
      $region40: #{mlp_policy_forward.1} parent=11 // pred_fallthru
        _
    $region12: #{mlp_policy_forward.1} parent=5 // pred_fallthru
      _
    %p251 = scmp.lt.s32.totalorder %s16, 2
    // Predicated region
    $region41: #{mlp_policy_forward.1} parent=5 // pred_check
      %p252 = pneg %p251
    $region42: #{mlp_policy_forward.1} parent=5 // pred_check_branch
      %254 = sbr.rel (%p252) target = $region44
    $region43: #{mlp_policy_forward.1} parent=5 // pred_region
      // Predicated region
      $region45: #{mlp_policy_forward.1} parent=43 // pred_check
        %p255 = pneg %p36
      $region46: #{mlp_policy_forward.1} parent=43 // pred_check_branch
        %257 = sbr.rel (%p255) target = $region48
      $region47: #{mlp_policy_forward.1} parent=43 // pred_region
        %p258 = scmp.lt.s32.totalorder %s16, 1
        %s259 = scalar_select %p258, %s16, 1
        %s260 = smul.addr %s259, 10
        %s261 = scalar_lea.vmem %s0, %s260
      $region48: #{mlp_policy_forward.1} parent=43 // pred_fallthru
        _
    $region44: #{mlp_policy_forward.1} parent=5 // pred_fallthru
      _
    %p262 = scmp.le.s32.totalorder 1, %s16
    %p263 = scmp.lt.s32.totalorder %s16, 3
    %p264 = pnand %p262, %p263
    %p265 = pneg %p264
    // Predicated region
    $region49: #{mlp_policy_forward.1} parent=5 // pred_check
      _
    $region50: #{mlp_policy_forward.1} parent=5 // pred_check_branch
      %267 = sbr.rel (%p264) target = $region52
    $region51: #{mlp_policy_forward.1} parent=5 // pred_region
      %s268 = ssub.s32 %s16, 1
      %p269 = scmp.lt.s32.totalorder %s21, 1
      %s270 = scalar_select %p269, %s21, 1
      %s271 = smul.addr %s270, 10
      %s272 = scalar_lea.vmem %s0, %s271
      %p273 = pneg %p42
      %p274 = pneg %p39
      %p275 = pneg %p63
      %p276 = pneg %p60
      %p277 = pneg %p84
      %p278 = pneg %p81
      %p279 = pneg %p105
      %p280 = pneg %p102
      %p281 = pneg %p126
      %p282 = pneg %p123
      %p283 = pneg %p147
      %p284 = pneg %p144
      %p285 = pneg %p168
      %p286 = pneg %p165
      %p287 = pneg %p189
      %p288 = pneg %p186
      %p289 = pneg %p215
      %p290 = pneg %p212
      %p291 = scmp.lt.s32.totalorder %s21, 1
      %s292 = scalar_select %p291, %s21, 1
      %s293 = smul.addr %s292, 9
      %s294 = scalar_lea.vmem %s8, %s293
      %p295 = scmp.lt.s32.totalorder %s21, 1
      %s296 = scalar_select %p295, %s21, 1
      %s297 = smul.addr %s296, 10
      %s298 = scalar_lea.vmem %s0, %s297
      %p299 = scmp.lt.s32.totalorder %s21, 1
      %s300 = scalar_select %p299, %s21, 1
      %s301 = smul.addr %s300, 9
      %s302 = scalar_lea.vmem %s8, %s301
      %v304 = vld [vmem:[%s1] sm:$0xff]
      %v305 = vld [vmem:[%s1 + $0x8] sm:$0x1]
      %v306 = vld [vmem:[%s298] sm:$0xff]
      %v307 = vld [vmem:[%s298 + $0x8] sm:$0x3]
      %v310 = vperm.slane %v306, 0
      %v311 = vperm.slane %v306, 1
      %v312 = vperm.slane %v306, 2
      %v313 = vperm.slane %v306, 3
      %v314 = vperm.slane %v306, 4
      %v315 = vperm.slane %v306, 5
      %v316 = vperm.slane %v306, 6
      %v317 = vperm.slane %v306, 7
      %v318 = vperm.slane %v307, 0
      %328 = vrot.lane.b32.xlu0 %v310, 127
      %v329 = vpop.permute.xlu0 %328
      %330 = vrot.lane.b32.xlu0 %v311, 127
      %v331 = vpop.permute.xlu0 %330
      %332 = vrot.lane.b32.xlu0 %v312, 127
      %v333 = vpop.permute.xlu0 %332
      %334 = vrot.lane.b32.xlu0 %v313, 127
      %v335 = vpop.permute.xlu0 %334
      %336 = vrot.lane.b32.xlu0 %v314, 127
      %v337 = vpop.permute.xlu0 %336
      %338 = vrot.lane.b32.xlu0 %v315, 127
      %v339 = vpop.permute.xlu0 %338
      %340 = vrot.lane.b32.xlu0 %v316, 127
      %v341 = vpop.permute.xlu0 %340
      %342 = vrot.lane.b32.xlu0 %v317, 127
      %v343 = vpop.permute.xlu0 %342
      %344 = vrot.lane.b32.xlu0 %v318, 127
      %v345 = vpop.permute.xlu0 %344
      %vm346 = vcmask 1039360
      %v347 = vsel %vm346, %v329, %v331
      %v348 = vsel %vm346, %v331, %v333
      %v349 = vsel %vm346, %v333, %v335
      %v350 = vsel %vm346, %v335, %v337
      %v351 = vsel %vm346, %v337, %v339
      %v352 = vsel %vm346, %v339, %v341
      %v353 = vsel %vm346, %v341, %v343
      %v354 = vsel %vm346, %v343, %v345
      %364 = vrot.lane.b32.xlu0 %v310, 126
      %v365 = vpop.permute.xlu0 %364
      %366 = vrot.lane.b32.xlu0 %v311, 126
      %v367 = vpop.permute.xlu0 %366
      %368 = vrot.lane.b32.xlu0 %v312, 126
      %v369 = vpop.permute.xlu0 %368
      %370 = vrot.lane.b32.xlu0 %v313, 126
      %v371 = vpop.permute.xlu0 %370
      %372 = vrot.lane.b32.xlu0 %v314, 126
      %v373 = vpop.permute.xlu0 %372
      %374 = vrot.lane.b32.xlu0 %v315, 126
      %v375 = vpop.permute.xlu0 %374
      %376 = vrot.lane.b32.xlu0 %v316, 126
      %v377 = vpop.permute.xlu0 %376
      %378 = vrot.lane.b32.xlu0 %v317, 126
      %v379 = vpop.permute.xlu0 %378
      %380 = vrot.lane.b32.xlu0 %v318, 126
      %v381 = vpop.permute.xlu0 %380
      %vm382 = vcmask 1031168
      %v383 = vsel %vm382, %v365, %v367
      %v384 = vsel %vm382, %v367, %v369
      %v385 = vsel %vm382, %v369, %v371
      %v386 = vsel %vm382, %v371, %v373
      %v387 = vsel %vm382, %v373, %v375
      %v388 = vsel %vm382, %v375, %v377
      %v389 = vsel %vm382, %v377, %v379
      %v390 = vsel %vm382, %v379, %v381
      %400 = vrot.lane.b32.xlu0 %v310, 94
      %v401 = vpop.permute.xlu0 %400
      %402 = vrot.lane.b32.xlu0 %v311, 94
      %v403 = vpop.permute.xlu0 %402
      %404 = vrot.lane.b32.xlu0 %v312, 94
      %v405 = vpop.permute.xlu0 %404
      %406 = vrot.lane.b32.xlu0 %v313, 94
      %v407 = vpop.permute.xlu0 %406
      %408 = vrot.lane.b32.xlu0 %v314, 94
      %v409 = vpop.permute.xlu0 %408
      %410 = vrot.lane.b32.xlu0 %v315, 94
      %v411 = vpop.permute.xlu0 %410
      %412 = vrot.lane.b32.xlu0 %v316, 94
      %v413 = vpop.permute.xlu0 %412
      %414 = vrot.lane.b32.xlu0 %v317, 94
      %v415 = vpop.permute.xlu0 %414
      %416 = vrot.lane.b32.xlu0 %v318, 94
      %v417 = vpop.permute.xlu0 %416
      %vm418 = vcmask 769024
      %v419 = vsel %vm418, %v401, %v403
      %v420 = vsel %vm418, %v403, %v405
      %v421 = vsel %vm418, %v405, %v407
      %v422 = vsel %vm418, %v407, %v409
      %v423 = vsel %vm418, %v409, %v411
      %v424 = vsel %vm418, %v411, %v413
      %v425 = vsel %vm418, %v413, %v415
      %v426 = vsel %vm418, %v415, %v417
      %436 = vrot.lane.b32.xlu0 %v310, 93
      %v437 = vpop.permute.xlu0 %436
      %438 = vrot.lane.b32.xlu0 %v311, 93
      %v439 = vpop.permute.xlu0 %438
      %440 = vrot.lane.b32.xlu0 %v312, 93
      %v441 = vpop.permute.xlu0 %440
      %442 = vrot.lane.b32.xlu0 %v313, 93
      %v443 = vpop.permute.xlu0 %442
      %444 = vrot.lane.b32.xlu0 %v314, 93
      %v445 = vpop.permute.xlu0 %444
      %446 = vrot.lane.b32.xlu0 %v315, 93
      %v447 = vpop.permute.xlu0 %446
      %448 = vrot.lane.b32.xlu0 %v316, 93
      %v449 = vpop.permute.xlu0 %448
      %450 = vrot.lane.b32.xlu0 %v317, 93
      %v451 = vpop.permute.xlu0 %450
      %452 = vrot.lane.b32.xlu0 %v318, 93
      %v453 = vpop.permute.xlu0 %452
      %vm454 = vcmask 760832
      %v455 = vsel %vm454, %v437, %v439
      %v456 = vsel %vm454, %v439, %v441
      %v457 = vsel %vm454, %v441, %v443
      %v458 = vsel %vm454, %v443, %v445
      %v459 = vsel %vm454, %v445, %v447
      %v460 = vsel %vm454, %v447, %v449
      %v461 = vsel %vm454, %v449, %v451
      %v462 = vsel %vm454, %v451, %v453
      %472 = vrot.lane.b32.xlu0 %v310, 92
      %v473 = vpop.permute.xlu0 %472
      %474 = vrot.lane.b32.xlu0 %v311, 92
      %v475 = vpop.permute.xlu0 %474
      %476 = vrot.lane.b32.xlu0 %v312, 92
      %v477 = vpop.permute.xlu0 %476
      %478 = vrot.lane.b32.xlu0 %v313, 92
      %v479 = vpop.permute.xlu0 %478
      %480 = vrot.lane.b32.xlu0 %v314, 92
      %v481 = vpop.permute.xlu0 %480
      %482 = vrot.lane.b32.xlu0 %v315, 92
      %v483 = vpop.permute.xlu0 %482
      %484 = vrot.lane.b32.xlu0 %v316, 92
      %v485 = vpop.permute.xlu0 %484
      %486 = vrot.lane.b32.xlu0 %v317, 92
      %v487 = vpop.permute.xlu0 %486
      %488 = vrot.lane.b32.xlu0 %v318, 92
      %v489 = vpop.permute.xlu0 %488
      %vm490 = vcmask 752640
      %v491 = vsel %vm490, %v473, %v475
      %v492 = vsel %vm490, %v475, %v477
      %v493 = vsel %vm490, %v477, %v479
      %v494 = vsel %vm490, %v479, %v481
      %v495 = vsel %vm490, %v481, %v483
      %v496 = vsel %vm490, %v483, %v485
      %v497 = vsel %vm490, %v485, %v487
      %v498 = vsel %vm490, %v487, %v489
      %v508 = vperm.slane %v307, 1
      %509 = vrot.lane.b32.xlu0 %v310, 60
      %v510 = vpop.permute.xlu0 %509
      %511 = vrot.lane.b32.xlu0 %v311, 60
      %v512 = vpop.permute.xlu0 %511
      %513 = vrot.lane.b32.xlu0 %v312, 60
      %v514 = vpop.permute.xlu0 %513
      %515 = vrot.lane.b32.xlu0 %v313, 60
      %v516 = vpop.permute.xlu0 %515
      %517 = vrot.lane.b32.xlu0 %v314, 60
      %v518 = vpop.permute.xlu0 %517
      %519 = vrot.lane.b32.xlu0 %v315, 60
      %v520 = vpop.permute.xlu0 %519
      %521 = vrot.lane.b32.xlu0 %v316, 60
      %v522 = vpop.permute.xlu0 %521
      %523 = vrot.lane.b32.xlu0 %v317, 60
      %v524 = vpop.permute.xlu0 %523
      %525 = vrot.lane.b32.xlu0 %v318, 60
      %v526 = vpop.permute.xlu0 %525
      %527 = vrot.lane.b32.xlu0 %v508, 60
      %v528 = vpop.permute.xlu0 %527
      %vm529 = vcmask 490496
      %v530 = vsel %vm529, %v510, %v512
      %v531 = vsel %vm529, %v512, %v514
      %v532 = vsel %vm529, %v514, %v516
      %v533 = vsel %vm529, %v516, %v518
      %v534 = vsel %vm529, %v518, %v520
      %v535 = vsel %vm529, %v520, %v522
      %v536 = vsel %vm529, %v522, %v524
      %v537 = vsel %vm529, %v524, %v526
      %v538 = vsel %vm529, %v526, %v528
      %548 = vrot.lane.b32.xlu0 %v310, 59
      %v549 = vpop.permute.xlu0 %548
      %550 = vrot.lane.b32.xlu0 %v311, 59
      %v551 = vpop.permute.xlu0 %550
      %552 = vrot.lane.b32.xlu0 %v312, 59
      %v553 = vpop.permute.xlu0 %552
      %554 = vrot.lane.b32.xlu0 %v313, 59
      %v555 = vpop.permute.xlu0 %554
      %556 = vrot.lane.b32.xlu0 %v314, 59
      %v557 = vpop.permute.xlu0 %556
      %558 = vrot.lane.b32.xlu0 %v315, 59
      %v559 = vpop.permute.xlu0 %558
      %560 = vrot.lane.b32.xlu0 %v316, 59
      %v561 = vpop.permute.xlu0 %560
      %562 = vrot.lane.b32.xlu0 %v317, 59
      %v563 = vpop.permute.xlu0 %562
      %564 = vrot.lane.b32.xlu0 %v318, 59
      %v565 = vpop.permute.xlu0 %564
      %566 = vrot.lane.b32.xlu0 %v508, 59
      %v567 = vpop.permute.xlu0 %566
      %vm568 = vcmask 482304
      %v569 = vsel %vm568, %v549, %v551
      %v570 = vsel %vm568, %v551, %v553
      %v571 = vsel %vm568, %v553, %v555
      %v572 = vsel %vm568, %v555, %v557
      %v573 = vsel %vm568, %v557, %v559
      %v574 = vsel %vm568, %v559, %v561
      %v575 = vsel %vm568, %v561, %v563
      %v576 = vsel %vm568, %v563, %v565
      %v577 = vsel %vm568, %v565, %v567
      %587 = vrot.lane.b32.xlu0 %v310, 58
      %v588 = vpop.permute.xlu0 %587
      %589 = vrot.lane.b32.xlu0 %v311, 58
      %v590 = vpop.permute.xlu0 %589
      %591 = vrot.lane.b32.xlu0 %v312, 58
      %v592 = vpop.permute.xlu0 %591
      %593 = vrot.lane.b32.xlu0 %v313, 58
      %v594 = vpop.permute.xlu0 %593
      %595 = vrot.lane.b32.xlu0 %v314, 58
      %v596 = vpop.permute.xlu0 %595
      %597 = vrot.lane.b32.xlu0 %v315, 58
      %v598 = vpop.permute.xlu0 %597
      %599 = vrot.lane.b32.xlu0 %v316, 58
      %v600 = vpop.permute.xlu0 %599
      %601 = vrot.lane.b32.xlu0 %v317, 58
      %v602 = vpop.permute.xlu0 %601
      %603 = vrot.lane.b32.xlu0 %v318, 58
      %v604 = vpop.permute.xlu0 %603
      %605 = vrot.lane.b32.xlu0 %v508, 58
      %v606 = vpop.permute.xlu0 %605
      %vm607 = vcmask 474112
      %v608 = vsel %vm607, %v588, %v590
      %v609 = vsel %vm607, %v590, %v592
      %v610 = vsel %vm607, %v592, %v594
      %v611 = vsel %vm607, %v594, %v596
      %v612 = vsel %vm607, %v596, %v598
      %v613 = vsel %vm607, %v598, %v600
      %v614 = vsel %vm607, %v600, %v602
      %v615 = vsel %vm607, %v602, %v604
      %v616 = vsel %vm607, %v604, %v606
      %vm626 = vcmask 1040384
      %v627 = vsel %vm626, %v310, %v347
      %v628 = vsel %vm626, %v311, %v348
      %v629 = vsel %vm626, %v312, %v349
      %v630 = vsel %vm626, %v313, %v350
      %v631 = vsel %vm626, %v314, %v351
      %v632 = vsel %vm626, %v315, %v352
      %v633 = vsel %vm626, %v316, %v353
      %v634 = vsel %vm626, %v317, %v354
      %v635 = vsel %vm626, %v318, %v345
      %vm636 = vcmask 1041408
      %v637 = vsel %vm636, %v627, %v383
      %v638 = vsel %vm636, %v628, %v384
      %v639 = vsel %vm636, %v629, %v385
      %v640 = vsel %vm636, %v630, %v386
      %v641 = vsel %vm636, %v631, %v387
      %v642 = vsel %vm636, %v632, %v388
      %v643 = vsel %vm636, %v633, %v389
      %v644 = vsel %vm636, %v634, %v390
      %v645 = vsel %vm636, %v635, %v381
      %vm646 = vcmask 1042432
      %v647 = vsel %vm646, %v637, %v419
      %v648 = vsel %vm646, %v638, %v420
      %v649 = vsel %vm646, %v639, %v421
      %v650 = vsel %vm646, %v640, %v422
      %v651 = vsel %vm646, %v641, %v423
      %v652 = vsel %vm646, %v642, %v424
      %v653 = vsel %vm646, %v643, %v425
      %v654 = vsel %vm646, %v644, %v426
      %v655 = vsel %vm646, %v645, %v417
      %vm656 = vcmask 1043456
      %v657 = vsel %vm656, %v647, %v455
      %v658 = vsel %vm656, %v648, %v456
      %v659 = vsel %vm656, %v649, %v457
      %v660 = vsel %vm656, %v650, %v458
      %v661 = vsel %vm656, %v651, %v459
      %v662 = vsel %vm656, %v652, %v460
      %v663 = vsel %vm656, %v653, %v461
      %v664 = vsel %vm656, %v654, %v462
      %v665 = vsel %vm656, %v655, %v453
      %vm666 = vcmask 1044480
      %v667 = vsel %vm666, %v657, %v491
      %v668 = vsel %vm666, %v658, %v492
      %v669 = vsel %vm666, %v659, %v493
      %v670 = vsel %vm666, %v660, %v494
      %v671 = vsel %vm666, %v661, %v495
      %v672 = vsel %vm666, %v662, %v496
      %v673 = vsel %vm666, %v663, %v497
      %v674 = vsel %vm666, %v664, %v498
      %v675 = vsel %vm666, %v665, %v489
      %vm676 = vcmask 1045504
      %v677 = vsel %vm676, %v667, %v530
      %v678 = vsel %vm676, %v668, %v531
      %v679 = vsel %vm676, %v669, %v532
      %v680 = vsel %vm676, %v670, %v533
      %v681 = vsel %vm676, %v671, %v534
      %v682 = vsel %vm676, %v672, %v535
      %v683 = vsel %vm676, %v673, %v536
      %v684 = vsel %vm676, %v674, %v537
      %v685 = vsel %vm676, %v675, %v538
      %vm686 = vcmask 1046528
      %v687 = vsel %vm686, %v677, %v569
      %v688 = vsel %vm686, %v678, %v570
      %v689 = vsel %vm686, %v679, %v571
      %v690 = vsel %vm686, %v680, %v572
      %v691 = vsel %vm686, %v681, %v573
      %v692 = vsel %vm686, %v682, %v574
      %v693 = vsel %vm686, %v683, %v575
      %v694 = vsel %vm686, %v684, %v576
      %v695 = vsel %vm686, %v685, %v577
      %v696 = vsel %vm626, %v608, 0.0
      %v697 = vsel %vm626, %v609, 0.0
      %v698 = vsel %vm626, %v610, 0.0
      %v699 = vsel %vm626, %v611, 0.0
      %v700 = vsel %vm626, %v612, 0.0
      %v701 = vsel %vm626, %v613, 0.0
      %v702 = vsel %vm626, %v614, 0.0
      %v703 = vsel %vm626, %v615, 0.0
      %v704 = vsel %vm626, %v616, 0.0
      %v705 = vld [vmem:[%s2] sm:$0xff]
      %v706 = vld [vmem:[%s2 + $0x8] sm:$0xff]
      %v707 = vld [vmem:[%s2 + $0x10] sm:$0xff]
      %v708 = vld [vmem:[%s2 + $0x18] sm:$0xff]
      %v709 = vld [vmem:[%s3] sm:$0xff]
      %v710 = vld [vmem:[%s3 + $0x8] sm:$0xff]
      %v711 = vld [vmem:[%s3 + $0x10] sm:$0xff]
      %v712 = vld [vmem:[%s3 + $0x18] sm:$0xff]
      %714 = vset.pattern.permute.xlu0 0
      %715 = vperm.xlu0 %714, %v709
      %v716 = vpop.permute.xlu0 %715
      %719 = vset.pattern.permute.xlu0 0
      %720 = vperm.xlu0 %719, %v710
      %v721 = vpop.permute.xlu0 %720
      %724 = vset.pattern.permute.xlu0 0
      %725 = vperm.xlu0 %724, %v711
      %v726 = vpop.permute.xlu0 %725
      %729 = vset.pattern.permute.xlu0 0
      %730 = vperm.xlu0 %729, %v712
      %v731 = vpop.permute.xlu0 %730
      %vm733 = vcmask 130048
      %v735 = vsel %vm733, %v705, 0
      %v738 = vsel %vm733, %v706, 0
      %v741 = vsel %vm733, %v707, 0
      %v744 = vsel %vm733, %v708, 0
      %746 = vmatpush.msra.mxu0 0.0
      %747 = vmatpush.msra.mxu0 0.0
      %748 = vmatpush.msra.mxu0 0.0
      %749 = vmatpush.msra.mxu0 0.0
      %750 = vmatpush.msra.mxu0 0.0
      %751 = vmatpush.msra.mxu0 0.0
      %752 = vmatpush.msra.mxu0 0.0
      %753 = vmatpush.msra.mxu0 0.0
      %754 = vmatpush.msra.mxu0 0.0
      %755 = vmatpush.msra.mxu0 0.0
      %756 = vmatpush.msra.mxu0 0.0
      %757 = vmatpush.msra.mxu0 0.0
      %758 = vmatpush.msra.mxu0 0.0
      %759 = vmatpush.msra.mxu0 0.0
      %760 = vmatpush.msra.mxu0 %v696
      %761 = vmatpush.msra.mxu0 %v687
      %762 = vmatmul.f32.gmra.mxu0 %v735
      %v763 = vpop.f32.mrf.mxu0
      %v764 = vadd.f32 %v716, %v763
      %765 = vmatmul.f32.gmra.mxu0 %v738
      %v766 = vpop.f32.mrf.mxu0
      %v767 = vadd.f32 %v721, %v766
      %768 = vmatmul.f32.gmra.mxu0 %v741
      %v769 = vpop.f32.mrf.mxu0
      %v770 = vadd.f32 %v726, %v769
      %771 = vmatmul.f32.gmra.mxu0 %v744
      %v772 = vpop.f32.mrf.mxu0
      %v773 = vadd.f32 %v731, %v772
      %774 = vdwg.mxu0
      %775 = vmatpush.msra.mxu0 0.0
      %776 = vmatpush.msra.mxu0 0.0
      %777 = vmatpush.msra.mxu0 0.0
      %778 = vmatpush.msra.mxu0 0.0
      %779 = vmatpush.msra.mxu0 0.0
      %780 = vmatpush.msra.mxu0 0.0
      %781 = vmatpush.msra.mxu0 0.0
      %782 = vmatpush.msra.mxu0 0.0
      %783 = vmatpush.msra.mxu0 0.0
      %784 = vmatpush.msra.mxu0 0.0
      %785 = vmatpush.msra.mxu0 0.0
      %786 = vmatpush.msra.mxu0 0.0
      %787 = vmatpush.msra.mxu0 0.0
      %788 = vmatpush.msra.mxu0 0.0
      %789 = vmatpush.msra.mxu0 %v697
      %790 = vmatpush.msra.mxu0 %v688
      %791 = vmatmul.f32.gmra.mxu0 %v735
      %v792 = vpop.f32.mrf.mxu0
      %v793 = vadd.f32 %v716, %v792
      %794 = vmatmul.f32.gmra.mxu0 %v738
      %v795 = vpop.f32.mrf.mxu0
      %v796 = vadd.f32 %v721, %v795
      %797 = vmatmul.f32.gmra.mxu0 %v741
      %v798 = vpop.f32.mrf.mxu0
      %v799 = vadd.f32 %v726, %v798
      %800 = vmatmul.f32.gmra.mxu0 %v744
      %v801 = vpop.f32.mrf.mxu0
      %v802 = vadd.f32 %v731, %v801
      %803 = vdwg.mxu0
      %804 = vmatpush.msra.mxu0 0.0
      %805 = vmatpush.msra.mxu0 0.0
      %806 = vmatpush.msra.mxu0 0.0
      %807 = vmatpush.msra.mxu0 0.0
      %808 = vmatpush.msra.mxu0 0.0
      %809 = vmatpush.msra.mxu0 0.0
      %810 = vmatpush.msra.mxu0 0.0
      %811 = vmatpush.msra.mxu0 0.0
      %812 = vmatpush.msra.mxu0 0.0
      %813 = vmatpush.msra.mxu0 0.0
      %814 = vmatpush.msra.mxu0 0.0
      %815 = vmatpush.msra.mxu0 0.0
      %816 = vmatpush.msra.mxu0 0.0
      %817 = vmatpush.msra.mxu0 0.0
      %818 = vmatpush.msra.mxu0 %v698
      %819 = vmatpush.msra.mxu0 %v689
      %820 = vmatmul.f32.gmra.mxu0 %v735
      %v821 = vpop.f32.mrf.mxu0
      %v822 = vadd.f32 %v716, %v821
      %823 = vmatmul.f32.gmra.mxu0 %v738
      %v824 = vpop.f32.mrf.mxu0
      %v825 = vadd.f32 %v721, %v824
      %826 = vmatmul.f32.gmra.mxu0 %v741
      %v827 = vpop.f32.mrf.mxu0
      %v828 = vadd.f32 %v726, %v827
      %829 = vmatmul.f32.gmra.mxu0 %v744
      %v830 = vpop.f32.mrf.mxu0
      %v831 = vadd.f32 %v731, %v830
      %832 = vdwg.mxu0
      %833 = vmatpush.msra.mxu0 0.0
      %834 = vmatpush.msra.mxu0 0.0
      %835 = vmatpush.msra.mxu0 0.0
      %836 = vmatpush.msra.mxu0 0.0
      %837 = vmatpush.msra.mxu0 0.0
      %838 = vmatpush.msra.mxu0 0.0
      %839 = vmatpush.msra.mxu0 0.0
      %840 = vmatpush.msra.mxu0 0.0
      %841 = vmatpush.msra.mxu0 0.0
      %842 = vmatpush.msra.mxu0 0.0
      %843 = vmatpush.msra.mxu0 0.0
      %844 = vmatpush.msra.mxu0 0.0
      %845 = vmatpush.msra.mxu0 0.0
      %846 = vmatpush.msra.mxu0 0.0
      %847 = vmatpush.msra.mxu0 %v699
      %848 = vmatpush.msra.mxu0 %v690
      %849 = vmatmul.f32.gmra.mxu0 %v735
      %v850 = vpop.f32.mrf.mxu0
      %v851 = vadd.f32 %v716, %v850
      %852 = vmatmul.f32.gmra.mxu0 %v738
      %v853 = vpop.f32.mrf.mxu0
      %v854 = vadd.f32 %v721, %v853
      %855 = vmatmul.f32.gmra.mxu0 %v741
      %v856 = vpop.f32.mrf.mxu0
      %v857 = vadd.f32 %v726, %v856
      %858 = vmatmul.f32.gmra.mxu0 %v744
      %v859 = vpop.f32.mrf.mxu0
      %v860 = vadd.f32 %v731, %v859
      %861 = vdwg.mxu0
      %862 = vmatpush.msra.mxu0 0.0
      %863 = vmatpush.msra.mxu0 0.0
      %864 = vmatpush.msra.mxu0 0.0
      %865 = vmatpush.msra.mxu0 0.0
      %866 = vmatpush.msra.mxu0 0.0
      %867 = vmatpush.msra.mxu0 0.0
      %868 = vmatpush.msra.mxu0 0.0
      %869 = vmatpush.msra.mxu0 0.0
      %870 = vmatpush.msra.mxu0 0.0
      %871 = vmatpush.msra.mxu0 0.0
      %872 = vmatpush.msra.mxu0 0.0
      %873 = vmatpush.msra.mxu0 0.0
      %874 = vmatpush.msra.mxu0 0.0
      %875 = vmatpush.msra.mxu0 0.0
      %876 = vmatpush.msra.mxu0 %v700
      %877 = vmatpush.msra.mxu0 %v691
      %878 = vmatmul.f32.gmra.mxu0 %v735
      %v879 = vpop.f32.mrf.mxu0
      %v880 = vadd.f32 %v716, %v879
      %881 = vmatmul.f32.gmra.mxu0 %v738
      %v882 = vpop.f32.mrf.mxu0
      %v883 = vadd.f32 %v721, %v882
      %884 = vmatmul.f32.gmra.mxu0 %v741
      %v885 = vpop.f32.mrf.mxu0
      %v886 = vadd.f32 %v726, %v885
      %887 = vmatmul.f32.gmra.mxu0 %v744
      %v888 = vpop.f32.mrf.mxu0
      %v889 = vadd.f32 %v731, %v888
      %890 = vdwg.mxu0
      %891 = vmatpush.msra.mxu0 0.0
      %892 = vmatpush.msra.mxu0 0.0
      %893 = vmatpush.msra.mxu0 0.0
      %894 = vmatpush.msra.mxu0 0.0
      %895 = vmatpush.msra.mxu0 0.0
      %896 = vmatpush.msra.mxu0 0.0
      %897 = vmatpush.msra.mxu0 0.0
      %898 = vmatpush.msra.mxu0 0.0
      %899 = vmatpush.msra.mxu0 0.0
      %900 = vmatpush.msra.mxu0 0.0
      %901 = vmatpush.msra.mxu0 0.0
      %902 = vmatpush.msra.mxu0 0.0
      %903 = vmatpush.msra.mxu0 0.0
      %904 = vmatpush.msra.mxu0 0.0
      %905 = vmatpush.msra.mxu0 %v701
      %906 = vmatpush.msra.mxu0 %v692
      %907 = vmatmul.f32.gmra.mxu0 %v735
      %v908 = vpop.f32.mrf.mxu0
      %v909 = vadd.f32 %v716, %v908
      %910 = vmatmul.f32.gmra.mxu0 %v738
      %v911 = vpop.f32.mrf.mxu0
      %v912 = vadd.f32 %v721, %v911
      %913 = vmatmul.f32.gmra.mxu0 %v741
      %v914 = vpop.f32.mrf.mxu0
      %v915 = vadd.f32 %v726, %v914
      %916 = vmatmul.f32.gmra.mxu0 %v744
      %v917 = vpop.f32.mrf.mxu0
      %v918 = vadd.f32 %v731, %v917
      %919 = vdwg.mxu0
      %920 = vmatpush.msra.mxu0 0.0
      %921 = vmatpush.msra.mxu0 0.0
      %922 = vmatpush.msra.mxu0 0.0
      %923 = vmatpush.msra.mxu0 0.0
      %924 = vmatpush.msra.mxu0 0.0
      %925 = vmatpush.msra.mxu0 0.0
      %926 = vmatpush.msra.mxu0 0.0
      %927 = vmatpush.msra.mxu0 0.0
      %928 = vmatpush.msra.mxu0 0.0
      %929 = vmatpush.msra.mxu0 0.0
      %930 = vmatpush.msra.mxu0 0.0
      %931 = vmatpush.msra.mxu0 0.0
      %932 = vmatpush.msra.mxu0 0.0
      %933 = vmatpush.msra.mxu0 0.0
      %934 = vmatpush.msra.mxu0 %v702
      %935 = vmatpush.msra.mxu0 %v693
      %936 = vmatmul.f32.gmra.mxu0 %v735
      %v937 = vpop.f32.mrf.mxu0
      %v938 = vadd.f32 %v716, %v937
      %939 = vmatmul.f32.gmra.mxu0 %v738
      %v940 = vpop.f32.mrf.mxu0
      %v941 = vadd.f32 %v721, %v940
      %942 = vmatmul.f32.gmra.mxu0 %v741
      %v943 = vpop.f32.mrf.mxu0
      %v944 = vadd.f32 %v726, %v943
      %945 = vmatmul.f32.gmra.mxu0 %v744
      %v946 = vpop.f32.mrf.mxu0
      %v947 = vadd.f32 %v731, %v946
      %948 = vdwg.mxu0
      %949 = vmatpush.msra.mxu0 0.0
      %950 = vmatpush.msra.mxu0 0.0
      %951 = vmatpush.msra.mxu0 0.0
      %952 = vmatpush.msra.mxu0 0.0
      %953 = vmatpush.msra.mxu0 0.0
      %954 = vmatpush.msra.mxu0 0.0
      %955 = vmatpush.msra.mxu0 0.0
      %956 = vmatpush.msra.mxu0 0.0
      %957 = vmatpush.msra.mxu0 0.0
      %958 = vmatpush.msra.mxu0 0.0
      %959 = vmatpush.msra.mxu0 0.0
      %960 = vmatpush.msra.mxu0 0.0
      %961 = vmatpush.msra.mxu0 0.0
      %962 = vmatpush.msra.mxu0 0.0
      %963 = vmatpush.msra.mxu0 %v703
      %964 = vmatpush.msra.mxu0 %v694
      %965 = vmatmul.f32.gmra.mxu0 %v735
      %v966 = vpop.f32.mrf.mxu0
      %v967 = vadd.f32 %v716, %v966
      %968 = vmatmul.f32.gmra.mxu0 %v738
      %v969 = vpop.f32.mrf.mxu0
      %v970 = vadd.f32 %v721, %v969
      %971 = vmatmul.f32.gmra.mxu0 %v741
      %v972 = vpop.f32.mrf.mxu0
      %v973 = vadd.f32 %v726, %v972
      %974 = vmatmul.f32.gmra.mxu0 %v744
      %v975 = vpop.f32.mrf.mxu0
      %v976 = vadd.f32 %v731, %v975
      %977 = vdwg.mxu0
      %978 = vmatpush.msra.mxu0 0.0
      %979 = vmatpush.msra.mxu0 0.0
      %980 = vmatpush.msra.mxu0 0.0
      %981 = vmatpush.msra.mxu0 0.0
      %982 = vmatpush.msra.mxu0 0.0
      %983 = vmatpush.msra.mxu0 0.0
      %984 = vmatpush.msra.mxu0 0.0
      %985 = vmatpush.msra.mxu0 0.0
      %986 = vmatpush.msra.mxu0 0.0
      %987 = vmatpush.msra.mxu0 0.0
      %988 = vmatpush.msra.mxu0 0.0
      %989 = vmatpush.msra.mxu0 0.0
      %990 = vmatpush.msra.mxu0 0.0
      %991 = vmatpush.msra.mxu0 0.0
      %992 = vmatpush.msra.mxu0 %v704
      %993 = vmatpush.msra.mxu0 %v695
      %994 = vmatmul.f32.gmra.mxu0 %v735
      %v995 = vpop.f32.mrf.mxu0
      %v996 = vadd.f32 %v716, %v995
      %997 = vmatmul.f32.gmra.mxu0 %v738
      %v998 = vpop.f32.mrf.mxu0
      %v999 = vadd.f32 %v721, %v998
      %1000 = vmatmul.f32.gmra.mxu0 %v741
      %v1001 = vpop.f32.mrf.mxu0
      %v1002 = vadd.f32 %v726, %v1001
      %1003 = vmatmul.f32.gmra.mxu0 %v744
      %v1004 = vpop.f32.mrf.mxu0
      %v1005 = vadd.f32 %v731, %v1004
      %1006 = vdwg.mxu0
      %v1007 = vmax.f32 %v764, 0.0
      %v1008 = vmax.f32 %v793, 0.0
      %v1009 = vmax.f32 %v822, 0.0
      %v1010 = vmax.f32 %v851, 0.0
      %v1011 = vmax.f32 %v880, 0.0
      %v1012 = vmax.f32 %v909, 0.0
      %v1013 = vmax.f32 %v938, 0.0
      %v1014 = vmax.f32 %v967, 0.0
      %v1015 = vmax.f32 %v996, 0.0
      %v1016 = vmax.f32 %v767, 0.0
      %v1017 = vmax.f32 %v796, 0.0
      %v1018 = vmax.f32 %v825, 0.0
      %v1019 = vmax.f32 %v854, 0.0
      %v1020 = vmax.f32 %v883, 0.0
      %v1021 = vmax.f32 %v912, 0.0
      %v1022 = vmax.f32 %v941, 0.0
      %v1023 = vmax.f32 %v970, 0.0
      %v1024 = vmax.f32 %v999, 0.0
      %v1025 = vmax.f32 %v770, 0.0
      %v1026 = vmax.f32 %v799, 0.0
      %v1027 = vmax.f32 %v828, 0.0
      %v1028 = vmax.f32 %v857, 0.0
      %v1029 = vmax.f32 %v886, 0.0
      %v1030 = vmax.f32 %v915, 0.0
      %v1031 = vmax.f32 %v944, 0.0
      %v1032 = vmax.f32 %v973, 0.0
      %v1033 = vmax.f32 %v1002, 0.0
      %v1034 = vmax.f32 %v773, 0.0
      %v1035 = vmax.f32 %v802, 0.0
      %v1036 = vmax.f32 %v831, 0.0
      %v1037 = vmax.f32 %v860, 0.0
      %v1038 = vmax.f32 %v889, 0.0
      %v1039 = vmax.f32 %v918, 0.0
      %v1040 = vmax.f32 %v947, 0.0
      %v1041 = vmax.f32 %v976, 0.0
      %v1042 = vmax.f32 %v1005, 0.0
      %v1045 = vperm.slane %v304, 0
      %v1046 = vperm.slane %v304, 1
      %v1047 = vperm.slane %v304, 2
      %v1048 = vperm.slane %v304, 3
      %v1049 = vperm.slane %v304, 4
      %v1050 = vperm.slane %v304, 5
      %v1051 = vperm.slane %v304, 6
      %v1052 = vperm.slane %v304, 7
      %v1053 = vperm.slane %v305, 0
      %v1063 = vmul.f32 %v1007, %v1045
      %v1064 = vmul.f32 %v1008, %v1046
      %v1065 = vmul.f32 %v1009, %v1047
      %v1066 = vmul.f32 %v1010, %v1048
      %v1067 = vmul.f32 %v1011, %v1049
      %v1068 = vmul.f32 %v1012, %v1050
      %v1069 = vmul.f32 %v1013, %v1051
      %v1070 = vmul.f32 %v1014, %v1052
      %v1071 = vmul.f32 %v1015, %v1053
      %v1072 = vmul.f32 %v1016, %v1045
      %v1073 = vmul.f32 %v1017, %v1046
      %v1074 = vmul.f32 %v1018, %v1047
      %v1075 = vmul.f32 %v1019, %v1048
      %v1076 = vmul.f32 %v1020, %v1049
      %v1077 = vmul.f32 %v1021, %v1050
      %v1078 = vmul.f32 %v1022, %v1051
      %v1079 = vmul.f32 %v1023, %v1052
      %v1080 = vmul.f32 %v1024, %v1053
      %v1081 = vmul.f32 %v1025, %v1045
      %v1082 = vmul.f32 %v1026, %v1046
      %v1083 = vmul.f32 %v1027, %v1047
      %v1084 = vmul.f32 %v1028, %v1048
      %v1085 = vmul.f32 %v1029, %v1049
      %v1086 = vmul.f32 %v1030, %v1050
      %v1087 = vmul.f32 %v1031, %v1051
      %v1088 = vmul.f32 %v1032, %v1052
      %v1089 = vmul.f32 %v1033, %v1053
      %v1090 = vmul.f32 %v1034, %v1045
      %v1091 = vmul.f32 %v1035, %v1046
      %v1092 = vmul.f32 %v1036, %v1047
      %v1093 = vmul.f32 %v1037, %v1048
      %v1094 = vmul.f32 %v1038, %v1049
      %v1095 = vmul.f32 %v1039, %v1050
      %v1096 = vmul.f32 %v1040, %v1051
      %v1097 = vmul.f32 %v1041, %v1052
      %v1098 = vmul.f32 %v1042, %v1053
      %1135 = vrot.lane.b32.xlu0 %v1063, 35
      %v1136 = vpop.permute.xlu0 %1135
      %1137 = vrot.lane.b32.xlu0 %v1064, 35
      %v1138 = vpop.permute.xlu0 %1137
      %1139 = vrot.lane.b32.xlu0 %v1065, 35
      %v1140 = vpop.permute.xlu0 %1139
      %1141 = vrot.lane.b32.xlu0 %v1066, 35
      %v1142 = vpop.permute.xlu0 %1141
      %1143 = vrot.lane.b32.xlu0 %v1067, 35
      %v1144 = vpop.permute.xlu0 %1143
      %1145 = vrot.lane.b32.xlu0 %v1068, 35
      %v1146 = vpop.permute.xlu0 %1145
      %1147 = vrot.lane.b32.xlu0 %v1069, 35
      %v1148 = vpop.permute.xlu0 %1147
      %1149 = vrot.lane.b32.xlu0 %v1070, 35
      %v1150 = vpop.permute.xlu0 %1149
      %1151 = vrot.lane.b32.xlu0 %v1071, 35
      %v1152 = vpop.permute.xlu0 %1151
      %1153 = vrot.lane.b32.xlu0 %v1072, 35
      %v1154 = vpop.permute.xlu0 %1153
      %1155 = vrot.lane.b32.xlu0 %v1073, 35
      %v1156 = vpop.permute.xlu0 %1155
      %1157 = vrot.lane.b32.xlu0 %v1074, 35
      %v1158 = vpop.permute.xlu0 %1157
      %1159 = vrot.lane.b32.xlu0 %v1075, 35
      %v1160 = vpop.permute.xlu0 %1159
      %1161 = vrot.lane.b32.xlu0 %v1076, 35
      %v1162 = vpop.permute.xlu0 %1161
      %1163 = vrot.lane.b32.xlu0 %v1077, 35
      %v1164 = vpop.permute.xlu0 %1163
      %1165 = vrot.lane.b32.xlu0 %v1078, 35
      %v1166 = vpop.permute.xlu0 %1165
      %1167 = vrot.lane.b32.xlu0 %v1079, 35
      %v1168 = vpop.permute.xlu0 %1167
      %1169 = vrot.lane.b32.xlu0 %v1080, 35
      %v1170 = vpop.permute.xlu0 %1169
      %1171 = vrot.lane.b32.xlu0 %v1081, 35
      %v1172 = vpop.permute.xlu0 %1171
      %1173 = vrot.lane.b32.xlu0 %v1082, 35
      %v1174 = vpop.permute.xlu0 %1173
      %1175 = vrot.lane.b32.xlu0 %v1083, 35
      %v1176 = vpop.permute.xlu0 %1175
      %1177 = vrot.lane.b32.xlu0 %v1084, 35
      %v1178 = vpop.permute.xlu0 %1177
      %1179 = vrot.lane.b32.xlu0 %v1085, 35
      %v1180 = vpop.permute.xlu0 %1179
      %1181 = vrot.lane.b32.xlu0 %v1086, 35
      %v1182 = vpop.permute.xlu0 %1181
      %1183 = vrot.lane.b32.xlu0 %v1087, 35
      %v1184 = vpop.permute.xlu0 %1183
      %1185 = vrot.lane.b32.xlu0 %v1088, 35
      %v1186 = vpop.permute.xlu0 %1185
      %1187 = vrot.lane.b32.xlu0 %v1089, 35
      %v1188 = vpop.permute.xlu0 %1187
      %1189 = vrot.lane.b32.xlu0 %v1090, 35
      %v1190 = vpop.permute.xlu0 %1189
      %1191 = vrot.lane.b32.xlu0 %v1091, 35
      %v1192 = vpop.permute.xlu0 %1191
      %1193 = vrot.lane.b32.xlu0 %v1092, 35
      %v1194 = vpop.permute.xlu0 %1193
      %1195 = vrot.lane.b32.xlu0 %v1093, 35
      %v1196 = vpop.permute.xlu0 %1195
      %1197 = vrot.lane.b32.xlu0 %v1094, 35
      %v1198 = vpop.permute.xlu0 %1197
      %1199 = vrot.lane.b32.xlu0 %v1095, 35
      %v1200 = vpop.permute.xlu0 %1199
      %1201 = vrot.lane.b32.xlu0 %v1096, 35
      %v1202 = vpop.permute.xlu0 %1201
      %1203 = vrot.lane.b32.xlu0 %v1097, 35
      %v1204 = vpop.permute.xlu0 %1203
      %1205 = vrot.lane.b32.xlu0 %v1098, 35
      %v1206 = vpop.permute.xlu0 %1205
      %vm1207 = vcmask 285696
      %v1208 = vsel %vm1207, %v1136, %v1138
      %v1209 = vsel %vm1207, %v1138, %v1140
      %v1210 = vsel %vm1207, %v1140, %v1142
      %v1211 = vsel %vm1207, %v1142, %v1144
      %v1212 = vsel %vm1207, %v1144, %v1146
      %v1213 = vsel %vm1207, %v1146, %v1148
      %v1214 = vsel %vm1207, %v1148, %v1150
      %v1215 = vsel %vm1207, %v1150, %v1152
      %v1216 = vsel %vm1207, %v1154, %v1156
      %v1217 = vsel %vm1207, %v1156, %v1158
      %v1218 = vsel %vm1207, %v1158, %v1160
      %v1219 = vsel %vm1207, %v1160, %v1162
      %v1220 = vsel %vm1207, %v1162, %v1164
      %v1221 = vsel %vm1207, %v1164, %v1166
      %v1222 = vsel %vm1207, %v1166, %v1168
      %v1223 = vsel %vm1207, %v1168, %v1170
      %v1224 = vsel %vm1207, %v1172, %v1174
      %v1225 = vsel %vm1207, %v1174, %v1176
      %v1226 = vsel %vm1207, %v1176, %v1178
      %v1227 = vsel %vm1207, %v1178, %v1180
      %v1228 = vsel %vm1207, %v1180, %v1182
      %v1229 = vsel %vm1207, %v1182, %v1184
      %v1230 = vsel %vm1207, %v1184, %v1186
      %v1231 = vsel %vm1207, %v1186, %v1188
      %v1232 = vsel %vm1207, %v1190, %v1192
      %v1233 = vsel %vm1207, %v1192, %v1194
      %v1234 = vsel %vm1207, %v1194, %v1196
      %v1235 = vsel %vm1207, %v1196, %v1198
      %v1236 = vsel %vm1207, %v1198, %v1200
      %v1237 = vsel %vm1207, %v1200, %v1202
      %v1238 = vsel %vm1207, %v1202, %v1204
      %v1239 = vsel %vm1207, %v1204, %v1206
      %v1276 = vsel %vm1207, 0.0, %v1136
      %v1277 = vsel %vm1207, 0.0, %v1154
      %v1278 = vsel %vm1207, 0.0, %v1172
      %v1279 = vsel %vm1207, 0.0, %v1190
      %vm1280 = vcmask 793600
      %v1281 = vsel %vm1280, %v1215, 0.0
      %v1282 = vsel %vm1280, %v1223, 0.0
      %v1283 = vsel %vm1280, %v1231, 0.0
      %v1284 = vsel %vm1280, %v1239, 0.0
      %v1285 = vpack.c.bf16 %v1208, %v1276
      %v1286 = vpack.c.bf16 %v1210, %v1209
      %v1287 = vpack.c.bf16 %v1212, %v1211
      %v1288 = vpack.c.bf16 %v1214, %v1213
      %v1289 = vpack.c.bf16 0.0, %v1281
      %v1290 = vpack.c.bf16 %v1216, %v1277
      %v1291 = vpack.c.bf16 %v1218, %v1217
      %v1292 = vpack.c.bf16 %v1220, %v1219
      %v1293 = vpack.c.bf16 %v1222, %v1221
      %v1294 = vpack.c.bf16 0.0, %v1282
      %v1295 = vpack.c.bf16 %v1224, %v1278
      %v1296 = vpack.c.bf16 %v1226, %v1225
      %v1297 = vpack.c.bf16 %v1228, %v1227
      %v1298 = vpack.c.bf16 %v1230, %v1229
      %v1299 = vpack.c.bf16 0.0, %v1283
      %v1300 = vpack.c.bf16 %v1232, %v1279
      %v1301 = vpack.c.bf16 %v1234, %v1233
      %v1302 = vpack.c.bf16 %v1236, %v1235
      %v1303 = vpack.c.bf16 %v1238, %v1237
      %v1304 = vpack.c.bf16 0.0, %v1284
      %v1325 = vunpack.c.l.b16 %v1285
      %v1326 = vunpack.c.h.b16 %v1285
      %v1327 = vunpack.c.l.b16 %v1286
      %v1328 = vunpack.c.h.b16 %v1286
      %v1329 = vunpack.c.l.b16 %v1287
      %v1330 = vunpack.c.h.b16 %v1287
      %v1331 = vunpack.c.l.b16 %v1288
      %v1332 = vunpack.c.h.b16 %v1288
      %v1333 = vunpack.c.l.b16 %v1289
      %v1334 = vunpack.c.l.b16 %v1290
      %v1335 = vunpack.c.h.b16 %v1290
      %v1336 = vunpack.c.l.b16 %v1291
      %v1337 = vunpack.c.h.b16 %v1291
      %v1338 = vunpack.c.l.b16 %v1292
      %v1339 = vunpack.c.h.b16 %v1292
      %v1340 = vunpack.c.l.b16 %v1293
      %v1341 = vunpack.c.h.b16 %v1293
      %v1342 = vunpack.c.l.b16 %v1294
      %v1343 = vunpack.c.l.b16 %v1295
      %v1344 = vunpack.c.h.b16 %v1295
      %v1345 = vunpack.c.l.b16 %v1296
      %v1346 = vunpack.c.h.b16 %v1296
      %v1347 = vunpack.c.l.b16 %v1297
      %v1348 = vunpack.c.h.b16 %v1297
      %v1349 = vunpack.c.l.b16 %v1298
      %v1350 = vunpack.c.h.b16 %v1298
      %v1351 = vunpack.c.l.b16 %v1299
      %v1352 = vunpack.c.l.b16 %v1300
      %v1353 = vunpack.c.h.b16 %v1300
      %v1354 = vunpack.c.l.b16 %v1301
      %v1355 = vunpack.c.h.b16 %v1301
      %v1356 = vunpack.c.l.b16 %v1302
      %v1357 = vunpack.c.h.b16 %v1302
      %v1358 = vunpack.c.l.b16 %v1303
      %v1359 = vunpack.c.h.b16 %v1303
      %v1360 = vunpack.c.l.b16 %v1304
      %v1361 = vpack.c.b16 %v1334, %v1325
      %v1362 = vpack.c.b16 %v1335, %v1326
      %v1363 = vpack.c.b16 %v1336, %v1327
      %v1364 = vpack.c.b16 %v1337, %v1328
      %v1365 = vpack.c.b16 %v1338, %v1329
      %v1366 = vpack.c.b16 %v1339, %v1330
      %v1367 = vpack.c.b16 %v1340, %v1331
      %v1368 = vpack.c.b16 %v1341, %v1332
      %v1369 = vpack.c.b16 %v1342, %v1333
      %v1370 = vpack.c.b16 %v1352, %v1343
      %v1371 = vpack.c.b16 %v1353, %v1344
      %v1372 = vpack.c.b16 %v1354, %v1345
      %v1373 = vpack.c.b16 %v1355, %v1346
      %v1374 = vpack.c.b16 %v1356, %v1347
      %v1375 = vpack.c.b16 %v1357, %v1348
      %v1376 = vpack.c.b16 %v1358, %v1349
      %v1377 = vpack.c.b16 %v1359, %v1350
      %v1378 = vpack.c.b16 %v1360, %v1351
      %1397 = vrot.lane.b32.xlu0 %v1361, 127
      %v1398 = vpop.permute.xlu0 %1397
      %1399 = vrot.lane.b32.xlu0 %v1362, 127
      %v1400 = vpop.permute.xlu0 %1399
      %1401 = vrot.lane.b32.xlu0 %v1363, 127
      %v1402 = vpop.permute.xlu0 %1401
      %1403 = vrot.lane.b32.xlu0 %v1364, 127
      %v1404 = vpop.permute.xlu0 %1403
      %1405 = vrot.lane.b32.xlu0 %v1365, 127
      %v1406 = vpop.permute.xlu0 %1405
      %1407 = vrot.lane.b32.xlu0 %v1366, 127
      %v1408 = vpop.permute.xlu0 %1407
      %1409 = vrot.lane.b32.xlu0 %v1367, 127
      %v1410 = vpop.permute.xlu0 %1409
      %1411 = vrot.lane.b32.xlu0 %v1368, 127
      %v1412 = vpop.permute.xlu0 %1411
      %1413 = vrot.lane.b32.xlu0 %v1369, 127
      %v1414 = vpop.permute.xlu0 %1413
      %1415 = vrot.lane.b32.xlu0 %v1370, 127
      %v1416 = vpop.permute.xlu0 %1415
      %1417 = vrot.lane.b32.xlu0 %v1371, 127
      %v1418 = vpop.permute.xlu0 %1417
      %1419 = vrot.lane.b32.xlu0 %v1372, 127
      %v1420 = vpop.permute.xlu0 %1419
      %1421 = vrot.lane.b32.xlu0 %v1373, 127
      %v1422 = vpop.permute.xlu0 %1421
      %1423 = vrot.lane.b32.xlu0 %v1374, 127
      %v1424 = vpop.permute.xlu0 %1423
      %1425 = vrot.lane.b32.xlu0 %v1375, 127
      %v1426 = vpop.permute.xlu0 %1425
      %1427 = vrot.lane.b32.xlu0 %v1376, 127
      %v1428 = vpop.permute.xlu0 %1427
      %1429 = vrot.lane.b32.xlu0 %v1377, 127
      %v1430 = vpop.permute.xlu0 %1429
      %1431 = vrot.lane.b32.xlu0 %v1378, 127
      %v1432 = vpop.permute.xlu0 %1431
      %vm1433 = vcmask 1039360
      %v1434 = vsel %vm1433, %v1398, %v1400
      %v1435 = vsel %vm1433, %v1400, %v1402
      %v1436 = vsel %vm1433, %v1402, %v1404
      %v1437 = vsel %vm1433, %v1404, %v1406
      %v1438 = vsel %vm1433, %v1406, %v1408
      %v1439 = vsel %vm1433, %v1408, %v1410
      %v1440 = vsel %vm1433, %v1410, %v1412
      %v1441 = vsel %vm1433, %v1412, %v1414
      %v1442 = vsel %vm1433, %v1416, %v1418
      %v1443 = vsel %vm1433, %v1418, %v1420
      %v1444 = vsel %vm1433, %v1420, %v1422
      %v1445 = vsel %vm1433, %v1422, %v1424
      %v1446 = vsel %vm1433, %v1424, %v1426
      %v1447 = vsel %vm1433, %v1426, %v1428
      %v1448 = vsel %vm1433, %v1428, %v1430
      %v1449 = vsel %vm1433, %v1430, %v1432
      %1468 = vrot.lane.b32.xlu0 %v1361, 126
      %v1469 = vpop.permute.xlu0 %1468
      %1470 = vrot.lane.b32.xlu0 %v1362, 126
      %v1471 = vpop.permute.xlu0 %1470
      %1472 = vrot.lane.b32.xlu0 %v1363, 126
      %v1473 = vpop.permute.xlu0 %1472
      %1474 = vrot.lane.b32.xlu0 %v1364, 126
      %v1475 = vpop.permute.xlu0 %1474
      %1476 = vrot.lane.b32.xlu0 %v1365, 126
      %v1477 = vpop.permute.xlu0 %1476
      %1478 = vrot.lane.b32.xlu0 %v1366, 126
      %v1479 = vpop.permute.xlu0 %1478
      %1480 = vrot.lane.b32.xlu0 %v1367, 126
      %v1481 = vpop.permute.xlu0 %1480
      %1482 = vrot.lane.b32.xlu0 %v1368, 126
      %v1483 = vpop.permute.xlu0 %1482
      %1484 = vrot.lane.b32.xlu0 %v1369, 126
      %v1485 = vpop.permute.xlu0 %1484
      %1486 = vrot.lane.b32.xlu0 %v1370, 126
      %v1487 = vpop.permute.xlu0 %1486
      %1488 = vrot.lane.b32.xlu0 %v1371, 126
      %v1489 = vpop.permute.xlu0 %1488
      %1490 = vrot.lane.b32.xlu0 %v1372, 126
      %v1491 = vpop.permute.xlu0 %1490
      %1492 = vrot.lane.b32.xlu0 %v1373, 126
      %v1493 = vpop.permute.xlu0 %1492
      %1494 = vrot.lane.b32.xlu0 %v1374, 126
      %v1495 = vpop.permute.xlu0 %1494
      %1496 = vrot.lane.b32.xlu0 %v1375, 126
      %v1497 = vpop.permute.xlu0 %1496
      %1498 = vrot.lane.b32.xlu0 %v1376, 126
      %v1499 = vpop.permute.xlu0 %1498
      %1500 = vrot.lane.b32.xlu0 %v1377, 126
      %v1501 = vpop.permute.xlu0 %1500
      %1502 = vrot.lane.b32.xlu0 %v1378, 126
      %v1503 = vpop.permute.xlu0 %1502
      %vm1504 = vcmask 1031168
      %v1505 = vsel %vm1504, %v1469, %v1471
      %v1506 = vsel %vm1504, %v1471, %v1473
      %v1507 = vsel %vm1504, %v1473, %v1475
      %v1508 = vsel %vm1504, %v1475, %v1477
      %v1509 = vsel %vm1504, %v1477, %v1479
      %v1510 = vsel %vm1504, %v1479, %v1481
      %v1511 = vsel %vm1504, %v1481, %v1483
      %v1512 = vsel %vm1504, %v1483, %v1485
      %v1513 = vsel %vm1504, %v1487, %v1489
      %v1514 = vsel %vm1504, %v1489, %v1491
      %v1515 = vsel %vm1504, %v1491, %v1493
      %v1516 = vsel %vm1504, %v1493, %v1495
      %v1517 = vsel %vm1504, %v1495, %v1497
      %v1518 = vsel %vm1504, %v1497, %v1499
      %v1519 = vsel %vm1504, %v1499, %v1501
      %v1520 = vsel %vm1504, %v1501, %v1503
      %1539 = vrot.lane.b32.xlu0 %v1361, 94
      %v1540 = vpop.permute.xlu0 %1539
      %1541 = vrot.lane.b32.xlu0 %v1362, 94
      %v1542 = vpop.permute.xlu0 %1541
      %1543 = vrot.lane.b32.xlu0 %v1363, 94
      %v1544 = vpop.permute.xlu0 %1543
      %1545 = vrot.lane.b32.xlu0 %v1364, 94
      %v1546 = vpop.permute.xlu0 %1545
      %1547 = vrot.lane.b32.xlu0 %v1365, 94
      %v1548 = vpop.permute.xlu0 %1547
      %1549 = vrot.lane.b32.xlu0 %v1366, 94
      %v1550 = vpop.permute.xlu0 %1549
      %1551 = vrot.lane.b32.xlu0 %v1367, 94
      %v1552 = vpop.permute.xlu0 %1551
      %1553 = vrot.lane.b32.xlu0 %v1368, 94
      %v1554 = vpop.permute.xlu0 %1553
      %1555 = vrot.lane.b32.xlu0 %v1369, 94
      %v1556 = vpop.permute.xlu0 %1555
      %1557 = vrot.lane.b32.xlu0 %v1370, 94
      %v1558 = vpop.permute.xlu0 %1557
      %1559 = vrot.lane.b32.xlu0 %v1371, 94
      %v1560 = vpop.permute.xlu0 %1559
      %1561 = vrot.lane.b32.xlu0 %v1372, 94
      %v1562 = vpop.permute.xlu0 %1561
      %1563 = vrot.lane.b32.xlu0 %v1373, 94
      %v1564 = vpop.permute.xlu0 %1563
      %1565 = vrot.lane.b32.xlu0 %v1374, 94
      %v1566 = vpop.permute.xlu0 %1565
      %1567 = vrot.lane.b32.xlu0 %v1375, 94
      %v1568 = vpop.permute.xlu0 %1567
      %1569 = vrot.lane.b32.xlu0 %v1376, 94
      %v1570 = vpop.permute.xlu0 %1569
      %1571 = vrot.lane.b32.xlu0 %v1377, 94
      %v1572 = vpop.permute.xlu0 %1571
      %1573 = vrot.lane.b32.xlu0 %v1378, 94
      %v1574 = vpop.permute.xlu0 %1573
      %vm1575 = vcmask 769024
      %v1576 = vsel %vm1575, %v1540, %v1542
      %v1577 = vsel %vm1575, %v1542, %v1544
      %v1578 = vsel %vm1575, %v1544, %v1546
      %v1579 = vsel %vm1575, %v1546, %v1548
      %v1580 = vsel %vm1575, %v1548, %v1550
      %v1581 = vsel %vm1575, %v1550, %v1552
      %v1582 = vsel %vm1575, %v1552, %v1554
      %v1583 = vsel %vm1575, %v1554, %v1556
      %v1584 = vsel %vm1575, %v1558, %v1560
      %v1585 = vsel %vm1575, %v1560, %v1562
      %v1586 = vsel %vm1575, %v1562, %v1564
      %v1587 = vsel %vm1575, %v1564, %v1566
      %v1588 = vsel %vm1575, %v1566, %v1568
      %v1589 = vsel %vm1575, %v1568, %v1570
      %v1590 = vsel %vm1575, %v1570, %v1572
      %v1591 = vsel %vm1575, %v1572, %v1574
      %1610 = vrot.lane.b32.xlu0 %v1361, 93
      %v1611 = vpop.permute.xlu0 %1610
      %1612 = vrot.lane.b32.xlu0 %v1362, 93
      %v1613 = vpop.permute.xlu0 %1612
      %1614 = vrot.lane.b32.xlu0 %v1363, 93
      %v1615 = vpop.permute.xlu0 %1614
      %1616 = vrot.lane.b32.xlu0 %v1364, 93
      %v1617 = vpop.permute.xlu0 %1616
      %1618 = vrot.lane.b32.xlu0 %v1365, 93
      %v1619 = vpop.permute.xlu0 %1618
      %1620 = vrot.lane.b32.xlu0 %v1366, 93
      %v1621 = vpop.permute.xlu0 %1620
      %1622 = vrot.lane.b32.xlu0 %v1367, 93
      %v1623 = vpop.permute.xlu0 %1622
      %1624 = vrot.lane.b32.xlu0 %v1368, 93
      %v1625 = vpop.permute.xlu0 %1624
      %1626 = vrot.lane.b32.xlu0 %v1369, 93
      %v1627 = vpop.permute.xlu0 %1626
      %1628 = vrot.lane.b32.xlu0 %v1370, 93
      %v1629 = vpop.permute.xlu0 %1628
      %1630 = vrot.lane.b32.xlu0 %v1371, 93
      %v1631 = vpop.permute.xlu0 %1630
      %1632 = vrot.lane.b32.xlu0 %v1372, 93
      %v1633 = vpop.permute.xlu0 %1632
      %1634 = vrot.lane.b32.xlu0 %v1373, 93
      %v1635 = vpop.permute.xlu0 %1634
      %1636 = vrot.lane.b32.xlu0 %v1374, 93
      %v1637 = vpop.permute.xlu0 %1636
      %1638 = vrot.lane.b32.xlu0 %v1375, 93
      %v1639 = vpop.permute.xlu0 %1638
      %1640 = vrot.lane.b32.xlu0 %v1376, 93
      %v1641 = vpop.permute.xlu0 %1640
      %1642 = vrot.lane.b32.xlu0 %v1377, 93
      %v1643 = vpop.permute.xlu0 %1642
      %1644 = vrot.lane.b32.xlu0 %v1378, 93
      %v1645 = vpop.permute.xlu0 %1644
      %vm1646 = vcmask 760832
      %v1647 = vsel %vm1646, %v1611, %v1613
      %v1648 = vsel %vm1646, %v1613, %v1615
      %v1649 = vsel %vm1646, %v1615, %v1617
      %v1650 = vsel %vm1646, %v1617, %v1619
      %v1651 = vsel %vm1646, %v1619, %v1621
      %v1652 = vsel %vm1646, %v1621, %v1623
      %v1653 = vsel %vm1646, %v1623, %v1625
      %v1654 = vsel %vm1646, %v1625, %v1627
      %v1655 = vsel %vm1646, %v1629, %v1631
      %v1656 = vsel %vm1646, %v1631, %v1633
      %v1657 = vsel %vm1646, %v1633, %v1635
      %v1658 = vsel %vm1646, %v1635, %v1637
      %v1659 = vsel %vm1646, %v1637, %v1639
      %v1660 = vsel %vm1646, %v1639, %v1641
      %v1661 = vsel %vm1646, %v1641, %v1643
      %v1662 = vsel %vm1646, %v1643, %v1645
      %1681 = vrot.lane.b32.xlu0 %v1361, 92
      %v1682 = vpop.permute.xlu0 %1681
      %1683 = vrot.lane.b32.xlu0 %v1362, 92
      %v1684 = vpop.permute.xlu0 %1683
      %1685 = vrot.lane.b32.xlu0 %v1363, 92
      %v1686 = vpop.permute.xlu0 %1685
      %1687 = vrot.lane.b32.xlu0 %v1364, 92
      %v1688 = vpop.permute.xlu0 %1687
      %1689 = vrot.lane.b32.xlu0 %v1365, 92
      %v1690 = vpop.permute.xlu0 %1689
      %1691 = vrot.lane.b32.xlu0 %v1366, 92
      %v1692 = vpop.permute.xlu0 %1691
      %1693 = vrot.lane.b32.xlu0 %v1367, 92
      %v1694 = vpop.permute.xlu0 %1693
      %1695 = vrot.lane.b32.xlu0 %v1368, 92
      %v1696 = vpop.permute.xlu0 %1695
      %1697 = vrot.lane.b32.xlu0 %v1369, 92
      %v1698 = vpop.permute.xlu0 %1697
      %1699 = vrot.lane.b32.xlu0 %v1370, 92
      %v1700 = vpop.permute.xlu0 %1699
      %1701 = vrot.lane.b32.xlu0 %v1371, 92
      %v1702 = vpop.permute.xlu0 %1701
      %1703 = vrot.lane.b32.xlu0 %v1372, 92
      %v1704 = vpop.permute.xlu0 %1703
      %1705 = vrot.lane.b32.xlu0 %v1373, 92
      %v1706 = vpop.permute.xlu0 %1705
      %1707 = vrot.lane.b32.xlu0 %v1374, 92
      %v1708 = vpop.permute.xlu0 %1707
      %1709 = vrot.lane.b32.xlu0 %v1375, 92
      %v1710 = vpop.permute.xlu0 %1709
      %1711 = vrot.lane.b32.xlu0 %v1376, 92
      %v1712 = vpop.permute.xlu0 %1711
      %1713 = vrot.lane.b32.xlu0 %v1377, 92
      %v1714 = vpop.permute.xlu0 %1713
      %1715 = vrot.lane.b32.xlu0 %v1378, 92
      %v1716 = vpop.permute.xlu0 %1715
      %vm1717 = vcmask 752640
      %v1718 = vsel %vm1717, %v1682, %v1684
      %v1719 = vsel %vm1717, %v1684, %v1686
      %v1720 = vsel %vm1717, %v1686, %v1688
      %v1721 = vsel %vm1717, %v1688, %v1690
      %v1722 = vsel %vm1717, %v1690, %v1692
      %v1723 = vsel %vm1717, %v1692, %v1694
      %v1724 = vsel %vm1717, %v1694, %v1696
      %v1725 = vsel %vm1717, %v1696, %v1698
      %v1726 = vsel %vm1717, %v1700, %v1702
      %v1727 = vsel %vm1717, %v1702, %v1704
      %v1728 = vsel %vm1717, %v1704, %v1706
      %v1729 = vsel %vm1717, %v1706, %v1708
      %v1730 = vsel %vm1717, %v1708, %v1710
      %v1731 = vsel %vm1717, %v1710, %v1712
      %v1732 = vsel %vm1717, %v1712, %v1714
      %v1733 = vsel %vm1717, %v1714, %v1716
      %v1752 = vunpack.c.h.b16 %v1289
      %v1753 = vunpack.c.h.b16 %v1294
      %v1754 = vunpack.c.h.b16 %v1299
      %v1755 = vunpack.c.h.b16 %v1304
      %v1756 = vpack.c.b16 %v1753, %v1752
      %v1757 = vpack.c.b16 %v1755, %v1754
      %1758 = vrot.lane.b32.xlu0 %v1361, 60
      %v1759 = vpop.permute.xlu0 %1758
      %1760 = vrot.lane.b32.xlu0 %v1362, 60
      %v1761 = vpop.permute.xlu0 %1760
      %1762 = vrot.lane.b32.xlu0 %v1363, 60
      %v1763 = vpop.permute.xlu0 %1762
      %1764 = vrot.lane.b32.xlu0 %v1364, 60
      %v1765 = vpop.permute.xlu0 %1764
      %1766 = vrot.lane.b32.xlu0 %v1365, 60
      %v1767 = vpop.permute.xlu0 %1766
      %1768 = vrot.lane.b32.xlu0 %v1366, 60
      %v1769 = vpop.permute.xlu0 %1768
      %1770 = vrot.lane.b32.xlu0 %v1367, 60
      %v1771 = vpop.permute.xlu0 %1770
      %1772 = vrot.lane.b32.xlu0 %v1368, 60
      %v1773 = vpop.permute.xlu0 %1772
      %1774 = vrot.lane.b32.xlu0 %v1369, 60
      %v1775 = vpop.permute.xlu0 %1774
      %1776 = vrot.lane.b32.xlu0 %v1756, 60
      %v1777 = vpop.permute.xlu0 %1776
      %1778 = vrot.lane.b32.xlu0 %v1370, 60
      %v1779 = vpop.permute.xlu0 %1778
      %1780 = vrot.lane.b32.xlu0 %v1371, 60
      %v1781 = vpop.permute.xlu0 %1780
      %1782 = vrot.lane.b32.xlu0 %v1372, 60
      %v1783 = vpop.permute.xlu0 %1782
      %1784 = vrot.lane.b32.xlu0 %v1373, 60
      %v1785 = vpop.permute.xlu0 %1784
      %1786 = vrot.lane.b32.xlu0 %v1374, 60
      %v1787 = vpop.permute.xlu0 %1786
      %1788 = vrot.lane.b32.xlu0 %v1375, 60
      %v1789 = vpop.permute.xlu0 %1788
      %1790 = vrot.lane.b32.xlu0 %v1376, 60
      %v1791 = vpop.permute.xlu0 %1790
      %1792 = vrot.lane.b32.xlu0 %v1377, 60
      %v1793 = vpop.permute.xlu0 %1792
      %1794 = vrot.lane.b32.xlu0 %v1378, 60
      %v1795 = vpop.permute.xlu0 %1794
      %1796 = vrot.lane.b32.xlu0 %v1757, 60
      %v1797 = vpop.permute.xlu0 %1796
      %vm1798 = vcmask 490496
      %v1799 = vsel %vm1798, %v1759, %v1761
      %v1800 = vsel %vm1798, %v1761, %v1763
      %v1801 = vsel %vm1798, %v1763, %v1765
      %v1802 = vsel %vm1798, %v1765, %v1767
      %v1803 = vsel %vm1798, %v1767, %v1769
      %v1804 = vsel %vm1798, %v1769, %v1771
      %v1805 = vsel %vm1798, %v1771, %v1773
      %v1806 = vsel %vm1798, %v1773, %v1775
      %v1807 = vsel %vm1798, %v1775, %v1777
      %v1808 = vsel %vm1798, %v1779, %v1781
      %v1809 = vsel %vm1798, %v1781, %v1783
      %v1810 = vsel %vm1798, %v1783, %v1785
      %v1811 = vsel %vm1798, %v1785, %v1787
      %v1812 = vsel %vm1798, %v1787, %v1789
      %v1813 = vsel %vm1798, %v1789, %v1791
      %v1814 = vsel %vm1798, %v1791, %v1793
      %v1815 = vsel %vm1798, %v1793, %v1795
      %v1816 = vsel %vm1798, %v1795, %v1797
      %1835 = vrot.lane.b32.xlu0 %v1361, 59
      %v1836 = vpop.permute.xlu0 %1835
      %1837 = vrot.lane.b32.xlu0 %v1362, 59
      %v1838 = vpop.permute.xlu0 %1837
      %1839 = vrot.lane.b32.xlu0 %v1363, 59
      %v1840 = vpop.permute.xlu0 %1839
      %1841 = vrot.lane.b32.xlu0 %v1364, 59
      %v1842 = vpop.permute.xlu0 %1841
      %1843 = vrot.lane.b32.xlu0 %v1365, 59
      %v1844 = vpop.permute.xlu0 %1843
      %1845 = vrot.lane.b32.xlu0 %v1366, 59
      %v1846 = vpop.permute.xlu0 %1845
      %1847 = vrot.lane.b32.xlu0 %v1367, 59
      %v1848 = vpop.permute.xlu0 %1847
      %1849 = vrot.lane.b32.xlu0 %v1368, 59
      %v1850 = vpop.permute.xlu0 %1849
      %1851 = vrot.lane.b32.xlu0 %v1369, 59
      %v1852 = vpop.permute.xlu0 %1851
      %1853 = vrot.lane.b32.xlu0 %v1756, 59
      %v1854 = vpop.permute.xlu0 %1853
      %1855 = vrot.lane.b32.xlu0 %v1370, 59
      %v1856 = vpop.permute.xlu0 %1855
      %1857 = vrot.lane.b32.xlu0 %v1371, 59
      %v1858 = vpop.permute.xlu0 %1857
      %1859 = vrot.lane.b32.xlu0 %v1372, 59
      %v1860 = vpop.permute.xlu0 %1859
      %1861 = vrot.lane.b32.xlu0 %v1373, 59
      %v1862 = vpop.permute.xlu0 %1861
      %1863 = vrot.lane.b32.xlu0 %v1374, 59
      %v1864 = vpop.permute.xlu0 %1863
      %1865 = vrot.lane.b32.xlu0 %v1375, 59
      %v1866 = vpop.permute.xlu0 %1865
      %1867 = vrot.lane.b32.xlu0 %v1376, 59
      %v1868 = vpop.permute.xlu0 %1867
      %1869 = vrot.lane.b32.xlu0 %v1377, 59
      %v1870 = vpop.permute.xlu0 %1869
      %1871 = vrot.lane.b32.xlu0 %v1378, 59
      %v1872 = vpop.permute.xlu0 %1871
      %1873 = vrot.lane.b32.xlu0 %v1757, 59
      %v1874 = vpop.permute.xlu0 %1873
      %vm1875 = vcmask 482304
      %v1876 = vsel %vm1875, %v1836, %v1838
      %v1877 = vsel %vm1875, %v1838, %v1840
      %v1878 = vsel %vm1875, %v1840, %v1842
      %v1879 = vsel %vm1875, %v1842, %v1844
      %v1880 = vsel %vm1875, %v1844, %v1846
      %v1881 = vsel %vm1875, %v1846, %v1848
      %v1882 = vsel %vm1875, %v1848, %v1850
      %v1883 = vsel %vm1875, %v1850, %v1852
      %v1884 = vsel %vm1875, %v1852, %v1854
      %v1885 = vsel %vm1875, %v1856, %v1858
      %v1886 = vsel %vm1875, %v1858, %v1860
      %v1887 = vsel %vm1875, %v1860, %v1862
      %v1888 = vsel %vm1875, %v1862, %v1864
      %v1889 = vsel %vm1875, %v1864, %v1866
      %v1890 = vsel %vm1875, %v1866, %v1868
      %v1891 = vsel %vm1875, %v1868, %v1870
      %v1892 = vsel %vm1875, %v1870, %v1872
      %v1893 = vsel %vm1875, %v1872, %v1874
      %1912 = vrot.lane.b32.xlu0 %v1361, 58
      %v1913 = vpop.permute.xlu0 %1912
      %1914 = vrot.lane.b32.xlu0 %v1362, 58
      %v1915 = vpop.permute.xlu0 %1914
      %1916 = vrot.lane.b32.xlu0 %v1363, 58
      %v1917 = vpop.permute.xlu0 %1916
      %1918 = vrot.lane.b32.xlu0 %v1364, 58
      %v1919 = vpop.permute.xlu0 %1918
      %1920 = vrot.lane.b32.xlu0 %v1365, 58
      %v1921 = vpop.permute.xlu0 %1920
      %1922 = vrot.lane.b32.xlu0 %v1366, 58
      %v1923 = vpop.permute.xlu0 %1922
      %1924 = vrot.lane.b32.xlu0 %v1367, 58
      %v1925 = vpop.permute.xlu0 %1924
      %1926 = vrot.lane.b32.xlu0 %v1368, 58
      %v1927 = vpop.permute.xlu0 %1926
      %1928 = vrot.lane.b32.xlu0 %v1369, 58
      %v1929 = vpop.permute.xlu0 %1928
      %1930 = vrot.lane.b32.xlu0 %v1756, 58
      %v1931 = vpop.permute.xlu0 %1930
      %1932 = vrot.lane.b32.xlu0 %v1370, 58
      %v1933 = vpop.permute.xlu0 %1932
      %1934 = vrot.lane.b32.xlu0 %v1371, 58
      %v1935 = vpop.permute.xlu0 %1934
      %1936 = vrot.lane.b32.xlu0 %v1372, 58
      %v1937 = vpop.permute.xlu0 %1936
      %1938 = vrot.lane.b32.xlu0 %v1373, 58
      %v1939 = vpop.permute.xlu0 %1938
      %1940 = vrot.lane.b32.xlu0 %v1374, 58
      %v1941 = vpop.permute.xlu0 %1940
      %1942 = vrot.lane.b32.xlu0 %v1375, 58
      %v1943 = vpop.permute.xlu0 %1942
      %1944 = vrot.lane.b32.xlu0 %v1376, 58
      %v1945 = vpop.permute.xlu0 %1944
      %1946 = vrot.lane.b32.xlu0 %v1377, 58
      %v1947 = vpop.permute.xlu0 %1946
      %1948 = vrot.lane.b32.xlu0 %v1378, 58
      %v1949 = vpop.permute.xlu0 %1948
      %1950 = vrot.lane.b32.xlu0 %v1757, 58
      %v1951 = vpop.permute.xlu0 %1950
      %vm1952 = vcmask 474112
      %v1953 = vsel %vm1952, %v1913, %v1915
      %v1954 = vsel %vm1952, %v1915, %v1917
      %v1955 = vsel %vm1952, %v1917, %v1919
      %v1956 = vsel %vm1952, %v1919, %v1921
      %v1957 = vsel %vm1952, %v1921, %v1923
      %v1958 = vsel %vm1952, %v1923, %v1925
      %v1959 = vsel %vm1952, %v1925, %v1927
      %v1960 = vsel %vm1952, %v1927, %v1929
      %v1961 = vsel %vm1952, %v1929, %v1931
      %v1962 = vsel %vm1952, %v1933, %v1935
      %v1963 = vsel %vm1952, %v1935, %v1937
      %v1964 = vsel %vm1952, %v1937, %v1939
      %v1965 = vsel %vm1952, %v1939, %v1941
      %v1966 = vsel %vm1952, %v1941, %v1943
      %v1967 = vsel %vm1952, %v1943, %v1945
      %v1968 = vsel %vm1952, %v1945, %v1947
      %v1969 = vsel %vm1952, %v1947, %v1949
      %v1970 = vsel %vm1952, %v1949, %v1951
      %v1989 = vld [vmem:[%s4] sm:$0xff]
      %v1990 = vld [vmem:[%s4 + $0x8] sm:$0xf]
      %v1991 = vld [vmem:[%s4 + $0xc] sm:$0xff]
      %v1992 = vld [vmem:[%s4 + $0x14] sm:$0xf]
      %v1993 = vld [vmem:[%s4 + $0x18] sm:$0xff]
      %v1994 = vld [vmem:[%s4 + $0x20] sm:$0xf]
      %v1995 = vld [vmem:[%s4 + $0x24] sm:$0xff]
      %v1996 = vld [vmem:[%s4 + $0x2c] sm:$0xf]
      %v1997 = vld [vmem:[%s5] sm:$0xff]
      %v1998 = vld [vmem:[%s5 + $0x8] sm:$0xff]
      %v1999 = vld [vmem:[%s5 + $0x10] sm:$0xff]
      %v2000 = vld [vmem:[%s5 + $0x18] sm:$0xff]
      %2002 = vset.pattern.permute.xlu0 0
      %2003 = vperm.xlu0 %2002, %v1997
      %v2004 = vpop.permute.xlu0 %2003
      %2007 = vset.pattern.permute.xlu0 0
      %2008 = vperm.xlu0 %2007, %v1998
      %v2009 = vpop.permute.xlu0 %2008
      %2012 = vset.pattern.permute.xlu0 0
      %2013 = vperm.xlu0 %2012, %v1999
      %v2014 = vpop.permute.xlu0 %2013
      %2017 = vset.pattern.permute.xlu0 0
      %2018 = vperm.xlu0 %2017, %v2000
      %v2019 = vpop.permute.xlu0 %2018
      %v2029 = vunpack.c.l.b16 %v1989
      %v2030 = vunpack.c.h.b16 %v1989
      %v2031 = vunpack.c.l.b16 %v1990
      %v2032 = vunpack.c.l.b16 %v1991
      %v2033 = vunpack.c.h.b16 %v1991
      %v2034 = vunpack.c.l.b16 %v1992
      %v2035 = vunpack.c.l.b16 %v1993
      %v2036 = vunpack.c.h.b16 %v1993
      %v2037 = vunpack.c.l.b16 %v1994
      %v2038 = vunpack.c.l.b16 %v1995
      %v2039 = vunpack.c.h.b16 %v1995
      %v2040 = vunpack.c.l.b16 %v1996
      %v2041 = vpack.c.b16 %v2032, %v2029
      %v2042 = vpack.c.b16 %v2033, %v2030
      %v2043 = vpack.c.b16 %v2034, %v2031
      %v2044 = vpack.c.b16 %v2038, %v2035
      %v2045 = vpack.c.b16 %v2039, %v2036
      %v2046 = vpack.c.b16 %v2040, %v2037
      %vm2051 = vcmask 261120
      %v2053 = vsel %vm2051, %v2043, 0
      %v2056 = vsel %vm2051, %v2046, 0
      %2058 = vmatpush.bf16.msra.mxu0 %v1584
      %2059 = vmatpush.bf16.msra.mxu0 %v1576
      %2060 = vmatpush.bf16.msra.mxu0 %v1513
      %2061 = vmatpush.bf16.msra.mxu0 %v1505
      %2062 = vmatpush.bf16.msra.mxu0 %v1442
      %2063 = vmatpush.bf16.msra.mxu0 %v1434
      %2064 = vmatpush.bf16.msra.mxu0 %v1370
      %2065 = vmatpush.bf16.msra.mxu0 %v1361
      %2066 = vmatmul.bf16.gmra.mxu0 %v2041
      %v2067 = vpop.f32.mrf.mxu0
      %v2068 = vadd.f32 %v2004, %v2067
      %v2069 = vpop.f32.mrf.mxu0
      %v2070 = vadd.f32 %v2009, %v2069
      %2071 = vmatmul.bf16.gmra.mxu0 %v2044
      %v2072 = vpop.f32.mrf.mxu0
      %v2073 = vadd.f32 %v2014, %v2072
      %v2074 = vpop.f32.mrf.mxu0
      %v2075 = vadd.f32 %v2019, %v2074
      %2076 = vdwg.mxu0
      %2077 = vmatpush.bf16.msra.mxu0 %v1885
      %2078 = vmatpush.bf16.msra.mxu0 %v1876
      %2079 = vmatpush.bf16.msra.mxu0 %v1808
      %2080 = vmatpush.bf16.msra.mxu0 %v1799
      %2081 = vmatpush.bf16.msra.mxu0 %v1726
      %2082 = vmatpush.bf16.msra.mxu0 %v1718
      %2083 = vmatpush.bf16.msra.mxu0 %v1655
      %2084 = vmatpush.bf16.msra.mxu0 %v1647
      %2085 = vmatmul.bf16.gmra.mxu0 %v2042
      %v2086 = vpop.f32.mrf.mxu0
      %v2087 = vadd.f32 %v2068, %v2086
      %v2088 = vpop.f32.mrf.mxu0
      %v2089 = vadd.f32 %v2070, %v2088
      %2090 = vmatmul.bf16.gmra.mxu0 %v2045
      %v2091 = vpop.f32.mrf.mxu0
      %v2092 = vadd.f32 %v2073, %v2091
      %v2093 = vpop.f32.mrf.mxu0
      %v2094 = vadd.f32 %v2075, %v2093
      %2095 = vdwg.mxu0
      %2096 = vmatpush.bf16.msra.mxu0 0
      %2097 = vmatpush.bf16.msra.mxu0 0
      %2098 = vmatpush.bf16.msra.mxu0 0
      %2099 = vmatpush.bf16.msra.mxu0 0
      %2100 = vmatpush.bf16.msra.mxu0 0
      %2101 = vmatpush.bf16.msra.mxu0 0
      %2102 = vmatpush.bf16.msra.mxu0 %v1962
      %2103 = vmatpush.bf16.msra.mxu0 %v1953
      %2104 = vmatmul.bf16.gmra.mxu0 %v2053
      %v2105 = vpop.f32.mrf.mxu0
      %v2106 = vadd.f32 %v2087, %v2105
      %v2107 = vpop.f32.mrf.mxu0
      %v2108 = vadd.f32 %v2089, %v2107
      %2109 = vmatmul.bf16.gmra.mxu0 %v2056
      %v2110 = vpop.f32.mrf.mxu0
      %v2111 = vadd.f32 %v2092, %v2110
      %v2112 = vpop.f32.mrf.mxu0
      %v2113 = vadd.f32 %v2094, %v2112
      %2114 = vdwg.mxu0
      %2115 = vmatpush.bf16.msra.mxu0 %v1585
      %2116 = vmatpush.bf16.msra.mxu0 %v1577
      %2117 = vmatpush.bf16.msra.mxu0 %v1514
      %2118 = vmatpush.bf16.msra.mxu0 %v1506
      %2119 = vmatpush.bf16.msra.mxu0 %v1443
      %2120 = vmatpush.bf16.msra.mxu0 %v1435
      %2121 = vmatpush.bf16.msra.mxu0 %v1371
      %2122 = vmatpush.bf16.msra.mxu0 %v1362
      %2123 = vmatmul.bf16.gmra.mxu0 %v2041
      %v2124 = vpop.f32.mrf.mxu0
      %v2125 = vadd.f32 %v2004, %v2124
      %v2126 = vpop.f32.mrf.mxu0
      %v2127 = vadd.f32 %v2009, %v2126
      %2128 = vmatmul.bf16.gmra.mxu0 %v2044
      %v2129 = vpop.f32.mrf.mxu0
      %v2130 = vadd.f32 %v2014, %v2129
      %v2131 = vpop.f32.mrf.mxu0
      %v2132 = vadd.f32 %v2019, %v2131
      %2133 = vdwg.mxu0
      %2134 = vmatpush.bf16.msra.mxu0 %v1886
      %2135 = vmatpush.bf16.msra.mxu0 %v1877
      %2136 = vmatpush.bf16.msra.mxu0 %v1809
      %2137 = vmatpush.bf16.msra.mxu0 %v1800
      %2138 = vmatpush.bf16.msra.mxu0 %v1727
      %2139 = vmatpush.bf16.msra.mxu0 %v1719
      %2140 = vmatpush.bf16.msra.mxu0 %v1656
      %2141 = vmatpush.bf16.msra.mxu0 %v1648
      %2142 = vmatmul.bf16.gmra.mxu0 %v2042
      %v2143 = vpop.f32.mrf.mxu0
      %v2144 = vadd.f32 %v2125, %v2143
      %v2145 = vpop.f32.mrf.mxu0
      %v2146 = vadd.f32 %v2127, %v2145
      %2147 = vmatmul.bf16.gmra.mxu0 %v2045
      %v2148 = vpop.f32.mrf.mxu0
      %v2149 = vadd.f32 %v2130, %v2148
      %v2150 = vpop.f32.mrf.mxu0
      %v2151 = vadd.f32 %v2132, %v2150
      %2152 = vdwg.mxu0
      %2153 = vmatpush.bf16.msra.mxu0 0
      %2154 = vmatpush.bf16.msra.mxu0 0
      %2155 = vmatpush.bf16.msra.mxu0 0
      %2156 = vmatpush.bf16.msra.mxu0 0
      %2157 = vmatpush.bf16.msra.mxu0 0
      %2158 = vmatpush.bf16.msra.mxu0 0
      %2159 = vmatpush.bf16.msra.mxu0 %v1963
      %2160 = vmatpush.bf16.msra.mxu0 %v1954
      %2161 = vmatmul.bf16.gmra.mxu0 %v2053
      %v2162 = vpop.f32.mrf.mxu0
      %v2163 = vadd.f32 %v2144, %v2162
      %v2164 = vpop.f32.mrf.mxu0
      %v2165 = vadd.f32 %v2146, %v2164
      %2166 = vmatmul.bf16.gmra.mxu0 %v2056
      %v2167 = vpop.f32.mrf.mxu0
      %v2168 = vadd.f32 %v2149, %v2167
      %v2169 = vpop.f32.mrf.mxu0
      %v2170 = vadd.f32 %v2151, %v2169
      %2171 = vdwg.mxu0
      %2172 = vmatpush.bf16.msra.mxu0 %v1586
      %2173 = vmatpush.bf16.msra.mxu0 %v1578
      %2174 = vmatpush.bf16.msra.mxu0 %v1515
      %2175 = vmatpush.bf16.msra.mxu0 %v1507
      %2176 = vmatpush.bf16.msra.mxu0 %v1444
      %2177 = vmatpush.bf16.msra.mxu0 %v1436
      %2178 = vmatpush.bf16.msra.mxu0 %v1372
      %2179 = vmatpush.bf16.msra.mxu0 %v1363
      %2180 = vmatmul.bf16.gmra.mxu0 %v2041
      %v2181 = vpop.f32.mrf.mxu0
      %v2182 = vadd.f32 %v2004, %v2181
      %v2183 = vpop.f32.mrf.mxu0
      %v2184 = vadd.f32 %v2009, %v2183
      %2185 = vmatmul.bf16.gmra.mxu0 %v2044
      %v2186 = vpop.f32.mrf.mxu0
      %v2187 = vadd.f32 %v2014, %v2186
      %v2188 = vpop.f32.mrf.mxu0
      %v2189 = vadd.f32 %v2019, %v2188
      %2190 = vdwg.mxu0
      %2191 = vmatpush.bf16.msra.mxu0 %v1887
      %2192 = vmatpush.bf16.msra.mxu0 %v1878
      %2193 = vmatpush.bf16.msra.mxu0 %v1810
      %2194 = vmatpush.bf16.msra.mxu0 %v1801
      %2195 = vmatpush.bf16.msra.mxu0 %v1728
      %2196 = vmatpush.bf16.msra.mxu0 %v1720
      %2197 = vmatpush.bf16.msra.mxu0 %v1657
      %2198 = vmatpush.bf16.msra.mxu0 %v1649
      %2199 = vmatmul.bf16.gmra.mxu0 %v2042
      %v2200 = vpop.f32.mrf.mxu0
      %v2201 = vadd.f32 %v2182, %v2200
      %v2202 = vpop.f32.mrf.mxu0
      %v2203 = vadd.f32 %v2184, %v2202
      %2204 = vmatmul.bf16.gmra.mxu0 %v2045
      %v2205 = vpop.f32.mrf.mxu0
      %v2206 = vadd.f32 %v2187, %v2205
      %v2207 = vpop.f32.mrf.mxu0
      %v2208 = vadd.f32 %v2189, %v2207
      %2209 = vdwg.mxu0
      %2210 = vmatpush.bf16.msra.mxu0 0
      %2211 = vmatpush.bf16.msra.mxu0 0
      %2212 = vmatpush.bf16.msra.mxu0 0
      %2213 = vmatpush.bf16.msra.mxu0 0
      %2214 = vmatpush.bf16.msra.mxu0 0
      %2215 = vmatpush.bf16.msra.mxu0 0
      %2216 = vmatpush.bf16.msra.mxu0 %v1964
      %2217 = vmatpush.bf16.msra.mxu0 %v1955
      %2218 = vmatmul.bf16.gmra.mxu0 %v2053
      %v2219 = vpop.f32.mrf.mxu0
      %v2220 = vadd.f32 %v2201, %v2219
      %v2221 = vpop.f32.mrf.mxu0
      %v2222 = vadd.f32 %v2203, %v2221
      %2223 = vmatmul.bf16.gmra.mxu0 %v2056
      %v2224 = vpop.f32.mrf.mxu0
      %v2225 = vadd.f32 %v2206, %v2224
      %v2226 = vpop.f32.mrf.mxu0
      %v2227 = vadd.f32 %v2208, %v2226
      %2228 = vdwg.mxu0
      %2229 = vmatpush.bf16.msra.mxu0 %v1587
      %2230 = vmatpush.bf16.msra.mxu0 %v1579
      %2231 = vmatpush.bf16.msra.mxu0 %v1516
      %2232 = vmatpush.bf16.msra.mxu0 %v1508
      %2233 = vmatpush.bf16.msra.mxu0 %v1445
      %2234 = vmatpush.bf16.msra.mxu0 %v1437
      %2235 = vmatpush.bf16.msra.mxu0 %v1373
      %2236 = vmatpush.bf16.msra.mxu0 %v1364
      %2237 = vmatmul.bf16.gmra.mxu0 %v2041
      %v2238 = vpop.f32.mrf.mxu0
      %v2239 = vadd.f32 %v2004, %v2238
      %v2240 = vpop.f32.mrf.mxu0
      %v2241 = vadd.f32 %v2009, %v2240
      %2242 = vmatmul.bf16.gmra.mxu0 %v2044
      %v2243 = vpop.f32.mrf.mxu0
      %v2244 = vadd.f32 %v2014, %v2243
      %v2245 = vpop.f32.mrf.mxu0
      %v2246 = vadd.f32 %v2019, %v2245
      %2247 = vdwg.mxu0
      %2248 = vmatpush.bf16.msra.mxu0 %v1888
      %2249 = vmatpush.bf16.msra.mxu0 %v1879
      %2250 = vmatpush.bf16.msra.mxu0 %v1811
      %2251 = vmatpush.bf16.msra.mxu0 %v1802
      %2252 = vmatpush.bf16.msra.mxu0 %v1729
      %2253 = vmatpush.bf16.msra.mxu0 %v1721
      %2254 = vmatpush.bf16.msra.mxu0 %v1658
      %2255 = vmatpush.bf16.msra.mxu0 %v1650
      %2256 = vmatmul.bf16.gmra.mxu0 %v2042
      %v2257 = vpop.f32.mrf.mxu0
      %v2258 = vadd.f32 %v2239, %v2257
      %v2259 = vpop.f32.mrf.mxu0
      %v2260 = vadd.f32 %v2241, %v2259
      %2261 = vmatmul.bf16.gmra.mxu0 %v2045
      %v2262 = vpop.f32.mrf.mxu0
      %v2263 = vadd.f32 %v2244, %v2262
      %v2264 = vpop.f32.mrf.mxu0
      %v2265 = vadd.f32 %v2246, %v2264
      %2266 = vdwg.mxu0
      %2267 = vmatpush.bf16.msra.mxu0 0
      %2268 = vmatpush.bf16.msra.mxu0 0
      %2269 = vmatpush.bf16.msra.mxu0 0
      %2270 = vmatpush.bf16.msra.mxu0 0
      %2271 = vmatpush.bf16.msra.mxu0 0
      %2272 = vmatpush.bf16.msra.mxu0 0
      %2273 = vmatpush.bf16.msra.mxu0 %v1965
      %2274 = vmatpush.bf16.msra.mxu0 %v1956
      %2275 = vmatmul.bf16.gmra.mxu0 %v2053
      %v2276 = vpop.f32.mrf.mxu0
      %v2277 = vadd.f32 %v2258, %v2276
      %v2278 = vpop.f32.mrf.mxu0
      %v2279 = vadd.f32 %v2260, %v2278
      %2280 = vmatmul.bf16.gmra.mxu0 %v2056
      %v2281 = vpop.f32.mrf.mxu0
      %v2282 = vadd.f32 %v2263, %v2281
      %v2283 = vpop.f32.mrf.mxu0
      %v2284 = vadd.f32 %v2265, %v2283
      %2285 = vdwg.mxu0
      %2286 = vmatpush.bf16.msra.mxu0 %v1588
      %2287 = vmatpush.bf16.msra.mxu0 %v1580
      %2288 = vmatpush.bf16.msra.mxu0 %v1517
      %2289 = vmatpush.bf16.msra.mxu0 %v1509
      %2290 = vmatpush.bf16.msra.mxu0 %v1446
      %2291 = vmatpush.bf16.msra.mxu0 %v1438
      %2292 = vmatpush.bf16.msra.mxu0 %v1374
      %2293 = vmatpush.bf16.msra.mxu0 %v1365
      %2294 = vmatmul.bf16.gmra.mxu0 %v2041
      %v2295 = vpop.f32.mrf.mxu0
      %v2296 = vadd.f32 %v2004, %v2295
      %v2297 = vpop.f32.mrf.mxu0
      %v2298 = vadd.f32 %v2009, %v2297
      %2299 = vmatmul.bf16.gmra.mxu0 %v2044
      %v2300 = vpop.f32.mrf.mxu0
      %v2301 = vadd.f32 %v2014, %v2300
      %v2302 = vpop.f32.mrf.mxu0
      %v2303 = vadd.f32 %v2019, %v2302
      %2304 = vdwg.mxu0
      %2305 = vmatpush.bf16.msra.mxu0 %v1889
      %2306 = vmatpush.bf16.msra.mxu0 %v1880
      %2307 = vmatpush.bf16.msra.mxu0 %v1812
      %2308 = vmatpush.bf16.msra.mxu0 %v1803
      %2309 = vmatpush.bf16.msra.mxu0 %v1730
      %2310 = vmatpush.bf16.msra.mxu0 %v1722
      %2311 = vmatpush.bf16.msra.mxu0 %v1659
      %2312 = vmatpush.bf16.msra.mxu0 %v1651
      %2313 = vmatmul.bf16.gmra.mxu0 %v2042
      %v2314 = vpop.f32.mrf.mxu0
      %v2315 = vadd.f32 %v2296, %v2314
      %v2316 = vpop.f32.mrf.mxu0
      %v2317 = vadd.f32 %v2298, %v2316
      %2318 = vmatmul.bf16.gmra.mxu0 %v2045
      %v2319 = vpop.f32.mrf.mxu0
      %v2320 = vadd.f32 %v2301, %v2319
      %v2321 = vpop.f32.mrf.mxu0
      %v2322 = vadd.f32 %v2303, %v2321
      %2323 = vdwg.mxu0
      %2324 = vmatpush.bf16.msra.mxu0 0
      %2325 = vmatpush.bf16.msra.mxu0 0
      %2326 = vmatpush.bf16.msra.mxu0 0
      %2327 = vmatpush.bf16.msra.mxu0 0
      %2328 = vmatpush.bf16.msra.mxu0 0
      %2329 = vmatpush.bf16.msra.mxu0 0
      %2330 = vmatpush.bf16.msra.mxu0 %v1966
      %2331 = vmatpush.bf16.msra.mxu0 %v1957
      %2332 = vmatmul.bf16.gmra.mxu0 %v2053
      %v2333 = vpop.f32.mrf.mxu0
      %v2334 = vadd.f32 %v2315, %v2333
      %v2335 = vpop.f32.mrf.mxu0
      %v2336 = vadd.f32 %v2317, %v2335
      %2337 = vmatmul.bf16.gmra.mxu0 %v2056
      %v2338 = vpop.f32.mrf.mxu0
      %v2339 = vadd.f32 %v2320, %v2338
      %v2340 = vpop.f32.mrf.mxu0
      %v2341 = vadd.f32 %v2322, %v2340
      %2342 = vdwg.mxu0
      %2343 = vmatpush.bf16.msra.mxu0 %v1589
      %2344 = vmatpush.bf16.msra.mxu0 %v1581
      %2345 = vmatpush.bf16.msra.mxu0 %v1518
      %2346 = vmatpush.bf16.msra.mxu0 %v1510
      %2347 = vmatpush.bf16.msra.mxu0 %v1447
      %2348 = vmatpush.bf16.msra.mxu0 %v1439
      %2349 = vmatpush.bf16.msra.mxu0 %v1375
      %2350 = vmatpush.bf16.msra.mxu0 %v1366
      %2351 = vmatmul.bf16.gmra.mxu0 %v2041
      %v2352 = vpop.f32.mrf.mxu0
      %v2353 = vadd.f32 %v2004, %v2352
      %v2354 = vpop.f32.mrf.mxu0
      %v2355 = vadd.f32 %v2009, %v2354
      %2356 = vmatmul.bf16.gmra.mxu0 %v2044
      %v2357 = vpop.f32.mrf.mxu0
      %v2358 = vadd.f32 %v2014, %v2357
      %v2359 = vpop.f32.mrf.mxu0
      %v2360 = vadd.f32 %v2019, %v2359
      %2361 = vdwg.mxu0
      %2362 = vmatpush.bf16.msra.mxu0 %v1890
      %2363 = vmatpush.bf16.msra.mxu0 %v1881
      %2364 = vmatpush.bf16.msra.mxu0 %v1813
      %2365 = vmatpush.bf16.msra.mxu0 %v1804
      %2366 = vmatpush.bf16.msra.mxu0 %v1731
      %2367 = vmatpush.bf16.msra.mxu0 %v1723
      %2368 = vmatpush.bf16.msra.mxu0 %v1660
      %2369 = vmatpush.bf16.msra.mxu0 %v1652
      %2370 = vmatmul.bf16.gmra.mxu0 %v2042
      %v2371 = vpop.f32.mrf.mxu0
      %v2372 = vadd.f32 %v2353, %v2371
      %v2373 = vpop.f32.mrf.mxu0
      %v2374 = vadd.f32 %v2355, %v2373
      %2375 = vmatmul.bf16.gmra.mxu0 %v2045
      %v2376 = vpop.f32.mrf.mxu0
      %v2377 = vadd.f32 %v2358, %v2376
      %v2378 = vpop.f32.mrf.mxu0
      %v2379 = vadd.f32 %v2360, %v2378
      %2380 = vdwg.mxu0
      %2381 = vmatpush.bf16.msra.mxu0 0
      %2382 = vmatpush.bf16.msra.mxu0 0
      %2383 = vmatpush.bf16.msra.mxu0 0
      %2384 = vmatpush.bf16.msra.mxu0 0
      %2385 = vmatpush.bf16.msra.mxu0 0
      %2386 = vmatpush.bf16.msra.mxu0 0
      %2387 = vmatpush.bf16.msra.mxu0 %v1967
      %2388 = vmatpush.bf16.msra.mxu0 %v1958
      %2389 = vmatmul.bf16.gmra.mxu0 %v2053
      %v2390 = vpop.f32.mrf.mxu0
      %v2391 = vadd.f32 %v2372, %v2390
      %v2392 = vpop.f32.mrf.mxu0
      %v2393 = vadd.f32 %v2374, %v2392
      %2394 = vmatmul.bf16.gmra.mxu0 %v2056
      %v2395 = vpop.f32.mrf.mxu0
      %v2396 = vadd.f32 %v2377, %v2395
      %v2397 = vpop.f32.mrf.mxu0
      %v2398 = vadd.f32 %v2379, %v2397
      %2399 = vdwg.mxu0
      %2400 = vmatpush.bf16.msra.mxu0 %v1590
      %2401 = vmatpush.bf16.msra.mxu0 %v1582
      %2402 = vmatpush.bf16.msra.mxu0 %v1519
      %2403 = vmatpush.bf16.msra.mxu0 %v1511
      %2404 = vmatpush.bf16.msra.mxu0 %v1448
      %2405 = vmatpush.bf16.msra.mxu0 %v1440
      %2406 = vmatpush.bf16.msra.mxu0 %v1376
      %2407 = vmatpush.bf16.msra.mxu0 %v1367
      %2408 = vmatmul.bf16.gmra.mxu0 %v2041
      %v2409 = vpop.f32.mrf.mxu0
      %v2410 = vadd.f32 %v2004, %v2409
      %v2411 = vpop.f32.mrf.mxu0
      %v2412 = vadd.f32 %v2009, %v2411
      %2413 = vmatmul.bf16.gmra.mxu0 %v2044
      %v2414 = vpop.f32.mrf.mxu0
      %v2415 = vadd.f32 %v2014, %v2414
      %v2416 = vpop.f32.mrf.mxu0
      %v2417 = vadd.f32 %v2019, %v2416
      %2418 = vdwg.mxu0
      %2419 = vmatpush.bf16.msra.mxu0 %v1891
      %2420 = vmatpush.bf16.msra.mxu0 %v1882
      %2421 = vmatpush.bf16.msra.mxu0 %v1814
      %2422 = vmatpush.bf16.msra.mxu0 %v1805
      %2423 = vmatpush.bf16.msra.mxu0 %v1732
      %2424 = vmatpush.bf16.msra.mxu0 %v1724
      %2425 = vmatpush.bf16.msra.mxu0 %v1661
      %2426 = vmatpush.bf16.msra.mxu0 %v1653
      %2427 = vmatmul.bf16.gmra.mxu0 %v2042
      %v2428 = vpop.f32.mrf.mxu0
      %v2429 = vadd.f32 %v2410, %v2428
      %v2430 = vpop.f32.mrf.mxu0
      %v2431 = vadd.f32 %v2412, %v2430
      %2432 = vmatmul.bf16.gmra.mxu0 %v2045
      %v2433 = vpop.f32.mrf.mxu0
      %v2434 = vadd.f32 %v2415, %v2433
      %v2435 = vpop.f32.mrf.mxu0
      %v2436 = vadd.f32 %v2417, %v2435
      %2437 = vdwg.mxu0
      %2438 = vmatpush.bf16.msra.mxu0 0
      %2439 = vmatpush.bf16.msra.mxu0 0
      %2440 = vmatpush.bf16.msra.mxu0 0
      %2441 = vmatpush.bf16.msra.mxu0 0
      %2442 = vmatpush.bf16.msra.mxu0 0
      %2443 = vmatpush.bf16.msra.mxu0 0
      %2444 = vmatpush.bf16.msra.mxu0 %v1968
      %2445 = vmatpush.bf16.msra.mxu0 %v1959
      %2446 = vmatmul.bf16.gmra.mxu0 %v2053
      %v2447 = vpop.f32.mrf.mxu0
      %v2448 = vadd.f32 %v2429, %v2447
      %v2449 = vpop.f32.mrf.mxu0
      %v2450 = vadd.f32 %v2431, %v2449
      %2451 = vmatmul.bf16.gmra.mxu0 %v2056
      %v2452 = vpop.f32.mrf.mxu0
      %v2453 = vadd.f32 %v2434, %v2452
      %v2454 = vpop.f32.mrf.mxu0
      %v2455 = vadd.f32 %v2436, %v2454
      %2456 = vdwg.mxu0
      %2457 = vmatpush.bf16.msra.mxu0 %v1591
      %2458 = vmatpush.bf16.msra.mxu0 %v1583
      %2459 = vmatpush.bf16.msra.mxu0 %v1520
      %2460 = vmatpush.bf16.msra.mxu0 %v1512
      %2461 = vmatpush.bf16.msra.mxu0 %v1449
      %2462 = vmatpush.bf16.msra.mxu0 %v1441
      %2463 = vmatpush.bf16.msra.mxu0 %v1377
      %2464 = vmatpush.bf16.msra.mxu0 %v1368
      %2465 = vmatmul.bf16.gmra.mxu0 %v2041
      %v2466 = vpop.f32.mrf.mxu0
      %v2467 = vadd.f32 %v2004, %v2466
      %v2468 = vpop.f32.mrf.mxu0
      %v2469 = vadd.f32 %v2009, %v2468
      %2470 = vmatmul.bf16.gmra.mxu0 %v2044
      %v2471 = vpop.f32.mrf.mxu0
      %v2472 = vadd.f32 %v2014, %v2471
      %v2473 = vpop.f32.mrf.mxu0
      %v2474 = vadd.f32 %v2019, %v2473
      %2475 = vdwg.mxu0
      %2476 = vmatpush.bf16.msra.mxu0 %v1892
      %2477 = vmatpush.bf16.msra.mxu0 %v1883
      %2478 = vmatpush.bf16.msra.mxu0 %v1815
      %2479 = vmatpush.bf16.msra.mxu0 %v1806
      %2480 = vmatpush.bf16.msra.mxu0 %v1733
      %2481 = vmatpush.bf16.msra.mxu0 %v1725
      %2482 = vmatpush.bf16.msra.mxu0 %v1662
      %2483 = vmatpush.bf16.msra.mxu0 %v1654
      %2484 = vmatmul.bf16.gmra.mxu0 %v2042
      %v2485 = vpop.f32.mrf.mxu0
      %v2486 = vadd.f32 %v2467, %v2485
      %v2487 = vpop.f32.mrf.mxu0
      %v2488 = vadd.f32 %v2469, %v2487
      %2489 = vmatmul.bf16.gmra.mxu0 %v2045
      %v2490 = vpop.f32.mrf.mxu0
      %v2491 = vadd.f32 %v2472, %v2490
      %v2492 = vpop.f32.mrf.mxu0
      %v2493 = vadd.f32 %v2474, %v2492
      %2494 = vdwg.mxu0
      %2495 = vmatpush.bf16.msra.mxu0 0
      %2496 = vmatpush.bf16.msra.mxu0 0
      %2497 = vmatpush.bf16.msra.mxu0 0
      %2498 = vmatpush.bf16.msra.mxu0 0
      %2499 = vmatpush.bf16.msra.mxu0 0
      %2500 = vmatpush.bf16.msra.mxu0 0
      %2501 = vmatpush.bf16.msra.mxu0 %v1969
      %2502 = vmatpush.bf16.msra.mxu0 %v1960
      %2503 = vmatmul.bf16.gmra.mxu0 %v2053
      %v2504 = vpop.f32.mrf.mxu0
      %v2505 = vadd.f32 %v2486, %v2504
      %v2506 = vpop.f32.mrf.mxu0
      %v2507 = vadd.f32 %v2488, %v2506
      %2508 = vmatmul.bf16.gmra.mxu0 %v2056
      %v2509 = vpop.f32.mrf.mxu0
      %v2510 = vadd.f32 %v2491, %v2509
      %v2511 = vpop.f32.mrf.mxu0
      %v2512 = vadd.f32 %v2493, %v2511
      %2513 = vdwg.mxu0
      %2514 = vmatpush.bf16.msra.mxu0 %v1574
      %2515 = vmatpush.bf16.msra.mxu0 %v1556
      %2516 = vmatpush.bf16.msra.mxu0 %v1503
      %2517 = vmatpush.bf16.msra.mxu0 %v1485
      %2518 = vmatpush.bf16.msra.mxu0 %v1432
      %2519 = vmatpush.bf16.msra.mxu0 %v1414
      %2520 = vmatpush.bf16.msra.mxu0 %v1378
      %2521 = vmatpush.bf16.msra.mxu0 %v1369
      %2522 = vmatmul.bf16.gmra.mxu0 %v2041
      %v2523 = vpop.f32.mrf.mxu0
      %v2524 = vadd.f32 %v2004, %v2523
      %v2525 = vpop.f32.mrf.mxu0
      %v2526 = vadd.f32 %v2009, %v2525
      %2527 = vmatmul.bf16.gmra.mxu0 %v2044
      %v2528 = vpop.f32.mrf.mxu0
      %v2529 = vadd.f32 %v2014, %v2528
      %v2530 = vpop.f32.mrf.mxu0
      %v2531 = vadd.f32 %v2019, %v2530
      %2532 = vdwg.mxu0
      %2533 = vmatpush.bf16.msra.mxu0 %v1893
      %2534 = vmatpush.bf16.msra.mxu0 %v1884
      %2535 = vmatpush.bf16.msra.mxu0 %v1816
      %2536 = vmatpush.bf16.msra.mxu0 %v1807
      %2537 = vmatpush.bf16.msra.mxu0 %v1716
      %2538 = vmatpush.bf16.msra.mxu0 %v1698
      %2539 = vmatpush.bf16.msra.mxu0 %v1645
      %2540 = vmatpush.bf16.msra.mxu0 %v1627
      %2541 = vmatmul.bf16.gmra.mxu0 %v2042
      %v2542 = vpop.f32.mrf.mxu0
      %v2543 = vadd.f32 %v2524, %v2542
      %v2544 = vpop.f32.mrf.mxu0
      %v2545 = vadd.f32 %v2526, %v2544
      %2546 = vmatmul.bf16.gmra.mxu0 %v2045
      %v2547 = vpop.f32.mrf.mxu0
      %v2548 = vadd.f32 %v2529, %v2547
      %v2549 = vpop.f32.mrf.mxu0
      %v2550 = vadd.f32 %v2531, %v2549
      %2551 = vdwg.mxu0
      %2552 = vmatpush.bf16.msra.mxu0 0
      %2553 = vmatpush.bf16.msra.mxu0 0
      %2554 = vmatpush.bf16.msra.mxu0 0
      %2555 = vmatpush.bf16.msra.mxu0 0
      %2556 = vmatpush.bf16.msra.mxu0 0
      %2557 = vmatpush.bf16.msra.mxu0 0
      %2558 = vmatpush.bf16.msra.mxu0 %v1970
      %2559 = vmatpush.bf16.msra.mxu0 %v1961
      %2560 = vmatmul.bf16.gmra.mxu0 %v2053
      %v2561 = vpop.f32.mrf.mxu0
      %v2562 = vadd.f32 %v2543, %v2561
      %v2563 = vpop.f32.mrf.mxu0
      %v2564 = vadd.f32 %v2545, %v2563
      %2565 = vmatmul.bf16.gmra.mxu0 %v2056
      %v2566 = vpop.f32.mrf.mxu0
      %v2567 = vadd.f32 %v2548, %v2566
      %v2568 = vpop.f32.mrf.mxu0
      %v2569 = vadd.f32 %v2550, %v2568
      %2570 = vdwg.mxu0
      %v2571 = vmax.f32 %v2106, 0.0
      %v2572 = vmax.f32 %v2163, 0.0
      %v2573 = vmax.f32 %v2220, 0.0
      %v2574 = vmax.f32 %v2277, 0.0
      %v2575 = vmax.f32 %v2334, 0.0
      %v2576 = vmax.f32 %v2391, 0.0
      %v2577 = vmax.f32 %v2448, 0.0
      %v2578 = vmax.f32 %v2505, 0.0
      %v2579 = vmax.f32 %v2562, 0.0
      %v2580 = vmax.f32 %v2108, 0.0
      %v2581 = vmax.f32 %v2165, 0.0
      %v2582 = vmax.f32 %v2222, 0.0
      %v2583 = vmax.f32 %v2279, 0.0
      %v2584 = vmax.f32 %v2336, 0.0
      %v2585 = vmax.f32 %v2393, 0.0
      %v2586 = vmax.f32 %v2450, 0.0
      %v2587 = vmax.f32 %v2507, 0.0
      %v2588 = vmax.f32 %v2564, 0.0
      %v2589 = vmax.f32 %v2111, 0.0
      %v2590 = vmax.f32 %v2168, 0.0
      %v2591 = vmax.f32 %v2225, 0.0
      %v2592 = vmax.f32 %v2282, 0.0
      %v2593 = vmax.f32 %v2339, 0.0
      %v2594 = vmax.f32 %v2396, 0.0
      %v2595 = vmax.f32 %v2453, 0.0
      %v2596 = vmax.f32 %v2510, 0.0
      %v2597 = vmax.f32 %v2567, 0.0
      %v2598 = vmax.f32 %v2113, 0.0
      %v2599 = vmax.f32 %v2170, 0.0
      %v2600 = vmax.f32 %v2227, 0.0
      %v2601 = vmax.f32 %v2284, 0.0
      %v2602 = vmax.f32 %v2341, 0.0
      %v2603 = vmax.f32 %v2398, 0.0
      %v2604 = vmax.f32 %v2455, 0.0
      %v2605 = vmax.f32 %v2512, 0.0
      %v2606 = vmax.f32 %v2569, 0.0
      %v2607 = vmul.f32 %v2571, %v1045
      %v2608 = vmul.f32 %v2572, %v1046
      %v2609 = vmul.f32 %v2573, %v1047
      %v2610 = vmul.f32 %v2574, %v1048
      %v2611 = vmul.f32 %v2575, %v1049
      %v2612 = vmul.f32 %v2576, %v1050
      %v2613 = vmul.f32 %v2577, %v1051
      %v2614 = vmul.f32 %v2578, %v1052
      %v2615 = vmul.f32 %v2579, %v1053
      %v2616 = vmul.f32 %v2580, %v1045
      %v2617 = vmul.f32 %v2581, %v1046
      %v2618 = vmul.f32 %v2582, %v1047
      %v2619 = vmul.f32 %v2583, %v1048
      %v2620 = vmul.f32 %v2584, %v1049
      %v2621 = vmul.f32 %v2585, %v1050
      %v2622 = vmul.f32 %v2586, %v1051
      %v2623 = vmul.f32 %v2587, %v1052
      %v2624 = vmul.f32 %v2588, %v1053
      %v2625 = vmul.f32 %v2589, %v1045
      %v2626 = vmul.f32 %v2590, %v1046
      %v2627 = vmul.f32 %v2591, %v1047
      %v2628 = vmul.f32 %v2592, %v1048
      %v2629 = vmul.f32 %v2593, %v1049
      %v2630 = vmul.f32 %v2594, %v1050
      %v2631 = vmul.f32 %v2595, %v1051
      %v2632 = vmul.f32 %v2596, %v1052
      %v2633 = vmul.f32 %v2597, %v1053
      %v2634 = vmul.f32 %v2598, %v1045
      %v2635 = vmul.f32 %v2599, %v1046
      %v2636 = vmul.f32 %v2600, %v1047
      %v2637 = vmul.f32 %v2601, %v1048
      %v2638 = vmul.f32 %v2602, %v1049
      %v2639 = vmul.f32 %v2603, %v1050
      %v2640 = vmul.f32 %v2604, %v1051
      %v2641 = vmul.f32 %v2605, %v1052
      %v2642 = vmul.f32 %v2606, %v1053
      %2679 = vrot.lane.b32.xlu0 %v2607, 35
      %v2680 = vpop.permute.xlu0 %2679
      %2681 = vrot.lane.b32.xlu0 %v2608, 35
      %v2682 = vpop.permute.xlu0 %2681
      %2683 = vrot.lane.b32.xlu0 %v2609, 35
      %v2684 = vpop.permute.xlu0 %2683
      %2685 = vrot.lane.b32.xlu0 %v2610, 35
      %v2686 = vpop.permute.xlu0 %2685
      %2687 = vrot.lane.b32.xlu0 %v2611, 35
      %v2688 = vpop.permute.xlu0 %2687
      %2689 = vrot.lane.b32.xlu0 %v2612, 35
      %v2690 = vpop.permute.xlu0 %2689
      %2691 = vrot.lane.b32.xlu0 %v2613, 35
      %v2692 = vpop.permute.xlu0 %2691
      %2693 = vrot.lane.b32.xlu0 %v2614, 35
      %v2694 = vpop.permute.xlu0 %2693
      %2695 = vrot.lane.b32.xlu0 %v2615, 35
      %v2696 = vpop.permute.xlu0 %2695
      %2697 = vrot.lane.b32.xlu0 %v2616, 35
      %v2698 = vpop.permute.xlu0 %2697
      %2699 = vrot.lane.b32.xlu0 %v2617, 35
      %v2700 = vpop.permute.xlu0 %2699
      %2701 = vrot.lane.b32.xlu0 %v2618, 35
      %v2702 = vpop.permute.xlu0 %2701
      %2703 = vrot.lane.b32.xlu0 %v2619, 35
      %v2704 = vpop.permute.xlu0 %2703
      %2705 = vrot.lane.b32.xlu0 %v2620, 35
      %v2706 = vpop.permute.xlu0 %2705
      %2707 = vrot.lane.b32.xlu0 %v2621, 35
      %v2708 = vpop.permute.xlu0 %2707
      %2709 = vrot.lane.b32.xlu0 %v2622, 35
      %v2710 = vpop.permute.xlu0 %2709
      %2711 = vrot.lane.b32.xlu0 %v2623, 35
      %v2712 = vpop.permute.xlu0 %2711
      %2713 = vrot.lane.b32.xlu0 %v2624, 35
      %v2714 = vpop.permute.xlu0 %2713
      %2715 = vrot.lane.b32.xlu0 %v2625, 35
      %v2716 = vpop.permute.xlu0 %2715
      %2717 = vrot.lane.b32.xlu0 %v2626, 35
      %v2718 = vpop.permute.xlu0 %2717
      %2719 = vrot.lane.b32.xlu0 %v2627, 35
      %v2720 = vpop.permute.xlu0 %2719
      %2721 = vrot.lane.b32.xlu0 %v2628, 35
      %v2722 = vpop.permute.xlu0 %2721
      %2723 = vrot.lane.b32.xlu0 %v2629, 35
      %v2724 = vpop.permute.xlu0 %2723
      %2725 = vrot.lane.b32.xlu0 %v2630, 35
      %v2726 = vpop.permute.xlu0 %2725
      %2727 = vrot.lane.b32.xlu0 %v2631, 35
      %v2728 = vpop.permute.xlu0 %2727
      %2729 = vrot.lane.b32.xlu0 %v2632, 35
      %v2730 = vpop.permute.xlu0 %2729
      %2731 = vrot.lane.b32.xlu0 %v2633, 35
      %v2732 = vpop.permute.xlu0 %2731
      %2733 = vrot.lane.b32.xlu0 %v2634, 35
      %v2734 = vpop.permute.xlu0 %2733
      %2735 = vrot.lane.b32.xlu0 %v2635, 35
      %v2736 = vpop.permute.xlu0 %2735
      %2737 = vrot.lane.b32.xlu0 %v2636, 35
      %v2738 = vpop.permute.xlu0 %2737
      %2739 = vrot.lane.b32.xlu0 %v2637, 35
      %v2740 = vpop.permute.xlu0 %2739
      %2741 = vrot.lane.b32.xlu0 %v2638, 35
      %v2742 = vpop.permute.xlu0 %2741
      %2743 = vrot.lane.b32.xlu0 %v2639, 35
      %v2744 = vpop.permute.xlu0 %2743
      %2745 = vrot.lane.b32.xlu0 %v2640, 35
      %v2746 = vpop.permute.xlu0 %2745
      %2747 = vrot.lane.b32.xlu0 %v2641, 35
      %v2748 = vpop.permute.xlu0 %2747
      %2749 = vrot.lane.b32.xlu0 %v2642, 35
      %v2750 = vpop.permute.xlu0 %2749
      %v2751 = vsel %vm1207, %v2680, %v2682
      %v2752 = vsel %vm1207, %v2682, %v2684
      %v2753 = vsel %vm1207, %v2684, %v2686
      %v2754 = vsel %vm1207, %v2686, %v2688
      %v2755 = vsel %vm1207, %v2688, %v2690
      %v2756 = vsel %vm1207, %v2690, %v2692
      %v2757 = vsel %vm1207, %v2692, %v2694
      %v2758 = vsel %vm1207, %v2694, %v2696
      %v2759 = vsel %vm1207, %v2698, %v2700
      %v2760 = vsel %vm1207, %v2700, %v2702
      %v2761 = vsel %vm1207, %v2702, %v2704
      %v2762 = vsel %vm1207, %v2704, %v2706
      %v2763 = vsel %vm1207, %v2706, %v2708
      %v2764 = vsel %vm1207, %v2708, %v2710
      %v2765 = vsel %vm1207, %v2710, %v2712
      %v2766 = vsel %vm1207, %v2712, %v2714
      %v2767 = vsel %vm1207, %v2716, %v2718
      %v2768 = vsel %vm1207, %v2718, %v2720
      %v2769 = vsel %vm1207, %v2720, %v2722
      %v2770 = vsel %vm1207, %v2722, %v2724
      %v2771 = vsel %vm1207, %v2724, %v2726
      %v2772 = vsel %vm1207, %v2726, %v2728
      %v2773 = vsel %vm1207, %v2728, %v2730
      %v2774 = vsel %vm1207, %v2730, %v2732
      %v2775 = vsel %vm1207, %v2734, %v2736
      %v2776 = vsel %vm1207, %v2736, %v2738
      %v2777 = vsel %vm1207, %v2738, %v2740
      %v2778 = vsel %vm1207, %v2740, %v2742
      %v2779 = vsel %vm1207, %v2742, %v2744
      %v2780 = vsel %vm1207, %v2744, %v2746
      %v2781 = vsel %vm1207, %v2746, %v2748
      %v2782 = vsel %vm1207, %v2748, %v2750
      %v2819 = vsel %vm1207, 0.0, %v2680
      %v2820 = vsel %vm1207, 0.0, %v2698
      %v2821 = vsel %vm1207, 0.0, %v2716
      %v2822 = vsel %vm1207, 0.0, %v2734
      %v2823 = vsel %vm1280, %v2758, 0.0
      %v2824 = vsel %vm1280, %v2766, 0.0
      %v2825 = vsel %vm1280, %v2774, 0.0
      %v2826 = vsel %vm1280, %v2782, 0.0
      %v2827 = vpack.c.bf16 %v2751, %v2819
      %v2828 = vpack.c.bf16 %v2753, %v2752
      %v2829 = vpack.c.bf16 %v2755, %v2754
      %v2830 = vpack.c.bf16 %v2757, %v2756
      %v2831 = vpack.c.bf16 0.0, %v2823
      %v2832 = vpack.c.bf16 %v2759, %v2820
      %v2833 = vpack.c.bf16 %v2761, %v2760
      %v2834 = vpack.c.bf16 %v2763, %v2762
      %v2835 = vpack.c.bf16 %v2765, %v2764
      %v2836 = vpack.c.bf16 0.0, %v2824
      %v2837 = vpack.c.bf16 %v2767, %v2821
      %v2838 = vpack.c.bf16 %v2769, %v2768
      %v2839 = vpack.c.bf16 %v2771, %v2770
      %v2840 = vpack.c.bf16 %v2773, %v2772
      %v2841 = vpack.c.bf16 0.0, %v2825
      %v2842 = vpack.c.bf16 %v2775, %v2822
      %v2843 = vpack.c.bf16 %v2777, %v2776
      %v2844 = vpack.c.bf16 %v2779, %v2778
      %v2845 = vpack.c.bf16 %v2781, %v2780
      %v2846 = vpack.c.bf16 0.0, %v2826
      %v2867 = vunpack.c.l.b16 %v2827
      %v2868 = vunpack.c.h.b16 %v2827
      %v2869 = vunpack.c.l.b16 %v2828
      %v2870 = vunpack.c.h.b16 %v2828
      %v2871 = vunpack.c.l.b16 %v2829
      %v2872 = vunpack.c.h.b16 %v2829
      %v2873 = vunpack.c.l.b16 %v2830
      %v2874 = vunpack.c.h.b16 %v2830
      %v2875 = vunpack.c.l.b16 %v2831
      %v2876 = vunpack.c.l.b16 %v2832
      %v2877 = vunpack.c.h.b16 %v2832
      %v2878 = vunpack.c.l.b16 %v2833
      %v2879 = vunpack.c.h.b16 %v2833
      %v2880 = vunpack.c.l.b16 %v2834
      %v2881 = vunpack.c.h.b16 %v2834
      %v2882 = vunpack.c.l.b16 %v2835
      %v2883 = vunpack.c.h.b16 %v2835
      %v2884 = vunpack.c.l.b16 %v2836
      %v2885 = vunpack.c.l.b16 %v2837
      %v2886 = vunpack.c.h.b16 %v2837
      %v2887 = vunpack.c.l.b16 %v2838
      %v2888 = vunpack.c.h.b16 %v2838
      %v2889 = vunpack.c.l.b16 %v2839
      %v2890 = vunpack.c.h.b16 %v2839
      %v2891 = vunpack.c.l.b16 %v2840
      %v2892 = vunpack.c.h.b16 %v2840
      %v2893 = vunpack.c.l.b16 %v2841
      %v2894 = vunpack.c.l.b16 %v2842
      %v2895 = vunpack.c.h.b16 %v2842
      %v2896 = vunpack.c.l.b16 %v2843
      %v2897 = vunpack.c.h.b16 %v2843
      %v2898 = vunpack.c.l.b16 %v2844
      %v2899 = vunpack.c.h.b16 %v2844
      %v2900 = vunpack.c.l.b16 %v2845
      %v2901 = vunpack.c.h.b16 %v2845
      %v2902 = vunpack.c.l.b16 %v2846
      %v2903 = vpack.c.b16 %v2876, %v2867
      %v2904 = vpack.c.b16 %v2877, %v2868
      %v2905 = vpack.c.b16 %v2878, %v2869
      %v2906 = vpack.c.b16 %v2879, %v2870
      %v2907 = vpack.c.b16 %v2880, %v2871
      %v2908 = vpack.c.b16 %v2881, %v2872
      %v2909 = vpack.c.b16 %v2882, %v2873
      %v2910 = vpack.c.b16 %v2883, %v2874
      %v2911 = vpack.c.b16 %v2884, %v2875
      %v2912 = vpack.c.b16 %v2894, %v2885
      %v2913 = vpack.c.b16 %v2895, %v2886
      %v2914 = vpack.c.b16 %v2896, %v2887
      %v2915 = vpack.c.b16 %v2897, %v2888
      %v2916 = vpack.c.b16 %v2898, %v2889
      %v2917 = vpack.c.b16 %v2899, %v2890
      %v2918 = vpack.c.b16 %v2900, %v2891
      %v2919 = vpack.c.b16 %v2901, %v2892
      %v2920 = vpack.c.b16 %v2902, %v2893
      %2939 = vrot.lane.b32.xlu0 %v2903, 127
      %v2940 = vpop.permute.xlu0 %2939
      %2941 = vrot.lane.b32.xlu0 %v2904, 127
      %v2942 = vpop.permute.xlu0 %2941
      %2943 = vrot.lane.b32.xlu0 %v2905, 127
      %v2944 = vpop.permute.xlu0 %2943
      %2945 = vrot.lane.b32.xlu0 %v2906, 127
      %v2946 = vpop.permute.xlu0 %2945
      %2947 = vrot.lane.b32.xlu0 %v2907, 127
      %v2948 = vpop.permute.xlu0 %2947
      %2949 = vrot.lane.b32.xlu0 %v2908, 127
      %v2950 = vpop.permute.xlu0 %2949
      %2951 = vrot.lane.b32.xlu0 %v2909, 127
      %v2952 = vpop.permute.xlu0 %2951
      %2953 = vrot.lane.b32.xlu0 %v2910, 127
      %v2954 = vpop.permute.xlu0 %2953
      %2955 = vrot.lane.b32.xlu0 %v2911, 127
      %v2956 = vpop.permute.xlu0 %2955
      %2957 = vrot.lane.b32.xlu0 %v2912, 127
      %v2958 = vpop.permute.xlu0 %2957
      %2959 = vrot.lane.b32.xlu0 %v2913, 127
      %v2960 = vpop.permute.xlu0 %2959
      %2961 = vrot.lane.b32.xlu0 %v2914, 127
      %v2962 = vpop.permute.xlu0 %2961
      %2963 = vrot.lane.b32.xlu0 %v2915, 127
      %v2964 = vpop.permute.xlu0 %2963
      %2965 = vrot.lane.b32.xlu0 %v2916, 127
      %v2966 = vpop.permute.xlu0 %2965
      %2967 = vrot.lane.b32.xlu0 %v2917, 127
      %v2968 = vpop.permute.xlu0 %2967
      %2969 = vrot.lane.b32.xlu0 %v2918, 127
      %v2970 = vpop.permute.xlu0 %2969
      %2971 = vrot.lane.b32.xlu0 %v2919, 127
      %v2972 = vpop.permute.xlu0 %2971
      %2973 = vrot.lane.b32.xlu0 %v2920, 127
      %v2974 = vpop.permute.xlu0 %2973
      %v2975 = vsel %vm1433, %v2940, %v2942
      %v2976 = vsel %vm1433, %v2942, %v2944
      %v2977 = vsel %vm1433, %v2944, %v2946
      %v2978 = vsel %vm1433, %v2946, %v2948
      %v2979 = vsel %vm1433, %v2948, %v2950
      %v2980 = vsel %vm1433, %v2950, %v2952
      %v2981 = vsel %vm1433, %v2952, %v2954
      %v2982 = vsel %vm1433, %v2954, %v2956
      %v2983 = vsel %vm1433, %v2958, %v2960
      %v2984 = vsel %vm1433, %v2960, %v2962
      %v2985 = vsel %vm1433, %v2962, %v2964
      %v2986 = vsel %vm1433, %v2964, %v2966
      %v2987 = vsel %vm1433, %v2966, %v2968
      %v2988 = vsel %vm1433, %v2968, %v2970
      %v2989 = vsel %vm1433, %v2970, %v2972
      %v2990 = vsel %vm1433, %v2972, %v2974
      %3009 = vrot.lane.b32.xlu0 %v2903, 126
      %v3010 = vpop.permute.xlu0 %3009
      %3011 = vrot.lane.b32.xlu0 %v2904, 126
      %v3012 = vpop.permute.xlu0 %3011
      %3013 = vrot.lane.b32.xlu0 %v2905, 126
      %v3014 = vpop.permute.xlu0 %3013
      %3015 = vrot.lane.b32.xlu0 %v2906, 126
      %v3016 = vpop.permute.xlu0 %3015
      %3017 = vrot.lane.b32.xlu0 %v2907, 126
      %v3018 = vpop.permute.xlu0 %3017
      %3019 = vrot.lane.b32.xlu0 %v2908, 126
      %v3020 = vpop.permute.xlu0 %3019
      %3021 = vrot.lane.b32.xlu0 %v2909, 126
      %v3022 = vpop.permute.xlu0 %3021
      %3023 = vrot.lane.b32.xlu0 %v2910, 126
      %v3024 = vpop.permute.xlu0 %3023
      %3025 = vrot.lane.b32.xlu0 %v2911, 126
      %v3026 = vpop.permute.xlu0 %3025
      %3027 = vrot.lane.b32.xlu0 %v2912, 126
      %v3028 = vpop.permute.xlu0 %3027
      %3029 = vrot.lane.b32.xlu0 %v2913, 126
      %v3030 = vpop.permute.xlu0 %3029
      %3031 = vrot.lane.b32.xlu0 %v2914, 126
      %v3032 = vpop.permute.xlu0 %3031
      %3033 = vrot.lane.b32.xlu0 %v2915, 126
      %v3034 = vpop.permute.xlu0 %3033
      %3035 = vrot.lane.b32.xlu0 %v2916, 126
      %v3036 = vpop.permute.xlu0 %3035
      %3037 = vrot.lane.b32.xlu0 %v2917, 126
      %v3038 = vpop.permute.xlu0 %3037
      %3039 = vrot.lane.b32.xlu0 %v2918, 126
      %v3040 = vpop.permute.xlu0 %3039
      %3041 = vrot.lane.b32.xlu0 %v2919, 126
      %v3042 = vpop.permute.xlu0 %3041
      %3043 = vrot.lane.b32.xlu0 %v2920, 126
      %v3044 = vpop.permute.xlu0 %3043
      %v3045 = vsel %vm1504, %v3010, %v3012
      %v3046 = vsel %vm1504, %v3012, %v3014
      %v3047 = vsel %vm1504, %v3014, %v3016
      %v3048 = vsel %vm1504, %v3016, %v3018
      %v3049 = vsel %vm1504, %v3018, %v3020
      %v3050 = vsel %vm1504, %v3020, %v3022
      %v3051 = vsel %vm1504, %v3022, %v3024
      %v3052 = vsel %vm1504, %v3024, %v3026
      %v3053 = vsel %vm1504, %v3028, %v3030
      %v3054 = vsel %vm1504, %v3030, %v3032
      %v3055 = vsel %vm1504, %v3032, %v3034
      %v3056 = vsel %vm1504, %v3034, %v3036
      %v3057 = vsel %vm1504, %v3036, %v3038
      %v3058 = vsel %vm1504, %v3038, %v3040
      %v3059 = vsel %vm1504, %v3040, %v3042
      %v3060 = vsel %vm1504, %v3042, %v3044
      %3079 = vrot.lane.b32.xlu0 %v2903, 94
      %v3080 = vpop.permute.xlu0 %3079
      %3081 = vrot.lane.b32.xlu0 %v2904, 94
      %v3082 = vpop.permute.xlu0 %3081
      %3083 = vrot.lane.b32.xlu0 %v2905, 94
      %v3084 = vpop.permute.xlu0 %3083
      %3085 = vrot.lane.b32.xlu0 %v2906, 94
      %v3086 = vpop.permute.xlu0 %3085
      %3087 = vrot.lane.b32.xlu0 %v2907, 94
      %v3088 = vpop.permute.xlu0 %3087
      %3089 = vrot.lane.b32.xlu0 %v2908, 94
      %v3090 = vpop.permute.xlu0 %3089
      %3091 = vrot.lane.b32.xlu0 %v2909, 94
      %v3092 = vpop.permute.xlu0 %3091
      %3093 = vrot.lane.b32.xlu0 %v2910, 94
      %v3094 = vpop.permute.xlu0 %3093
      %3095 = vrot.lane.b32.xlu0 %v2911, 94
      %v3096 = vpop.permute.xlu0 %3095
      %3097 = vrot.lane.b32.xlu0 %v2912, 94
      %v3098 = vpop.permute.xlu0 %3097
      %3099 = vrot.lane.b32.xlu0 %v2913, 94
      %v3100 = vpop.permute.xlu0 %3099
      %3101 = vrot.lane.b32.xlu0 %v2914, 94
      %v3102 = vpop.permute.xlu0 %3101
      %3103 = vrot.lane.b32.xlu0 %v2915, 94
      %v3104 = vpop.permute.xlu0 %3103
      %3105 = vrot.lane.b32.xlu0 %v2916, 94
      %v3106 = vpop.permute.xlu0 %3105
      %3107 = vrot.lane.b32.xlu0 %v2917, 94
      %v3108 = vpop.permute.xlu0 %3107
      %3109 = vrot.lane.b32.xlu0 %v2918, 94
      %v3110 = vpop.permute.xlu0 %3109
      %3111 = vrot.lane.b32.xlu0 %v2919, 94
      %v3112 = vpop.permute.xlu0 %3111
      %3113 = vrot.lane.b32.xlu0 %v2920, 94
      %v3114 = vpop.permute.xlu0 %3113
      %v3115 = vsel %vm1575, %v3080, %v3082
      %v3116 = vsel %vm1575, %v3082, %v3084
      %v3117 = vsel %vm1575, %v3084, %v3086
      %v3118 = vsel %vm1575, %v3086, %v3088
      %v3119 = vsel %vm1575, %v3088, %v3090
      %v3120 = vsel %vm1575, %v3090, %v3092
      %v3121 = vsel %vm1575, %v3092, %v3094
      %v3122 = vsel %vm1575, %v3094, %v3096
      %v3123 = vsel %vm1575, %v3098, %v3100
      %v3124 = vsel %vm1575, %v3100, %v3102
      %v3125 = vsel %vm1575, %v3102, %v3104
      %v3126 = vsel %vm1575, %v3104, %v3106
      %v3127 = vsel %vm1575, %v3106, %v3108
      %v3128 = vsel %vm1575, %v3108, %v3110
      %v3129 = vsel %vm1575, %v3110, %v3112
      %v3130 = vsel %vm1575, %v3112, %v3114
      %3149 = vrot.lane.b32.xlu0 %v2903, 93
      %v3150 = vpop.permute.xlu0 %3149
      %3151 = vrot.lane.b32.xlu0 %v2904, 93
      %v3152 = vpop.permute.xlu0 %3151
      %3153 = vrot.lane.b32.xlu0 %v2905, 93
      %v3154 = vpop.permute.xlu0 %3153
      %3155 = vrot.lane.b32.xlu0 %v2906, 93
      %v3156 = vpop.permute.xlu0 %3155
      %3157 = vrot.lane.b32.xlu0 %v2907, 93
      %v3158 = vpop.permute.xlu0 %3157
      %3159 = vrot.lane.b32.xlu0 %v2908, 93
      %v3160 = vpop.permute.xlu0 %3159
      %3161 = vrot.lane.b32.xlu0 %v2909, 93
      %v3162 = vpop.permute.xlu0 %3161
      %3163 = vrot.lane.b32.xlu0 %v2910, 93
      %v3164 = vpop.permute.xlu0 %3163
      %3165 = vrot.lane.b32.xlu0 %v2911, 93
      %v3166 = vpop.permute.xlu0 %3165
      %3167 = vrot.lane.b32.xlu0 %v2912, 93
      %v3168 = vpop.permute.xlu0 %3167
      %3169 = vrot.lane.b32.xlu0 %v2913, 93
      %v3170 = vpop.permute.xlu0 %3169
      %3171 = vrot.lane.b32.xlu0 %v2914, 93
      %v3172 = vpop.permute.xlu0 %3171
      %3173 = vrot.lane.b32.xlu0 %v2915, 93
      %v3174 = vpop.permute.xlu0 %3173
      %3175 = vrot.lane.b32.xlu0 %v2916, 93
      %v3176 = vpop.permute.xlu0 %3175
      %3177 = vrot.lane.b32.xlu0 %v2917, 93
      %v3178 = vpop.permute.xlu0 %3177
      %3179 = vrot.lane.b32.xlu0 %v2918, 93
      %v3180 = vpop.permute.xlu0 %3179
      %3181 = vrot.lane.b32.xlu0 %v2919, 93
      %v3182 = vpop.permute.xlu0 %3181
      %3183 = vrot.lane.b32.xlu0 %v2920, 93
      %v3184 = vpop.permute.xlu0 %3183
      %v3185 = vsel %vm1646, %v3150, %v3152
      %v3186 = vsel %vm1646, %v3152, %v3154
      %v3187 = vsel %vm1646, %v3154, %v3156
      %v3188 = vsel %vm1646, %v3156, %v3158
      %v3189 = vsel %vm1646, %v3158, %v3160
      %v3190 = vsel %vm1646, %v3160, %v3162
      %v3191 = vsel %vm1646, %v3162, %v3164
      %v3192 = vsel %vm1646, %v3164, %v3166
      %v3193 = vsel %vm1646, %v3168, %v3170
      %v3194 = vsel %vm1646, %v3170, %v3172
      %v3195 = vsel %vm1646, %v3172, %v3174
      %v3196 = vsel %vm1646, %v3174, %v3176
      %v3197 = vsel %vm1646, %v3176, %v3178
      %v3198 = vsel %vm1646, %v3178, %v3180
      %v3199 = vsel %vm1646, %v3180, %v3182
      %v3200 = vsel %vm1646, %v3182, %v3184
      %3219 = vrot.lane.b32.xlu0 %v2903, 92
      %v3220 = vpop.permute.xlu0 %3219
      %3221 = vrot.lane.b32.xlu0 %v2904, 92
      %v3222 = vpop.permute.xlu0 %3221
      %3223 = vrot.lane.b32.xlu0 %v2905, 92
      %v3224 = vpop.permute.xlu0 %3223
      %3225 = vrot.lane.b32.xlu0 %v2906, 92
      %v3226 = vpop.permute.xlu0 %3225
      %3227 = vrot.lane.b32.xlu0 %v2907, 92
      %v3228 = vpop.permute.xlu0 %3227
      %3229 = vrot.lane.b32.xlu0 %v2908, 92
      %v3230 = vpop.permute.xlu0 %3229
      %3231 = vrot.lane.b32.xlu0 %v2909, 92
      %v3232 = vpop.permute.xlu0 %3231
      %3233 = vrot.lane.b32.xlu0 %v2910, 92
      %v3234 = vpop.permute.xlu0 %3233
      %3235 = vrot.lane.b32.xlu0 %v2911, 92
      %v3236 = vpop.permute.xlu0 %3235
      %3237 = vrot.lane.b32.xlu0 %v2912, 92
      %v3238 = vpop.permute.xlu0 %3237
      %3239 = vrot.lane.b32.xlu0 %v2913, 92
      %v3240 = vpop.permute.xlu0 %3239
      %3241 = vrot.lane.b32.xlu0 %v2914, 92
      %v3242 = vpop.permute.xlu0 %3241
      %3243 = vrot.lane.b32.xlu0 %v2915, 92
      %v3244 = vpop.permute.xlu0 %3243
      %3245 = vrot.lane.b32.xlu0 %v2916, 92
      %v3246 = vpop.permute.xlu0 %3245
      %3247 = vrot.lane.b32.xlu0 %v2917, 92
      %v3248 = vpop.permute.xlu0 %3247
      %3249 = vrot.lane.b32.xlu0 %v2918, 92
      %v3250 = vpop.permute.xlu0 %3249
      %3251 = vrot.lane.b32.xlu0 %v2919, 92
      %v3252 = vpop.permute.xlu0 %3251
      %3253 = vrot.lane.b32.xlu0 %v2920, 92
      %v3254 = vpop.permute.xlu0 %3253
      %v3255 = vsel %vm1717, %v3220, %v3222
      %v3256 = vsel %vm1717, %v3222, %v3224
      %v3257 = vsel %vm1717, %v3224, %v3226
      %v3258 = vsel %vm1717, %v3226, %v3228
      %v3259 = vsel %vm1717, %v3228, %v3230
      %v3260 = vsel %vm1717, %v3230, %v3232
      %v3261 = vsel %vm1717, %v3232, %v3234
      %v3262 = vsel %vm1717, %v3234, %v3236
      %v3263 = vsel %vm1717, %v3238, %v3240
      %v3264 = vsel %vm1717, %v3240, %v3242
      %v3265 = vsel %vm1717, %v3242, %v3244
      %v3266 = vsel %vm1717, %v3244, %v3246
      %v3267 = vsel %vm1717, %v3246, %v3248
      %v3268 = vsel %vm1717, %v3248, %v3250
      %v3269 = vsel %vm1717, %v3250, %v3252
      %v3270 = vsel %vm1717, %v3252, %v3254
      %v3289 = vunpack.c.h.b16 %v2831
      %v3290 = vunpack.c.h.b16 %v2836
      %v3291 = vunpack.c.h.b16 %v2841
      %v3292 = vunpack.c.h.b16 %v2846
      %v3293 = vpack.c.b16 %v3290, %v3289
      %v3294 = vpack.c.b16 %v3292, %v3291
      %3295 = vrot.lane.b32.xlu0 %v2903, 60
      %v3296 = vpop.permute.xlu0 %3295
      %3297 = vrot.lane.b32.xlu0 %v2904, 60
      %v3298 = vpop.permute.xlu0 %3297
      %3299 = vrot.lane.b32.xlu0 %v2905, 60
      %v3300 = vpop.permute.xlu0 %3299
      %3301 = vrot.lane.b32.xlu0 %v2906, 60
      %v3302 = vpop.permute.xlu0 %3301
      %3303 = vrot.lane.b32.xlu0 %v2907, 60
      %v3304 = vpop.permute.xlu0 %3303
      %3305 = vrot.lane.b32.xlu0 %v2908, 60
      %v3306 = vpop.permute.xlu0 %3305
      %3307 = vrot.lane.b32.xlu0 %v2909, 60
      %v3308 = vpop.permute.xlu0 %3307
      %3309 = vrot.lane.b32.xlu0 %v2910, 60
      %v3310 = vpop.permute.xlu0 %3309
      %3311 = vrot.lane.b32.xlu0 %v2911, 60
      %v3312 = vpop.permute.xlu0 %3311
      %3313 = vrot.lane.b32.xlu0 %v3293, 60
      %v3314 = vpop.permute.xlu0 %3313
      %3315 = vrot.lane.b32.xlu0 %v2912, 60
      %v3316 = vpop.permute.xlu0 %3315
      %3317 = vrot.lane.b32.xlu0 %v2913, 60
      %v3318 = vpop.permute.xlu0 %3317
      %3319 = vrot.lane.b32.xlu0 %v2914, 60
      %v3320 = vpop.permute.xlu0 %3319
      %3321 = vrot.lane.b32.xlu0 %v2915, 60
      %v3322 = vpop.permute.xlu0 %3321
      %3323 = vrot.lane.b32.xlu0 %v2916, 60
      %v3324 = vpop.permute.xlu0 %3323
      %3325 = vrot.lane.b32.xlu0 %v2917, 60
      %v3326 = vpop.permute.xlu0 %3325
      %3327 = vrot.lane.b32.xlu0 %v2918, 60
      %v3328 = vpop.permute.xlu0 %3327
      %3329 = vrot.lane.b32.xlu0 %v2919, 60
      %v3330 = vpop.permute.xlu0 %3329
      %3331 = vrot.lane.b32.xlu0 %v2920, 60
      %v3332 = vpop.permute.xlu0 %3331
      %3333 = vrot.lane.b32.xlu0 %v3294, 60
      %v3334 = vpop.permute.xlu0 %3333
      %v3335 = vsel %vm1798, %v3296, %v3298
      %v3336 = vsel %vm1798, %v3298, %v3300
      %v3337 = vsel %vm1798, %v3300, %v3302
      %v3338 = vsel %vm1798, %v3302, %v3304
      %v3339 = vsel %vm1798, %v3304, %v3306
      %v3340 = vsel %vm1798, %v3306, %v3308
      %v3341 = vsel %vm1798, %v3308, %v3310
      %v3342 = vsel %vm1798, %v3310, %v3312
      %v3343 = vsel %vm1798, %v3312, %v3314
      %v3344 = vsel %vm1798, %v3316, %v3318
      %v3345 = vsel %vm1798, %v3318, %v3320
      %v3346 = vsel %vm1798, %v3320, %v3322
      %v3347 = vsel %vm1798, %v3322, %v3324
      %v3348 = vsel %vm1798, %v3324, %v3326
      %v3349 = vsel %vm1798, %v3326, %v3328
      %v3350 = vsel %vm1798, %v3328, %v3330
      %v3351 = vsel %vm1798, %v3330, %v3332
      %v3352 = vsel %vm1798, %v3332, %v3334
      %3371 = vrot.lane.b32.xlu0 %v2903, 59
      %v3372 = vpop.permute.xlu0 %3371
      %3373 = vrot.lane.b32.xlu0 %v2904, 59
      %v3374 = vpop.permute.xlu0 %3373
      %3375 = vrot.lane.b32.xlu0 %v2905, 59
      %v3376 = vpop.permute.xlu0 %3375
      %3377 = vrot.lane.b32.xlu0 %v2906, 59
      %v3378 = vpop.permute.xlu0 %3377
      %3379 = vrot.lane.b32.xlu0 %v2907, 59
      %v3380 = vpop.permute.xlu0 %3379
      %3381 = vrot.lane.b32.xlu0 %v2908, 59
      %v3382 = vpop.permute.xlu0 %3381
      %3383 = vrot.lane.b32.xlu0 %v2909, 59
      %v3384 = vpop.permute.xlu0 %3383
      %3385 = vrot.lane.b32.xlu0 %v2910, 59
      %v3386 = vpop.permute.xlu0 %3385
      %3387 = vrot.lane.b32.xlu0 %v2911, 59
      %v3388 = vpop.permute.xlu0 %3387
      %3389 = vrot.lane.b32.xlu0 %v3293, 59
      %v3390 = vpop.permute.xlu0 %3389
      %3391 = vrot.lane.b32.xlu0 %v2912, 59
      %v3392 = vpop.permute.xlu0 %3391
      %3393 = vrot.lane.b32.xlu0 %v2913, 59
      %v3394 = vpop.permute.xlu0 %3393
      %3395 = vrot.lane.b32.xlu0 %v2914, 59
      %v3396 = vpop.permute.xlu0 %3395
      %3397 = vrot.lane.b32.xlu0 %v2915, 59
      %v3398 = vpop.permute.xlu0 %3397
      %3399 = vrot.lane.b32.xlu0 %v2916, 59
      %v3400 = vpop.permute.xlu0 %3399
      %3401 = vrot.lane.b32.xlu0 %v2917, 59
      %v3402 = vpop.permute.xlu0 %3401
      %3403 = vrot.lane.b32.xlu0 %v2918, 59
      %v3404 = vpop.permute.xlu0 %3403
      %3405 = vrot.lane.b32.xlu0 %v2919, 59
      %v3406 = vpop.permute.xlu0 %3405
      %3407 = vrot.lane.b32.xlu0 %v2920, 59
      %v3408 = vpop.permute.xlu0 %3407
      %3409 = vrot.lane.b32.xlu0 %v3294, 59
      %v3410 = vpop.permute.xlu0 %3409
      %v3411 = vsel %vm1875, %v3372, %v3374
      %v3412 = vsel %vm1875, %v3374, %v3376
      %v3413 = vsel %vm1875, %v3376, %v3378
      %v3414 = vsel %vm1875, %v3378, %v3380
      %v3415 = vsel %vm1875, %v3380, %v3382
      %v3416 = vsel %vm1875, %v3382, %v3384
      %v3417 = vsel %vm1875, %v3384, %v3386
      %v3418 = vsel %vm1875, %v3386, %v3388
      %v3419 = vsel %vm1875, %v3388, %v3390
      %v3420 = vsel %vm1875, %v3392, %v3394
      %v3421 = vsel %vm1875, %v3394, %v3396
      %v3422 = vsel %vm1875, %v3396, %v3398
      %v3423 = vsel %vm1875, %v3398, %v3400
      %v3424 = vsel %vm1875, %v3400, %v3402
      %v3425 = vsel %vm1875, %v3402, %v3404
      %v3426 = vsel %vm1875, %v3404, %v3406
      %v3427 = vsel %vm1875, %v3406, %v3408
      %v3428 = vsel %vm1875, %v3408, %v3410
      %3447 = vrot.lane.b32.xlu0 %v2903, 58
      %v3448 = vpop.permute.xlu0 %3447
      %3449 = vrot.lane.b32.xlu0 %v2904, 58
      %v3450 = vpop.permute.xlu0 %3449
      %3451 = vrot.lane.b32.xlu0 %v2905, 58
      %v3452 = vpop.permute.xlu0 %3451
      %3453 = vrot.lane.b32.xlu0 %v2906, 58
      %v3454 = vpop.permute.xlu0 %3453
      %3455 = vrot.lane.b32.xlu0 %v2907, 58
      %v3456 = vpop.permute.xlu0 %3455
      %3457 = vrot.lane.b32.xlu0 %v2908, 58
      %v3458 = vpop.permute.xlu0 %3457
      %3459 = vrot.lane.b32.xlu0 %v2909, 58
      %v3460 = vpop.permute.xlu0 %3459
      %3461 = vrot.lane.b32.xlu0 %v2910, 58
      %v3462 = vpop.permute.xlu0 %3461
      %3463 = vrot.lane.b32.xlu0 %v2911, 58
      %v3464 = vpop.permute.xlu0 %3463
      %3465 = vrot.lane.b32.xlu0 %v3293, 58
      %v3466 = vpop.permute.xlu0 %3465
      %3467 = vrot.lane.b32.xlu0 %v2912, 58
      %v3468 = vpop.permute.xlu0 %3467
      %3469 = vrot.lane.b32.xlu0 %v2913, 58
      %v3470 = vpop.permute.xlu0 %3469
      %3471 = vrot.lane.b32.xlu0 %v2914, 58
      %v3472 = vpop.permute.xlu0 %3471
      %3473 = vrot.lane.b32.xlu0 %v2915, 58
      %v3474 = vpop.permute.xlu0 %3473
      %3475 = vrot.lane.b32.xlu0 %v2916, 58
      %v3476 = vpop.permute.xlu0 %3475
      %3477 = vrot.lane.b32.xlu0 %v2917, 58
      %v3478 = vpop.permute.xlu0 %3477
      %3479 = vrot.lane.b32.xlu0 %v2918, 58
      %v3480 = vpop.permute.xlu0 %3479
      %3481 = vrot.lane.b32.xlu0 %v2919, 58
      %v3482 = vpop.permute.xlu0 %3481
      %3483 = vrot.lane.b32.xlu0 %v2920, 58
      %v3484 = vpop.permute.xlu0 %3483
      %3485 = vrot.lane.b32.xlu0 %v3294, 58
      %v3486 = vpop.permute.xlu0 %3485
      %v3487 = vsel %vm1952, %v3448, %v3450
      %v3488 = vsel %vm1952, %v3450, %v3452
      %v3489 = vsel %vm1952, %v3452, %v3454
      %v3490 = vsel %vm1952, %v3454, %v3456
      %v3491 = vsel %vm1952, %v3456, %v3458
      %v3492 = vsel %vm1952, %v3458, %v3460
      %v3493 = vsel %vm1952, %v3460, %v3462
      %v3494 = vsel %vm1952, %v3462, %v3464
      %v3495 = vsel %vm1952, %v3464, %v3466
      %v3496 = vsel %vm1952, %v3468, %v3470
      %v3497 = vsel %vm1952, %v3470, %v3472
      %v3498 = vsel %vm1952, %v3472, %v3474
      %v3499 = vsel %vm1952, %v3474, %v3476
      %v3500 = vsel %vm1952, %v3476, %v3478
      %v3501 = vsel %vm1952, %v3478, %v3480
      %v3502 = vsel %vm1952, %v3480, %v3482
      %v3503 = vsel %vm1952, %v3482, %v3484
      %v3504 = vsel %vm1952, %v3484, %v3486
      %v3523 = vld [vmem:[%s6] sm:$0xff]
      %v3524 = vld [vmem:[%s6 + $0x8] sm:$0xf]
      %v3527 = vunpack.c.l.b16 %v3523
      %v3528 = vunpack.c.h.b16 %v3523
      %v3529 = vunpack.c.l.b16 %v3524
      %v3530 = vpack.c.b16 %v3527, %v3527
      %v3531 = vpack.c.b16 %v3528, %v3528
      %v3532 = vpack.c.b16 %v3529, %v3529
      %v3536 = vsel %vm2051, %v3532, 0
      %3538 = vmatpush.bf16.msra.mxu0 %v3123
      %3539 = vmatpush.bf16.msra.mxu0 %v3115
      %3540 = vmatpush.bf16.msra.mxu0 %v3053
      %3541 = vmatpush.bf16.msra.mxu0 %v3045
      %3542 = vmatpush.bf16.msra.mxu0 %v2983
      %3543 = vmatpush.bf16.msra.mxu0 %v2975
      %3544 = vmatpush.bf16.msra.mxu0 %v2912
      %3545 = vmatpush.bf16.msra.mxu0 %v2903
      %3546 = vmatmul.bf16.gmra.mxu0 %v3530
      %v3547 = vpop.f32.mrf.mxu0
      %v3548 = vadd.f32 0.0, %v3547
      %v3549 = vpop.f32.mrf.mxu0
      %3550 = vdwg.mxu0
      %3551 = vmatpush.bf16.msra.mxu0 %v3420
      %3552 = vmatpush.bf16.msra.mxu0 %v3411
      %3553 = vmatpush.bf16.msra.mxu0 %v3344
      %3554 = vmatpush.bf16.msra.mxu0 %v3335
      %3555 = vmatpush.bf16.msra.mxu0 %v3263
      %3556 = vmatpush.bf16.msra.mxu0 %v3255
      %3557 = vmatpush.bf16.msra.mxu0 %v3193
      %3558 = vmatpush.bf16.msra.mxu0 %v3185
      %3559 = vmatmul.bf16.gmra.mxu0 %v3531
      %v3560 = vpop.f32.mrf.mxu0
      %v3561 = vadd.f32 %v3548, %v3560
      %v3562 = vpop.f32.mrf.mxu0
      %3563 = vdwg.mxu0
      %3564 = vmatpush.bf16.msra.mxu0 0
      %3565 = vmatpush.bf16.msra.mxu0 0
      %3566 = vmatpush.bf16.msra.mxu0 0
      %3567 = vmatpush.bf16.msra.mxu0 0
      %3568 = vmatpush.bf16.msra.mxu0 0
      %3569 = vmatpush.bf16.msra.mxu0 0
      %3570 = vmatpush.bf16.msra.mxu0 %v3496
      %3571 = vmatpush.bf16.msra.mxu0 %v3487
      %3572 = vmatmul.bf16.gmra.mxu0 %v3536
      %v3573 = vpop.f32.mrf.mxu0
      %v3574 = vadd.f32 %v3561, %v3573
      %v3575 = vpop.f32.mrf.mxu0
      %3576 = vdwg.mxu0
      %3577 = vmatpush.bf16.msra.mxu0 %v3124
      %3578 = vmatpush.bf16.msra.mxu0 %v3116
      %3579 = vmatpush.bf16.msra.mxu0 %v3054
      %3580 = vmatpush.bf16.msra.mxu0 %v3046
      %3581 = vmatpush.bf16.msra.mxu0 %v2984
      %3582 = vmatpush.bf16.msra.mxu0 %v2976
      %3583 = vmatpush.bf16.msra.mxu0 %v2913
      %3584 = vmatpush.bf16.msra.mxu0 %v2904
      %3585 = vmatmul.bf16.gmra.mxu0 %v3530
      %v3586 = vpop.f32.mrf.mxu0
      %v3587 = vadd.f32 0.0, %v3586
      %v3588 = vpop.f32.mrf.mxu0
      %3589 = vdwg.mxu0
      %3590 = vmatpush.bf16.msra.mxu0 %v3421
      %3591 = vmatpush.bf16.msra.mxu0 %v3412
      %3592 = vmatpush.bf16.msra.mxu0 %v3345
      %3593 = vmatpush.bf16.msra.mxu0 %v3336
      %3594 = vmatpush.bf16.msra.mxu0 %v3264
      %3595 = vmatpush.bf16.msra.mxu0 %v3256
      %3596 = vmatpush.bf16.msra.mxu0 %v3194
      %3597 = vmatpush.bf16.msra.mxu0 %v3186
      %3598 = vmatmul.bf16.gmra.mxu0 %v3531
      %v3599 = vpop.f32.mrf.mxu0
      %v3600 = vadd.f32 %v3587, %v3599
      %v3601 = vpop.f32.mrf.mxu0
      %3602 = vdwg.mxu0
      %3603 = vmatpush.bf16.msra.mxu0 0
      %3604 = vmatpush.bf16.msra.mxu0 0
      %3605 = vmatpush.bf16.msra.mxu0 0
      %3606 = vmatpush.bf16.msra.mxu0 0
      %3607 = vmatpush.bf16.msra.mxu0 0
      %3608 = vmatpush.bf16.msra.mxu0 0
      %3609 = vmatpush.bf16.msra.mxu0 %v3497
      %3610 = vmatpush.bf16.msra.mxu0 %v3488
      %3611 = vmatmul.bf16.gmra.mxu0 %v3536
      %v3612 = vpop.f32.mrf.mxu0
      %v3613 = vadd.f32 %v3600, %v3612
      %v3614 = vpop.f32.mrf.mxu0
      %3615 = vdwg.mxu0
      %3616 = vmatpush.bf16.msra.mxu0 %v3125
      %3617 = vmatpush.bf16.msra.mxu0 %v3117
      %3618 = vmatpush.bf16.msra.mxu0 %v3055
      %3619 = vmatpush.bf16.msra.mxu0 %v3047
      %3620 = vmatpush.bf16.msra.mxu0 %v2985
      %3621 = vmatpush.bf16.msra.mxu0 %v2977
      %3622 = vmatpush.bf16.msra.mxu0 %v2914
      %3623 = vmatpush.bf16.msra.mxu0 %v2905
      %3624 = vmatmul.bf16.gmra.mxu0 %v3530
      %v3625 = vpop.f32.mrf.mxu0
      %v3626 = vadd.f32 0.0, %v3625
      %v3627 = vpop.f32.mrf.mxu0
      %3628 = vdwg.mxu0
      %3629 = vmatpush.bf16.msra.mxu0 %v3422
      %3630 = vmatpush.bf16.msra.mxu0 %v3413
      %3631 = vmatpush.bf16.msra.mxu0 %v3346
      %3632 = vmatpush.bf16.msra.mxu0 %v3337
      %3633 = vmatpush.bf16.msra.mxu0 %v3265
      %3634 = vmatpush.bf16.msra.mxu0 %v3257
      %3635 = vmatpush.bf16.msra.mxu0 %v3195
      %3636 = vmatpush.bf16.msra.mxu0 %v3187
      %3637 = vmatmul.bf16.gmra.mxu0 %v3531
      %v3638 = vpop.f32.mrf.mxu0
      %v3639 = vadd.f32 %v3626, %v3638
      %v3640 = vpop.f32.mrf.mxu0
      %3641 = vdwg.mxu0
      %3642 = vmatpush.bf16.msra.mxu0 0
      %3643 = vmatpush.bf16.msra.mxu0 0
      %3644 = vmatpush.bf16.msra.mxu0 0
      %3645 = vmatpush.bf16.msra.mxu0 0
      %3646 = vmatpush.bf16.msra.mxu0 0
      %3647 = vmatpush.bf16.msra.mxu0 0
      %3648 = vmatpush.bf16.msra.mxu0 %v3498
      %3649 = vmatpush.bf16.msra.mxu0 %v3489
      %3650 = vmatmul.bf16.gmra.mxu0 %v3536
      %v3651 = vpop.f32.mrf.mxu0
      %v3652 = vadd.f32 %v3639, %v3651
      %v3653 = vpop.f32.mrf.mxu0
      %3654 = vdwg.mxu0
      %3655 = vmatpush.bf16.msra.mxu0 %v3126
      %3656 = vmatpush.bf16.msra.mxu0 %v3118
      %3657 = vmatpush.bf16.msra.mxu0 %v3056
      %3658 = vmatpush.bf16.msra.mxu0 %v3048
      %3659 = vmatpush.bf16.msra.mxu0 %v2986
      %3660 = vmatpush.bf16.msra.mxu0 %v2978
      %3661 = vmatpush.bf16.msra.mxu0 %v2915
      %3662 = vmatpush.bf16.msra.mxu0 %v2906
      %3663 = vmatmul.bf16.gmra.mxu0 %v3530
      %v3664 = vpop.f32.mrf.mxu0
      %v3665 = vadd.f32 0.0, %v3664
      %v3666 = vpop.f32.mrf.mxu0
      %3667 = vdwg.mxu0
      %3668 = vmatpush.bf16.msra.mxu0 %v3423
      %3669 = vmatpush.bf16.msra.mxu0 %v3414
      %3670 = vmatpush.bf16.msra.mxu0 %v3347
      %3671 = vmatpush.bf16.msra.mxu0 %v3338
      %3672 = vmatpush.bf16.msra.mxu0 %v3266
      %3673 = vmatpush.bf16.msra.mxu0 %v3258
      %3674 = vmatpush.bf16.msra.mxu0 %v3196
      %3675 = vmatpush.bf16.msra.mxu0 %v3188
      %3676 = vmatmul.bf16.gmra.mxu0 %v3531
      %v3677 = vpop.f32.mrf.mxu0
      %v3678 = vadd.f32 %v3665, %v3677
      %v3679 = vpop.f32.mrf.mxu0
      %3680 = vdwg.mxu0
      %3681 = vmatpush.bf16.msra.mxu0 0
      %3682 = vmatpush.bf16.msra.mxu0 0
      %3683 = vmatpush.bf16.msra.mxu0 0
      %3684 = vmatpush.bf16.msra.mxu0 0
      %3685 = vmatpush.bf16.msra.mxu0 0
      %3686 = vmatpush.bf16.msra.mxu0 0
      %3687 = vmatpush.bf16.msra.mxu0 %v3499
      %3688 = vmatpush.bf16.msra.mxu0 %v3490
      %3689 = vmatmul.bf16.gmra.mxu0 %v3536
      %v3690 = vpop.f32.mrf.mxu0
      %v3691 = vadd.f32 %v3678, %v3690
      %v3692 = vpop.f32.mrf.mxu0
      %3693 = vdwg.mxu0
      %3694 = vmatpush.bf16.msra.mxu0 %v3127
      %3695 = vmatpush.bf16.msra.mxu0 %v3119
      %3696 = vmatpush.bf16.msra.mxu0 %v3057
      %3697 = vmatpush.bf16.msra.mxu0 %v3049
      %3698 = vmatpush.bf16.msra.mxu0 %v2987
      %3699 = vmatpush.bf16.msra.mxu0 %v2979
      %3700 = vmatpush.bf16.msra.mxu0 %v2916
      %3701 = vmatpush.bf16.msra.mxu0 %v2907
      %3702 = vmatmul.bf16.gmra.mxu0 %v3530
      %v3703 = vpop.f32.mrf.mxu0
      %v3704 = vadd.f32 0.0, %v3703
      %v3705 = vpop.f32.mrf.mxu0
      %3706 = vdwg.mxu0
      %3707 = vmatpush.bf16.msra.mxu0 %v3424
      %3708 = vmatpush.bf16.msra.mxu0 %v3415
      %3709 = vmatpush.bf16.msra.mxu0 %v3348
      %3710 = vmatpush.bf16.msra.mxu0 %v3339
      %3711 = vmatpush.bf16.msra.mxu0 %v3267
      %3712 = vmatpush.bf16.msra.mxu0 %v3259
      %3713 = vmatpush.bf16.msra.mxu0 %v3197
      %3714 = vmatpush.bf16.msra.mxu0 %v3189
      %3715 = vmatmul.bf16.gmra.mxu0 %v3531
      %v3716 = vpop.f32.mrf.mxu0
      %v3717 = vadd.f32 %v3704, %v3716
      %v3718 = vpop.f32.mrf.mxu0
      %3719 = vdwg.mxu0
      %3720 = vmatpush.bf16.msra.mxu0 0
      %3721 = vmatpush.bf16.msra.mxu0 0
      %3722 = vmatpush.bf16.msra.mxu0 0
      %3723 = vmatpush.bf16.msra.mxu0 0
      %3724 = vmatpush.bf16.msra.mxu0 0
      %3725 = vmatpush.bf16.msra.mxu0 0
      %3726 = vmatpush.bf16.msra.mxu0 %v3500
      %3727 = vmatpush.bf16.msra.mxu0 %v3491
      %3728 = vmatmul.bf16.gmra.mxu0 %v3536
      %v3729 = vpop.f32.mrf.mxu0
      %v3730 = vadd.f32 %v3717, %v3729
      %v3731 = vpop.f32.mrf.mxu0
      %3732 = vdwg.mxu0
      %3733 = vmatpush.bf16.msra.mxu0 %v3128
      %3734 = vmatpush.bf16.msra.mxu0 %v3120
      %3735 = vmatpush.bf16.msra.mxu0 %v3058
      %3736 = vmatpush.bf16.msra.mxu0 %v3050
      %3737 = vmatpush.bf16.msra.mxu0 %v2988
      %3738 = vmatpush.bf16.msra.mxu0 %v2980
      %3739 = vmatpush.bf16.msra.mxu0 %v2917
      %3740 = vmatpush.bf16.msra.mxu0 %v2908
      %3741 = vmatmul.bf16.gmra.mxu0 %v3530
      %v3742 = vpop.f32.mrf.mxu0
      %v3743 = vadd.f32 0.0, %v3742
      %v3744 = vpop.f32.mrf.mxu0
      %3745 = vdwg.mxu0
      %3746 = vmatpush.bf16.msra.mxu0 %v3425
      %3747 = vmatpush.bf16.msra.mxu0 %v3416
      %3748 = vmatpush.bf16.msra.mxu0 %v3349
      %3749 = vmatpush.bf16.msra.mxu0 %v3340
      %3750 = vmatpush.bf16.msra.mxu0 %v3268
      %3751 = vmatpush.bf16.msra.mxu0 %v3260
      %3752 = vmatpush.bf16.msra.mxu0 %v3198
      %3753 = vmatpush.bf16.msra.mxu0 %v3190
      %3754 = vmatmul.bf16.gmra.mxu0 %v3531
      %v3755 = vpop.f32.mrf.mxu0
      %v3756 = vadd.f32 %v3743, %v3755
      %v3757 = vpop.f32.mrf.mxu0
      %3758 = vdwg.mxu0
      %3759 = vmatpush.bf16.msra.mxu0 0
      %3760 = vmatpush.bf16.msra.mxu0 0
      %3761 = vmatpush.bf16.msra.mxu0 0
      %3762 = vmatpush.bf16.msra.mxu0 0
      %3763 = vmatpush.bf16.msra.mxu0 0
      %3764 = vmatpush.bf16.msra.mxu0 0
      %3765 = vmatpush.bf16.msra.mxu0 %v3501
      %3766 = vmatpush.bf16.msra.mxu0 %v3492
      %3767 = vmatmul.bf16.gmra.mxu0 %v3536
      %v3768 = vpop.f32.mrf.mxu0
      %v3769 = vadd.f32 %v3756, %v3768
      %v3770 = vpop.f32.mrf.mxu0
      %3771 = vdwg.mxu0
      %3772 = vmatpush.bf16.msra.mxu0 %v3129
      %3773 = vmatpush.bf16.msra.mxu0 %v3121
      %3774 = vmatpush.bf16.msra.mxu0 %v3059
      %3775 = vmatpush.bf16.msra.mxu0 %v3051
      %3776 = vmatpush.bf16.msra.mxu0 %v2989
      %3777 = vmatpush.bf16.msra.mxu0 %v2981
      %3778 = vmatpush.bf16.msra.mxu0 %v2918
      %3779 = vmatpush.bf16.msra.mxu0 %v2909
      %3780 = vmatmul.bf16.gmra.mxu0 %v3530
      %v3781 = vpop.f32.mrf.mxu0
      %v3782 = vadd.f32 0.0, %v3781
      %v3783 = vpop.f32.mrf.mxu0
      %3784 = vdwg.mxu0
      %3785 = vmatpush.bf16.msra.mxu0 %v3426
      %3786 = vmatpush.bf16.msra.mxu0 %v3417
      %3787 = vmatpush.bf16.msra.mxu0 %v3350
      %3788 = vmatpush.bf16.msra.mxu0 %v3341
      %3789 = vmatpush.bf16.msra.mxu0 %v3269
      %3790 = vmatpush.bf16.msra.mxu0 %v3261
      %3791 = vmatpush.bf16.msra.mxu0 %v3199
      %3792 = vmatpush.bf16.msra.mxu0 %v3191
      %3793 = vmatmul.bf16.gmra.mxu0 %v3531
      %v3794 = vpop.f32.mrf.mxu0
      %v3795 = vadd.f32 %v3782, %v3794
      %v3796 = vpop.f32.mrf.mxu0
      %3797 = vdwg.mxu0
      %3798 = vmatpush.bf16.msra.mxu0 0
      %3799 = vmatpush.bf16.msra.mxu0 0
      %3800 = vmatpush.bf16.msra.mxu0 0
      %3801 = vmatpush.bf16.msra.mxu0 0
      %3802 = vmatpush.bf16.msra.mxu0 0
      %3803 = vmatpush.bf16.msra.mxu0 0
      %3804 = vmatpush.bf16.msra.mxu0 %v3502
      %3805 = vmatpush.bf16.msra.mxu0 %v3493
      %3806 = vmatmul.bf16.gmra.mxu0 %v3536
      %v3807 = vpop.f32.mrf.mxu0
      %v3808 = vadd.f32 %v3795, %v3807
      %v3809 = vpop.f32.mrf.mxu0
      %3810 = vdwg.mxu0
      %3811 = vmatpush.bf16.msra.mxu0 %v3130
      %3812 = vmatpush.bf16.msra.mxu0 %v3122
      %3813 = vmatpush.bf16.msra.mxu0 %v3060
      %3814 = vmatpush.bf16.msra.mxu0 %v3052
      %3815 = vmatpush.bf16.msra.mxu0 %v2990
      %3816 = vmatpush.bf16.msra.mxu0 %v2982
      %3817 = vmatpush.bf16.msra.mxu0 %v2919
      %3818 = vmatpush.bf16.msra.mxu0 %v2910
      %3819 = vmatmul.bf16.gmra.mxu0 %v3530
      %v3820 = vpop.f32.mrf.mxu0
      %v3821 = vadd.f32 0.0, %v3820
      %v3822 = vpop.f32.mrf.mxu0
      %3823 = vdwg.mxu0
      %3824 = vmatpush.bf16.msra.mxu0 %v3427
      %3825 = vmatpush.bf16.msra.mxu0 %v3418
      %3826 = vmatpush.bf16.msra.mxu0 %v3351
      %3827 = vmatpush.bf16.msra.mxu0 %v3342
      %3828 = vmatpush.bf16.msra.mxu0 %v3270
      %3829 = vmatpush.bf16.msra.mxu0 %v3262
      %3830 = vmatpush.bf16.msra.mxu0 %v3200
      %3831 = vmatpush.bf16.msra.mxu0 %v3192
      %3832 = vmatmul.bf16.gmra.mxu0 %v3531
      %v3833 = vpop.f32.mrf.mxu0
      %v3834 = vadd.f32 %v3821, %v3833
      %v3835 = vpop.f32.mrf.mxu0
      %3836 = vdwg.mxu0
      %3837 = vmatpush.bf16.msra.mxu0 0
      %3838 = vmatpush.bf16.msra.mxu0 0
      %3839 = vmatpush.bf16.msra.mxu0 0
      %3840 = vmatpush.bf16.msra.mxu0 0
      %3841 = vmatpush.bf16.msra.mxu0 0
      %3842 = vmatpush.bf16.msra.mxu0 0
      %3843 = vmatpush.bf16.msra.mxu0 %v3503
      %3844 = vmatpush.bf16.msra.mxu0 %v3494
      %3845 = vmatmul.bf16.gmra.mxu0 %v3536
      %v3846 = vpop.f32.mrf.mxu0
      %v3847 = vadd.f32 %v3834, %v3846
      %v3848 = vpop.f32.mrf.mxu0
      %3849 = vdwg.mxu0
      %3850 = vmatpush.bf16.msra.mxu0 %v3114
      %3851 = vmatpush.bf16.msra.mxu0 %v3096
      %3852 = vmatpush.bf16.msra.mxu0 %v3044
      %3853 = vmatpush.bf16.msra.mxu0 %v3026
      %3854 = vmatpush.bf16.msra.mxu0 %v2974
      %3855 = vmatpush.bf16.msra.mxu0 %v2956
      %3856 = vmatpush.bf16.msra.mxu0 %v2920
      %3857 = vmatpush.bf16.msra.mxu0 %v2911
      %3858 = vmatmul.bf16.gmra.mxu0 %v3530
      %v3859 = vpop.f32.mrf.mxu0
      %v3860 = vadd.f32 0.0, %v3859
      %v3861 = vpop.f32.mrf.mxu0
      %3862 = vdwg.mxu0
      %3863 = vmatpush.bf16.msra.mxu0 %v3428
      %3864 = vmatpush.bf16.msra.mxu0 %v3419
      %3865 = vmatpush.bf16.msra.mxu0 %v3352
      %3866 = vmatpush.bf16.msra.mxu0 %v3343
      %3867 = vmatpush.bf16.msra.mxu0 %v3254
      %3868 = vmatpush.bf16.msra.mxu0 %v3236
      %3869 = vmatpush.bf16.msra.mxu0 %v3184
      %3870 = vmatpush.bf16.msra.mxu0 %v3166
      %3871 = vmatmul.bf16.gmra.mxu0 %v3531
      %v3872 = vpop.f32.mrf.mxu0
      %v3873 = vadd.f32 %v3860, %v3872
      %v3874 = vpop.f32.mrf.mxu0
      %3875 = vdwg.mxu0
      %3876 = vmatpush.bf16.msra.mxu0 0
      %3877 = vmatpush.bf16.msra.mxu0 0
      %3878 = vmatpush.bf16.msra.mxu0 0
      %3879 = vmatpush.bf16.msra.mxu0 0
      %3880 = vmatpush.bf16.msra.mxu0 0
      %3881 = vmatpush.bf16.msra.mxu0 0
      %3882 = vmatpush.bf16.msra.mxu0 %v3504
      %3883 = vmatpush.bf16.msra.mxu0 %v3495
      %3884 = vmatmul.bf16.gmra.mxu0 %v3536
      %v3885 = vpop.f32.mrf.mxu0
      %v3886 = vadd.f32 %v3873, %v3885
      %v3887 = vpop.f32.mrf.mxu0
      %3888 = vdwg.mxu0
      %v3889 = vld [vmem:[#allocation2] sm:$0x1]
      %3891 = vset.pattern.permute.xlu0 0
      %3892 = vperm.xlu0 %3891, %v3889
      %v3893 = vpop.permute.xlu0 %3892
      %v3895 = vperm.slane %v3893, 0
      %v3896 = vadd.f32 %v3574, %v3895
      %v3897 = vadd.f32 %v3613, %v3895
      %v3898 = vadd.f32 %v3652, %v3895
      %v3899 = vadd.f32 %v3691, %v3895
      %v3900 = vadd.f32 %v3730, %v3895
      %v3901 = vadd.f32 %v3769, %v3895
      %v3902 = vadd.f32 %v3808, %v3895
      %v3903 = vadd.f32 %v3847, %v3895
      %v3904 = vadd.f32 %v3886, %v3895
      %v3913 = vrot.slane %v3897, 7
      %v3914 = vrot.slane %v3898, 6
      %v3915 = vrot.slane %v3899, 5
      %v3916 = vrot.slane %v3900, 4
      %v3917 = vrot.slane %v3901, 3
      %v3918 = vrot.slane %v3902, 2
      %v3919 = vrot.slane %v3903, 1
      %v3920 = vsel %vm626, %v3896, %v3913
      %vm3921 = vcmask 1042434
      %v3922 = vsel %vm3921, %v3914, %v3915
      %v3923 = vsel %vm636, %v3920, %v3922
      %vm3924 = vcmask 1044484
      %v3925 = vsel %vm3924, %v3916, %v3917
      %vm3926 = vcmask 1046534
      %v3927 = vsel %vm3926, %v3918, %v3919
      %vm3928 = vcmask 1045508
      %v3929 = vsel %vm3928, %v3925, %v3927
      %v3930 = vsel %vm656, %v3923, %v3929
      %3932 = vst [vmem:[%s302] sm:$0xff] %v3930
      %v3933 = vlaneseq
      %vm3934 = vcmp.ge.s32.totalorder %v3933, 0
      %vm3935 = vcmp.lt.s32.totalorder %v3933, 62
      %vm3936 = vmand %vm3934, %vm3935
      %3937 = vst.msk [vmem:[%s302 + $0x8] sm:$0x1] %vm3936, %v3904
      %p3938 = scmp.lt.s32.totalorder %s21, 1
      %s3939 = scalar_select %p3938, %s21, 1
      %s3940 = smul.addr %s3939, 9
      %s3941 = scalar_lea.vmem %s8, %s3940
      // Predicated region
      $region53: #{mlp_policy_forward.1} parent=51 // pred_check
        %p3942 = pneg %p212
      $region54: #{mlp_policy_forward.1} parent=51 // pred_check_branch
        %3944 = sbr.rel (%p3942) target = $region56
      $region55: #{mlp_policy_forward.1} parent=51 // pred_region
        _
      $region56: #{mlp_policy_forward.1} parent=51 // pred_fallthru
        _
    $region52: #{mlp_policy_forward.1} parent=5 // pred_fallthru
      _
    %p3945 = scmp.le.s32.totalorder 2, %s16
    // Predicated region
    $region57: #{mlp_policy_forward.1} parent=5 // pred_check
      %p3946 = pneg %p3945
    $region58: #{mlp_policy_forward.1} parent=5 // pred_check_branch
      %3948 = sbr.rel (%p3946) target = $region60
    $region59: #{mlp_policy_forward.1} parent=5 // pred_region
      %s3949 = ssub.s32 %s16, 2
      // Predicated region
      $region61: #{mlp_policy_forward.1} parent=59 // pred_check
        %p3950 = pneg %p218
      $region62: #{mlp_policy_forward.1} parent=59 // pred_check_branch
        %3952 = sbr.rel (%p3950) target = $region64
      $region63: #{mlp_policy_forward.1} parent=59 // pred_region
        %p3953 = scmp.lt.s32.totalorder %s22, 1
        %s3954 = scalar_select %p3953, %s22, 1
        %s3955 = smul.addr %s3954, 9
        %s3956 = scalar_lea.vmem %s8, %s3955
      $region64: #{mlp_policy_forward.1} parent=59 // pred_fallthru
        _
    $region60: #{mlp_policy_forward.1} parent=5 // pred_fallthru
      _
  $region6: #{mlp_policy_forward.1} parent=0 // loop_footer
    %s20 = sadd.s32 1, %s16
  $region7: #{mlp_policy_forward.1} parent=0 // loop_footer_branch
    %15 = sbr.rel target = $region3
  $region8: #{mlp_policy_forward.1} parent=0 // loop_exit
    _

</llo_original>
